<compile_context>
chip_gen: v7x
topology: tpu7x:2x2x1
jax: 0.10.0
libtpu: 0.0.40
codegen_flags: <defaults>
</compile_context>

<pallas_src>
import functools

import jax
import jax.numpy as jnp
from jax.experimental import pallas as pl
from jax.experimental.pallas import tpu as pltpu  # noqa: F401  (TPU backend assumed)

EPS = 1e-5
HIDDEN = 256
LANE = 128


def _round_up(x, m):
    return (x + m - 1) // m * m


# --------------------------------------------------------------------------- #
# BatchNorm helpers (training mode, biased variance, f32 math)
# --------------------------------------------------------------------------- #
def _bn_two_pass(z, gamma, beta):
    """Two-pass BN: used for bn0 on raw inputs (no E[z^2]-mean^2 cancellation risk)."""
    mean = jnp.mean(z, axis=0, keepdims=True)
    var = jnp.mean((z - mean) ** 2, axis=0, keepdims=True)
    scale = gamma * jax.lax.rsqrt(var + EPS)
    return (z - mean) * scale + beta


def _bn_fused(z, gamma, beta):
    """Single-pass BN: sum(z) and sum(z*z) are independent reductions; one scale/shift."""
    inv_n = 1.0 / z.shape[0]
    mean = jnp.sum(z, axis=0, keepdims=True) * inv_n
    ex2 = jnp.sum(z * z, axis=0, keepdims=True) * inv_n
    var = jnp.maximum(ex2 - mean * mean, 0.0)          # clamp tiny negative rounding
    scale = gamma * jax.lax.rsqrt(var + EPS)
    shift = beta - mean * scale
    return z * scale + shift


# --------------------------------------------------------------------------- #
# Kernel: the entire forward pass, both streams, in one body (no grid)
# --------------------------------------------------------------------------- #
def _fused_kernel(x_ref, g0_ref, b0_ref, win_ref, gin_ref, bin_ref,
                  w1_ref, g1_ref, b1_ref, w2_ref, g2_ref, b2_ref,
                  wout_ref, bias_ref, out_ref, *, n_blocks, residual):
    bf16 = jnp.bfloat16
    f32 = jnp.float32

    # ---- input stage (both streams fused into one 512-wide slab) -----------
    z0 = _bn_two_pass(x_ref[...], g0_ref[...], b0_ref[...])          # (B, F)
    z = jnp.dot(z0, win_ref[...], preferred_element_type=f32)        # (B, 512), f32 MXU
    z = jnp.maximum(_bn_fused(z, gin_ref[...], bin_ref[...]), 0.0)

    # stream 0 = non-hand (lanes [0:256]), stream 1 = hand (lanes [256:512])
    zs = [z[:, :HIDDEN], z[:, HIDDEN:]]

    # ---- residual stacks: two independent chains, statically unrolled ------
    # (code is stream-by-stream; the LLO scheduler interleaves the chains)
    for s in range(2):
        zz = zs[s]
        for i in range(n_blocks):
            y = jnp.dot(zz.astype(bf16), w1_ref[s, i], preferred_element_type=f32)
            y = jnp.maximum(_bn_fused(y, g1_ref[s, i], b1_ref[s, i]), 0.0)
            y = jnp.dot(y.astype(bf16), w2_ref[s, i], preferred_element_type=f32)
            y = _bn_fused(y, g2_ref[s, i], b2_ref[s, i])
            if residual:
                y = y + zz
            zz = jnp.maximum(y, 0.0)
        zs[s] = zz

    # ---- fcOut: sum of both stream halves + bias, lane-dense f32 write -----
    out_ref[...] = (
        bias_ref[...]
        + jnp.dot(zs[0].astype(bf16), wout_ref[0], preferred_element_type=f32)
        + jnp.dot(zs[1].astype(bf16), wout_ref[1], preferred_element_type=f32))


# --------------------------------------------------------------------------- #
# Parameter construction (deterministic, synthetic) + packing for the kernel
# --------------------------------------------------------------------------- #
def _init_bn(key, f):
    kg, kb = jax.random.split(key)
    gamma = 1.0 + 0.05 * jax.random.normal(kg, (1, f), jnp.float32)
    beta = 0.05 * jax.random.normal(kb, (1, f), jnp.float32)
    return gamma, beta


def _init_linear_t(key, fin, fout):
    # stored transposed: [in, out]
    return 0.1 * jax.random.normal(key, (fin, fout), jnp.float32)


def _init_block(key, f):
    k1, k2, k3, k4 = jax.random.split(key, 4)
    g1, b1 = _init_bn(k2, f)
    g2, b2 = _init_bn(k4, f)
    return dict(w1t=_init_linear_t(k1, f, f), g1=g1, b1=b1,
                w2t=_init_linear_t(k3, f, f), g2=g2, b2=b2)


def init_params(key, in_features, out_features, dims, n_blocks):
    r3m_dim, task_dim, hand_dim = dims
    nonhand = in_features - hand_dim
    keys = jax.random.split(key, 9 + 2 * n_blocks)
    return dict(
        nh_bn0=_init_bn(keys[0], nonhand),
        nh_fcIn_t=_init_linear_t(keys[1], nonhand, HIDDEN),
        nh_bnIn=_init_bn(keys[2], HIDDEN),
        h_bn0=_init_bn(keys[3], hand_dim),
        h_fcIn_t=_init_linear_t(keys[4], hand_dim, HIDDEN),
        h_bnIn=_init_bn(keys[5], HIDDEN),
        nh_stack=[_init_block(keys[9 + i], HIDDEN) for i in range(n_blocks)],
        h_stack=[_init_block(keys[9 + n_blocks + i], HIDDEN) for i in range(n_blocks)],
        # fcOut (512 -> out): split into the nh-half / h-half, stored transposed.
        fcOut_wnh_t=_init_linear_t(keys[6], HIDDEN, out_features),
        fcOut_wh_t=_init_linear_t(keys[7], HIDDEN, out_features),
        fcOut_b=0.1 * jax.random.normal(keys[8], (1, out_features), jnp.float32),
    )


def pack_params(params, dims, in_features):
    """Fold the hand / non-hand split into the parameters (original column order),
    stack per-stream block params along a leading stream axis, pad fcOut to lane-dense
    width, and cast the 256x256 / fcOut weights to bf16 (f32 accumulation in-kernel)."""
    r3m_dim, task_dim, hand_dim = dims
    hs, he = r3m_dim + task_dim, r3m_dim + task_dim + hand_dim
    out_features = params["fcOut_b"].shape[1]
    out_pad = _round_up(out_features, LANE)
    n_blocks = len(params["nh_stack"])

    nonhand_cols = jnp.array(list(range(hs)) + list(range(he, in_features)), jnp.int32)
    hand_cols = jnp.array(list(range(hs, he)), jnp.int32)

    def scatter_cols(nh_vec, h_vec):
        v = jnp.zeros((1, in_features), jnp.float32)
        v = v.at[0, nonhand_cols].set(nh_vec[0])
        v = v.at[0, hand_cols].set(h_vec[0])
        return v

    # Block-structured fcIn: non-hand rows feed output lanes [0:256], hand rows feed
    # [256:512]. The zeros here are *structural* (required), not inert padding.
    win = jnp.zeros((in_features, 2 * HIDDEN), jnp.float32)
    win = win.at[nonhand_cols, :HIDDEN].set(params["nh_fcIn_t"])
    win = win.at[hand_cols, HIDDEN:].set(params["h_fcIn_t"])

    def stack_blocks(field, dtype=None):
        a = jnp.stack([jnp.stack([blk[field] for blk in params["nh_stack"]]),
                       jnp.stack([blk[field] for blk in params["h_stack"]])])
        return a.astype(dtype) if dtype is not None else a

    def pad_last(a, width):
        # NOTE: must pad with zeros — padded fcOut lanes get zero weight columns and a
        # zero bias and are sliced off by the wrapper.
        return jnp.pad(a, [(0, 0)] * (a.ndim - 1) + [(0, width - a.shape[-1])])

    packed = dict(
        g0=scatter_cols(params["nh_bn0"][0], params["h_bn0"][0]),
        b0=scatter_cols(params["nh_bn0"][1], params["h_bn0"][1]),
        win=win,                                                     # f32 (tiny K matmul)
        gin=jnp.concatenate([params["nh_bnIn"][0], params["h_bnIn"][0]], axis=1),
        bin=jnp.concatenate([params["nh_bnIn"][1], params["h_bnIn"][1]], axis=1),
        w1=stack_blocks("w1t", jnp.bfloat16),
        g1=stack_blocks("g1"), b1=stack_blocks("b1"),
        w2=stack_blocks("w2t", jnp.bfloat16),
        g2=stack_blocks("g2"), b2=stack_blocks("b2"),
        wout=jnp.stack([pad_last(params["fcOut_wnh_t"], out_pad),
                        pad_last(params["fcOut_wh_t"], out_pad)]).astype(jnp.bfloat16),
        bias=pad_last(params["fcOut_b"], out_pad),
    )
    meta = dict(out_pad=out_pad, out_features=out_features, n_blocks=n_blocks)
    return packed, meta


# --------------------------------------------------------------------------- #
# Forward pass: one fused, grid-less pallas_call
# --------------------------------------------------------------------------- #
def build_forward(meta, n_blocks, residual=True):
    out_pad, out_features = meta["out_pad"], meta["out_features"]
    kernel = functools.partial(_fused_kernel, n_blocks=n_blocks, residual=residual)

    def fwd(packed, x):
        B, in_features = x.shape
        args = (x, packed["g0"], packed["b0"], packed["win"], packed["gin"],
                packed["bin"], packed["w1"], packed["g1"], packed["b1"],
                packed["w2"], packed["g2"], packed["b2"], packed["wout"],
                packed["bias"])

        flops = 2 * B * (in_features * 2 * HIDDEN
                         + 2 * n_blocks * 2 * HIDDEN * HIDDEN
                         + 2 * HIDDEN * out_pad)
        rsqrts = in_features + 2 * HIDDEN + 2 * n_blocks * 2 * HIDDEN
        bytes_accessed = (sum(int(a.size) * a.dtype.itemsize for a in args)
                          + B * out_pad * 4)

        out = pl.pallas_call(
            kernel,
            out_shape=jax.ShapeDtypeStruct((B, out_pad), jnp.float32),
            cost_estimate=pl.CostEstimate(
                flops=int(flops), transcendentals=int(rsqrts),
                bytes_accessed=int(bytes_accessed)),
        )(*args)
        # Only remaining wrapper op: drop the zero-padded output lanes.
        return out[:, :out_features]

    return fwd


# --------------------------------------------------------------------------- #
# Pure-JAX reference (independent per-stream formulation, same matmul dtypes)
# --------------------------------------------------------------------------- #
def forward_ref(params, x, dims, residual=True):
    r3m_dim, task_dim, hand_dim = dims
    hs, he = r3m_dim + task_dim, r3m_dim + task_dim + hand_dim
    hand_x = x[:, hs:he]
    pieces = [p for p in (x[:, :hs], x[:, he:]) if p.shape[1] > 0]
    nonhand_x = pieces[0] if len(pieces) == 1 else jnp.concatenate(pieces, axis=1)

    def bn(z, gamma, beta):
        mean = jnp.mean(z, axis=0, keepdims=True)
        var = jnp.mean((z - mean) ** 2, axis=0, keepdims=True)
        return (z - mean) * jax.lax.rsqrt(var + EPS) * gamma + beta

    def mm_bf16(a, w):
        return jnp.dot(a.astype(jnp.bfloat16), w.astype(jnp.bfloat16),
                       preferred_element_type=jnp.float32)

    def stream(inp, bn0, fcin_t, bnin, stack):
        z = jax.nn.relu(bn(jnp.dot(bn(inp, *bn0), fcin_t,
                                   preferred_element_type=jnp.float32), *bnin))
        for blk in stack:
            y = jax.nn.relu(bn(mm_bf16(z, blk["w1t"]), blk["g1"], blk["b1"]))
            y = bn(mm_bf16(y, blk["w2t"]), blk["g2"], blk["b2"])
            if residual:
                y = y + z
            z = jax.nn.relu(y)
        return z

    nh_z = stream(nonhand_x, params["nh_bn0"], params["nh_fcIn_t"],
                  params["nh_bnIn"], params["nh_stack"])
    h_z = stream(hand_x, params["h_bn0"], params["h_fcIn_t"],
                 params["h_bnIn"], params["h_stack"])
    return (mm_bf16(nh_z, params["fcOut_wnh_t"]) + mm_bf16(h_z, params["fcOut_wh_t"])
            + params["fcOut_b"])


# --------------------------------------------------------------------------- #
if __name__ == "__main__":
    # Small, module-consistent shapes.
    r3m_dim, task_dim, hand_dim = 16, 8, 8
    dims = (r3m_dim, task_dim, hand_dim)
    in_features = r3m_dim + task_dim + hand_dim      # 32
    out_features = 10
    n_blocks = 2
    batch = 8
    residual = True

    key = jax.random.PRNGKey(0)
    k_params, k_x = jax.random.split(key)
    params = init_params(k_params, in_features, out_features, dims, n_blocks)
    x = jax.random.normal(k_x, (batch, in_features), jnp.float32)

    packed, meta = pack_params(params, dims, in_features)
    fwd = jax.jit(build_forward(meta, n_blocks, residual))

    out = jax.block_until_ready(fwd(packed, x))

    ref = forward_ref(params, x, dims, residual)
    assert out.shape == (batch, out_features)
    assert jnp.allclose(out, ref, atol=2e-3, rtol=2e-3), \
        "Pallas output mismatch vs reference"

    print("KERNEL_OK")
</pallas_src>

<mosaic_0001>
module attributes {stable_mosaic.version = 11 : i64} {
  func.func @_fused_kernel(%arg0: memref<8x32xf32, #tpu.memory_space<vmem>>, %arg1: memref<1x32xf32, #tpu.memory_space<vmem>>, %arg2: memref<1x32xf32, #tpu.memory_space<vmem>>, %arg3: memref<32x512xf32, #tpu.memory_space<vmem>>, %arg4: memref<1x512xf32, #tpu.memory_space<vmem>>, %arg5: memref<1x512xf32, #tpu.memory_space<vmem>>, %arg6: memref<2x2x256x256xbf16, #tpu.memory_space<vmem>>, %arg7: memref<2x2x1x256xf32, #tpu.memory_space<vmem>>, %arg8: memref<2x2x1x256xf32, #tpu.memory_space<vmem>>, %arg9: memref<2x2x256x256xbf16, #tpu.memory_space<vmem>>, %arg10: memref<2x2x1x256xf32, #tpu.memory_space<vmem>>, %arg11: memref<2x2x1x256xf32, #tpu.memory_space<vmem>>, %arg12: memref<2x256x128xbf16, #tpu.memory_space<vmem>>, %arg13: memref<1x128xf32, #tpu.memory_space<vmem>>, %arg14: memref<8x128xf32, #tpu.memory_space<vmem>>) attributes {dimension_semantics = [], scalar_prefetch = 0 : i64, scratch_operands = 0 : i64, tpu.core_type = #tpu.core_type<tc>} {
    %c0 = arith.constant 0 : index
    %c0_0 = arith.constant 0 : index
    %0 = vector.load %arg0[%c0, %c0_0] : memref<8x32xf32, #tpu.memory_space<vmem>>, vector<8x32xf32>
    %c0_1 = arith.constant 0 : index
    %c0_2 = arith.constant 0 : index
    %1 = vector.load %arg1[%c0_1, %c0_2] : memref<1x32xf32, #tpu.memory_space<vmem>>, vector<1x32xf32>
    %c0_3 = arith.constant 0 : index
    %c0_4 = arith.constant 0 : index
    %2 = vector.load %arg2[%c0_3, %c0_4] : memref<1x32xf32, #tpu.memory_space<vmem>>, vector<1x32xf32>
    %cst = arith.constant dense<0.000000e+00> : vector<32xf32>
    %3 = vector.multi_reduction <add>, %0, %cst [0] : vector<8x32xf32> to vector<32xf32>
    %4 = vector.shape_cast %3 : vector<32xf32> to vector<1x32xf32>
    %cst_5 = arith.constant 8.000000e+00 : f32
    %5 = vector.broadcast %cst_5 : f32 to vector<1x32xf32>
    %6 = arith.divf %4, %5 : vector<1x32xf32>
    %7 = vector.broadcast %6 : vector<1x32xf32> to vector<8x32xf32>
    %8 = arith.subf %0, %7 : vector<8x32xf32>
    %9 = arith.mulf %8, %8 : vector<8x32xf32>
    %cst_6 = arith.constant dense<0.000000e+00> : vector<32xf32>
    %10 = vector.multi_reduction <add>, %9, %cst_6 [0] : vector<8x32xf32> to vector<32xf32>
    %11 = vector.shape_cast %10 : vector<32xf32> to vector<1x32xf32>
    %cst_7 = arith.constant 8.000000e+00 : f32
    %12 = vector.broadcast %cst_7 : f32 to vector<1x32xf32>
    %13 = arith.divf %11, %12 : vector<1x32xf32>
    %cst_8 = arith.constant 9.99999974E-6 : f32
    %14 = vector.broadcast %cst_8 : f32 to vector<1x32xf32>
    %15 = arith.addf %13, %14 : vector<1x32xf32>
    %16 = math.rsqrt %15 : vector<1x32xf32>
    %17 = arith.mulf %1, %16 : vector<1x32xf32>
    %18 = vector.broadcast %6 : vector<1x32xf32> to vector<8x32xf32>
    %19 = arith.subf %0, %18 : vector<8x32xf32>
    %20 = vector.broadcast %17 : vector<1x32xf32> to vector<8x32xf32>
    %21 = arith.mulf %19, %20 : vector<8x32xf32>
    %22 = vector.broadcast %2 : vector<1x32xf32> to vector<8x32xf32>
    %23 = arith.addf %21, %22 : vector<8x32xf32>
    %c0_9 = arith.constant 0 : index
    %c0_10 = arith.constant 0 : index
    %24 = vector.load %arg3[%c0_9, %c0_10] : memref<32x512xf32, #tpu.memory_space<vmem>>, vector<32x512xf32>
    %cst_11 = arith.constant dense<0.000000e+00> : vector<8x512xf32>
    %25 = tpu.matmul %23, %24, %cst_11 {dimension_numbers = #tpu.dot_dimension_numbers<[1], [0], [0], [1], [0, 0, 1, 1], [], []>} : vector<8x32xf32>, vector<32x512xf32>, vector<8x512xf32> -> vector<8x512xf32>
    %c0_12 = arith.constant 0 : index
    %c0_13 = arith.constant 0 : index
    %26 = vector.load %arg4[%c0_12, %c0_13] : memref<1x512xf32, #tpu.memory_space<vmem>>, vector<1x512xf32>
    %c0_14 = arith.constant 0 : index
    %c0_15 = arith.constant 0 : index
    %27 = vector.load %arg5[%c0_14, %c0_15] : memref<1x512xf32, #tpu.memory_space<vmem>>, vector<1x512xf32>
    %cst_16 = arith.constant dense<0.000000e+00> : vector<512xf32>
    %28 = vector.multi_reduction <add>, %25, %cst_16 [0] : vector<8x512xf32> to vector<512xf32>
    %29 = vector.shape_cast %28 : vector<512xf32> to vector<1x512xf32>
    %cst_17 = arith.constant 1.250000e-01 : f32
    %30 = vector.broadcast %cst_17 : f32 to vector<1x512xf32>
    %31 = arith.mulf %29, %30 : vector<1x512xf32>
    %32 = arith.mulf %25, %25 : vector<8x512xf32>
    %cst_18 = arith.constant dense<0.000000e+00> : vector<512xf32>
    %33 = vector.multi_reduction <add>, %32, %cst_18 [0] : vector<8x512xf32> to vector<512xf32>
    %34 = vector.shape_cast %33 : vector<512xf32> to vector<1x512xf32>
    %cst_19 = arith.constant 1.250000e-01 : f32
    %35 = vector.broadcast %cst_19 : f32 to vector<1x512xf32>
    %36 = arith.mulf %34, %35 : vector<1x512xf32>
    %37 = arith.mulf %31, %31 : vector<1x512xf32>
    %38 = arith.subf %36, %37 : vector<1x512xf32>
    %cst_20 = arith.constant 0.000000e+00 : f32
    %39 = vector.broadcast %cst_20 : f32 to vector<1x512xf32>
    %40 = arith.maximumf %38, %39 : vector<1x512xf32>
    %cst_21 = arith.constant 9.99999974E-6 : f32
    %41 = vector.broadcast %cst_21 : f32 to vector<1x512xf32>
    %42 = arith.addf %40, %41 : vector<1x512xf32>
    %43 = math.rsqrt %42 : vector<1x512xf32>
    %44 = arith.mulf %26, %43 : vector<1x512xf32>
    %45 = arith.mulf %31, %44 : vector<1x512xf32>
    %46 = arith.subf %27, %45 : vector<1x512xf32>
    %47 = vector.broadcast %44 : vector<1x512xf32> to vector<8x512xf32>
    %48 = arith.mulf %25, %47 : vector<8x512xf32>
    %49 = vector.broadcast %46 : vector<1x512xf32> to vector<8x512xf32>
    %50 = arith.addf %48, %49 : vector<8x512xf32>
    %cst_22 = arith.constant 0.000000e+00 : f32
    %51 = vector.broadcast %cst_22 : f32 to vector<8x512xf32>
    %52 = arith.maximumf %50, %51 : vector<8x512xf32>
    %53 = vector.extract_strided_slice %52 {offsets = [0, 0], sizes = [8, 256], strides = [1, 1]} : vector<8x512xf32> to vector<8x256xf32>
    %54 = vector.extract_strided_slice %52 {offsets = [0, 256], sizes = [8, 256], strides = [1, 1]} : vector<8x512xf32> to vector<8x256xf32>
    %55 = arith.truncf %53 : vector<8x256xf32> to vector<8x256xbf16>
    %c0_23 = arith.constant 0 : index
    %c0_24 = arith.constant 0 : index
    %c0_25 = arith.constant 0 : index
    %c0_26 = arith.constant 0 : index
    %56 = vector.load %arg6[%c0_23, %c0_24, %c0_25, %c0_26] : memref<2x2x256x256xbf16, #tpu.memory_space<vmem>>, vector<1x1x256x256xbf16>
    %57 = vector.shape_cast %56 : vector<1x1x256x256xbf16> to vector<256x256xbf16>
    %cst_27 = arith.constant dense<0.000000e+00> : vector<8x256xf32>
    %58 = tpu.matmul %55, %57, %cst_27 {dimension_numbers = #tpu.dot_dimension_numbers<[1], [0], [0], [1], [0, 0, 1, 1], [], []>} : vector<8x256xbf16>, vector<256x256xbf16>, vector<8x256xf32> -> vector<8x256xf32>
    %c0_28 = arith.constant 0 : index
    %c0_29 = arith.constant 0 : index
    %c0_30 = arith.constant 0 : index
    %c0_31 = arith.constant 0 : index
    %59 = vector.load %arg7[%c0_28, %c0_29, %c0_30, %c0_31] : memref<2x2x1x256xf32, #tpu.memory_space<vmem>>, vector<1x1x1x256xf32>
    %60 = vector.shape_cast %59 : vector<1x1x1x256xf32> to vector<1x256xf32>
    %c0_32 = arith.constant 0 : index
    %c0_33 = arith.constant 0 : index
    %c0_34 = arith.constant 0 : index
    %c0_35 = arith.constant 0 : index
    %61 = vector.load %arg8[%c0_32, %c0_33, %c0_34, %c0_35] : memref<2x2x1x256xf32, #tpu.memory_space<vmem>>, vector<1x1x1x256xf32>
    %62 = vector.shape_cast %61 : vector<1x1x1x256xf32> to vector<1x256xf32>
    %cst_36 = arith.constant dense<0.000000e+00> : vector<256xf32>
    %63 = vector.multi_reduction <add>, %58, %cst_36 [0] : vector<8x256xf32> to vector<256xf32>
    %64 = vector.shape_cast %63 : vector<256xf32> to vector<1x256xf32>
    %cst_37 = arith.constant 1.250000e-01 : f32
    %65 = vector.broadcast %cst_37 : f32 to vector<1x256xf32>
    %66 = arith.mulf %64, %65 : vector<1x256xf32>
    %67 = arith.mulf %58, %58 : vector<8x256xf32>
    %cst_38 = arith.constant dense<0.000000e+00> : vector<256xf32>
    %68 = vector.multi_reduction <add>, %67, %cst_38 [0] : vector<8x256xf32> to vector<256xf32>
    %69 = vector.shape_cast %68 : vector<256xf32> to vector<1x256xf32>
    %cst_39 = arith.constant 1.250000e-01 : f32
    %70 = vector.broadcast %cst_39 : f32 to vector<1x256xf32>
    %71 = arith.mulf %69, %70 : vector<1x256xf32>
    %72 = arith.mulf %66, %66 : vector<1x256xf32>
    %73 = arith.subf %71, %72 : vector<1x256xf32>
    %cst_40 = arith.constant 0.000000e+00 : f32
    %74 = vector.broadcast %cst_40 : f32 to vector<1x256xf32>
    %75 = arith.maximumf %73, %74 : vector<1x256xf32>
    %cst_41 = arith.constant 9.99999974E-6 : f32
    %76 = vector.broadcast %cst_41 : f32 to vector<1x256xf32>
    %77 = arith.addf %75, %76 : vector<1x256xf32>
    %78 = math.rsqrt %77 : vector<1x256xf32>
    %79 = arith.mulf %60, %78 : vector<1x256xf32>
    %80 = arith.mulf %66, %79 : vector<1x256xf32>
    %81 = arith.subf %62, %80 : vector<1x256xf32>
    %82 = vector.broadcast %79 : vector<1x256xf32> to vector<8x256xf32>
    %83 = arith.mulf %58, %82 : vector<8x256xf32>
    %84 = vector.broadcast %81 : vector<1x256xf32> to vector<8x256xf32>
    %85 = arith.addf %83, %84 : vector<8x256xf32>
    %cst_42 = arith.constant 0.000000e+00 : f32
    %86 = vector.broadcast %cst_42 : f32 to vector<8x256xf32>
    %87 = arith.maximumf %85, %86 : vector<8x256xf32>
    %88 = arith.truncf %87 : vector<8x256xf32> to vector<8x256xbf16>
    %c0_43 = arith.constant 0 : index
    %c0_44 = arith.constant 0 : index
    %c0_45 = arith.constant 0 : index
    %c0_46 = arith.constant 0 : index
    %89 = vector.load %arg9[%c0_43, %c0_44, %c0_45, %c0_46] : memref<2x2x256x256xbf16, #tpu.memory_space<vmem>>, vector<1x1x256x256xbf16>
    %90 = vector.shape_cast %89 : vector<1x1x256x256xbf16> to vector<256x256xbf16>
    %cst_47 = arith.constant dense<0.000000e+00> : vector<8x256xf32>
    %91 = tpu.matmul %88, %90, %cst_47 {dimension_numbers = #tpu.dot_dimension_numbers<[1], [0], [0], [1], [0, 0, 1, 1], [], []>} : vector<8x256xbf16>, vector<256x256xbf16>, vector<8x256xf32> -> vector<8x256xf32>
    %c0_48 = arith.constant 0 : index
    %c0_49 = arith.constant 0 : index
    %c0_50 = arith.constant 0 : index
    %c0_51 = arith.constant 0 : index
    %92 = vector.load %arg10[%c0_48, %c0_49, %c0_50, %c0_51] : memref<2x2x1x256xf32, #tpu.memory_space<vmem>>, vector<1x1x1x256xf32>
    %93 = vector.shape_cast %92 : vector<1x1x1x256xf32> to vector<1x256xf32>
    %c0_52 = arith.constant 0 : index
    %c0_53 = arith.constant 0 : index
    %c0_54 = arith.constant 0 : index
    %c0_55 = arith.constant 0 : index
    %94 = vector.load %arg11[%c0_52, %c0_53, %c0_54, %c0_55] : memref<2x2x1x256xf32, #tpu.memory_space<vmem>>, vector<1x1x1x256xf32>
    %95 = vector.shape_cast %94 : vector<1x1x1x256xf32> to vector<1x256xf32>
    %cst_56 = arith.constant dense<0.000000e+00> : vector<256xf32>
    %96 = vector.multi_reduction <add>, %91, %cst_56 [0] : vector<8x256xf32> to vector<256xf32>
    %97 = vector.shape_cast %96 : vector<256xf32> to vector<1x256xf32>
    %cst_57 = arith.constant 1.250000e-01 : f32
    %98 = vector.broadcast %cst_57 : f32 to vector<1x256xf32>
    %99 = arith.mulf %97, %98 : vector<1x256xf32>
    %100 = arith.mulf %91, %91 : vector<8x256xf32>
    %cst_58 = arith.constant dense<0.000000e+00> : vector<256xf32>
    %101 = vector.multi_reduction <add>, %100, %cst_58 [0] : vector<8x256xf32> to vector<256xf32>
    %102 = vector.shape_cast %101 : vector<256xf32> to vector<1x256xf32>
    %cst_59 = arith.constant 1.250000e-01 : f32
    %103 = vector.broadcast %cst_59 : f32 to vector<1x256xf32>
    %104 = arith.mulf %102, %103 : vector<1x256xf32>
    %105 = arith.mulf %99, %99 : vector<1x256xf32>
    %106 = arith.subf %104, %105 : vector<1x256xf32>
    %cst_60 = arith.constant 0.000000e+00 : f32
    %107 = vector.broadcast %cst_60 : f32 to vector<1x256xf32>
    %108 = arith.maximumf %106, %107 : vector<1x256xf32>
    %cst_61 = arith.constant 9.99999974E-6 : f32
    %109 = vector.broadcast %cst_61 : f32 to vector<1x256xf32>
    %110 = arith.addf %108, %109 : vector<1x256xf32>
    %111 = math.rsqrt %110 : vector<1x256xf32>
    %112 = arith.mulf %93, %111 : vector<1x256xf32>
    %113 = arith.mulf %99, %112 : vector<1x256xf32>
    %114 = arith.subf %95, %113 : vector<1x256xf32>
    %115 = vector.broadcast %112 : vector<1x256xf32> to vector<8x256xf32>
    %116 = arith.mulf %91, %115 : vector<8x256xf32>
    %117 = vector.broadcast %114 : vector<1x256xf32> to vector<8x256xf32>
    %118 = arith.addf %116, %117 : vector<8x256xf32>
    %119 = arith.addf %118, %53 : vector<8x256xf32>
    %cst_62 = arith.constant 0.000000e+00 : f32
    %120 = vector.broadcast %cst_62 : f32 to vector<8x256xf32>
    %121 = arith.maximumf %119, %120 : vector<8x256xf32>
    %122 = arith.truncf %121 : vector<8x256xf32> to vector<8x256xbf16>
    %c0_63 = arith.constant 0 : index
    %c1 = arith.constant 1 : index
    %c0_64 = arith.constant 0 : index
    %c0_65 = arith.constant 0 : index
    %123 = vector.load %arg6[%c0_63, %c1, %c0_64, %c0_65] : memref<2x2x256x256xbf16, #tpu.memory_space<vmem>>, vector<1x1x256x256xbf16>
    %124 = vector.shape_cast %123 : vector<1x1x256x256xbf16> to vector<256x256xbf16>
    %cst_66 = arith.constant dense<0.000000e+00> : vector<8x256xf32>
    %125 = tpu.matmul %122, %124, %cst_66 {dimension_numbers = #tpu.dot_dimension_numbers<[1], [0], [0], [1], [0, 0, 1, 1], [], []>} : vector<8x256xbf16>, vector<256x256xbf16>, vector<8x256xf32> -> vector<8x256xf32>
    %c0_67 = arith.constant 0 : index
    %c1_68 = arith.constant 1 : index
    %c0_69 = arith.constant 0 : index
    %c0_70 = arith.constant 0 : index
    %126 = vector.load %arg7[%c0_67, %c1_68, %c0_69, %c0_70] : memref<2x2x1x256xf32, #tpu.memory_space<vmem>>, vector<1x1x1x256xf32>
    %127 = vector.shape_cast %126 : vector<1x1x1x256xf32> to vector<1x256xf32>
    %c0_71 = arith.constant 0 : index
    %c1_72 = arith.constant 1 : index
    %c0_73 = arith.constant 0 : index
    %c0_74 = arith.constant 0 : index
    %128 = vector.load %arg8[%c0_71, %c1_72, %c0_73, %c0_74] : memref<2x2x1x256xf32, #tpu.memory_space<vmem>>, vector<1x1x1x256xf32>
    %129 = vector.shape_cast %128 : vector<1x1x1x256xf32> to vector<1x256xf32>
    %cst_75 = arith.constant dense<0.000000e+00> : vector<256xf32>
    %130 = vector.multi_reduction <add>, %125, %cst_75 [0] : vector<8x256xf32> to vector<256xf32>
    %131 = vector.shape_cast %130 : vector<256xf32> to vector<1x256xf32>
    %cst_76 = arith.constant 1.250000e-01 : f32
    %132 = vector.broadcast %cst_76 : f32 to vector<1x256xf32>
    %133 = arith.mulf %131, %132 : vector<1x256xf32>
    %134 = arith.mulf %125, %125 : vector<8x256xf32>
    %cst_77 = arith.constant dense<0.000000e+00> : vector<256xf32>
    %135 = vector.multi_reduction <add>, %134, %cst_77 [0] : vector<8x256xf32> to vector<256xf32>
    %136 = vector.shape_cast %135 : vector<256xf32> to vector<1x256xf32>
    %cst_78 = arith.constant 1.250000e-01 : f32
    %137 = vector.broadcast %cst_78 : f32 to vector<1x256xf32>
    %138 = arith.mulf %136, %137 : vector<1x256xf32>
    %139 = arith.mulf %133, %133 : vector<1x256xf32>
    %140 = arith.subf %138, %139 : vector<1x256xf32>
    %cst_79 = arith.constant 0.000000e+00 : f32
    %141 = vector.broadcast %cst_79 : f32 to vector<1x256xf32>
    %142 = arith.maximumf %140, %141 : vector<1x256xf32>
    %cst_80 = arith.constant 9.99999974E-6 : f32
    %143 = vector.broadcast %cst_80 : f32 to vector<1x256xf32>
    %144 = arith.addf %142, %143 : vector<1x256xf32>
    %145 = math.rsqrt %144 : vector<1x256xf32>
    %146 = arith.mulf %127, %145 : vector<1x256xf32>
    %147 = arith.mulf %133, %146 : vector<1x256xf32>
    %148 = arith.subf %129, %147 : vector<1x256xf32>
    %149 = vector.broadcast %146 : vector<1x256xf32> to vector<8x256xf32>
    %150 = arith.mulf %125, %149 : vector<8x256xf32>
    %151 = vector.broadcast %148 : vector<1x256xf32> to vector<8x256xf32>
    %152 = arith.addf %150, %151 : vector<8x256xf32>
    %cst_81 = arith.constant 0.000000e+00 : f32
    %153 = vector.broadcast %cst_81 : f32 to vector<8x256xf32>
    %154 = arith.maximumf %152, %153 : vector<8x256xf32>
    %155 = arith.truncf %154 : vector<8x256xf32> to vector<8x256xbf16>
    %c0_82 = arith.constant 0 : index
    %c1_83 = arith.constant 1 : index
    %c0_84 = arith.constant 0 : index
    %c0_85 = arith.constant 0 : index
    %156 = vector.load %arg9[%c0_82, %c1_83, %c0_84, %c0_85] : memref<2x2x256x256xbf16, #tpu.memory_space<vmem>>, vector<1x1x256x256xbf16>
    %157 = vector.shape_cast %156 : vector<1x1x256x256xbf16> to vector<256x256xbf16>
    %cst_86 = arith.constant dense<0.000000e+00> : vector<8x256xf32>
    %158 = tpu.matmul %155, %157, %cst_86 {dimension_numbers = #tpu.dot_dimension_numbers<[1], [0], [0], [1], [0, 0, 1, 1], [], []>} : vector<8x256xbf16>, vector<256x256xbf16>, vector<8x256xf32> -> vector<8x256xf32>
    %c0_87 = arith.constant 0 : index
    %c1_88 = arith.constant 1 : index
    %c0_89 = arith.constant 0 : index
    %c0_90 = arith.constant 0 : index
    %159 = vector.load %arg10[%c0_87, %c1_88, %c0_89, %c0_90] : memref<2x2x1x256xf32, #tpu.memory_space<vmem>>, vector<1x1x1x256xf32>
    %160 = vector.shape_cast %159 : vector<1x1x1x256xf32> to vector<1x256xf32>
    %c0_91 = arith.constant 0 : index
    %c1_92 = arith.constant 1 : index
    %c0_93 = arith.constant 0 : index
    %c0_94 = arith.constant 0 : index
    %161 = vector.load %arg11[%c0_91, %c1_92, %c0_93, %c0_94] : memref<2x2x1x256xf32, #tpu.memory_space<vmem>>, vector<1x1x1x256xf32>
    %162 = vector.shape_cast %161 : vector<1x1x1x256xf32> to vector<1x256xf32>
    %cst_95 = arith.constant dense<0.000000e+00> : vector<256xf32>
    %163 = vector.multi_reduction <add>, %158, %cst_95 [0] : vector<8x256xf32> to vector<256xf32>
    %164 = vector.shape_cast %163 : vector<256xf32> to vector<1x256xf32>
    %cst_96 = arith.constant 1.250000e-01 : f32
    %165 = vector.broadcast %cst_96 : f32 to vector<1x256xf32>
    %166 = arith.mulf %164, %165 : vector<1x256xf32>
    %167 = arith.mulf %158, %158 : vector<8x256xf32>
    %cst_97 = arith.constant dense<0.000000e+00> : vector<256xf32>
    %168 = vector.multi_reduction <add>, %167, %cst_97 [0] : vector<8x256xf32> to vector<256xf32>
    %169 = vector.shape_cast %168 : vector<256xf32> to vector<1x256xf32>
    %cst_98 = arith.constant 1.250000e-01 : f32
    %170 = vector.broadcast %cst_98 : f32 to vector<1x256xf32>
    %171 = arith.mulf %169, %170 : vector<1x256xf32>
    %172 = arith.mulf %166, %166 : vector<1x256xf32>
    %173 = arith.subf %171, %172 : vector<1x256xf32>
    %cst_99 = arith.constant 0.000000e+00 : f32
    %174 = vector.broadcast %cst_99 : f32 to vector<1x256xf32>
    %175 = arith.maximumf %173, %174 : vector<1x256xf32>
    %cst_100 = arith.constant 9.99999974E-6 : f32
    %176 = vector.broadcast %cst_100 : f32 to vector<1x256xf32>
    %177 = arith.addf %175, %176 : vector<1x256xf32>
    %178 = math.rsqrt %177 : vector<1x256xf32>
    %179 = arith.mulf %160, %178 : vector<1x256xf32>
    %180 = arith.mulf %166, %179 : vector<1x256xf32>
    %181 = arith.subf %162, %180 : vector<1x256xf32>
    %182 = vector.broadcast %179 : vector<1x256xf32> to vector<8x256xf32>
    %183 = arith.mulf %158, %182 : vector<8x256xf32>
    %184 = vector.broadcast %181 : vector<1x256xf32> to vector<8x256xf32>
    %185 = arith.addf %183, %184 : vector<8x256xf32>
    %186 = arith.addf %185, %121 : vector<8x256xf32>
    %cst_101 = arith.constant 0.000000e+00 : f32
    %187 = vector.broadcast %cst_101 : f32 to vector<8x256xf32>
    %188 = arith.maximumf %186, %187 : vector<8x256xf32>
    %189 = arith.truncf %54 : vector<8x256xf32> to vector<8x256xbf16>
    %c1_102 = arith.constant 1 : index
    %c0_103 = arith.constant 0 : index
    %c0_104 = arith.constant 0 : index
    %c0_105 = arith.constant 0 : index
    %190 = vector.load %arg6[%c1_102, %c0_103, %c0_104, %c0_105] : memref<2x2x256x256xbf16, #tpu.memory_space<vmem>>, vector<1x1x256x256xbf16>
    %191 = vector.shape_cast %190 : vector<1x1x256x256xbf16> to vector<256x256xbf16>
    %cst_106 = arith.constant dense<0.000000e+00> : vector<8x256xf32>
    %192 = tpu.matmul %189, %191, %cst_106 {dimension_numbers = #tpu.dot_dimension_numbers<[1], [0], [0], [1], [0, 0, 1, 1], [], []>} : vector<8x256xbf16>, vector<256x256xbf16>, vector<8x256xf32> -> vector<8x256xf32>
    %c1_107 = arith.constant 1 : index
    %c0_108 = arith.constant 0 : index
    %c0_109 = arith.constant 0 : index
    %c0_110 = arith.constant 0 : index
    %193 = vector.load %arg7[%c1_107, %c0_108, %c0_109, %c0_110] : memref<2x2x1x256xf32, #tpu.memory_space<vmem>>, vector<1x1x1x256xf32>
    %194 = vector.shape_cast %193 : vector<1x1x1x256xf32> to vector<1x256xf32>
    %c1_111 = arith.constant 1 : index
    %c0_112 = arith.constant 0 : index
    %c0_113 = arith.constant 0 : index
    %c0_114 = arith.constant 0 : index
    %195 = vector.load %arg8[%c1_111, %c0_112, %c0_113, %c0_114] : memref<2x2x1x256xf32, #tpu.memory_space<vmem>>, vector<1x1x1x256xf32>
    %196 = vector.shape_cast %195 : vector<1x1x1x256xf32> to vector<1x256xf32>
    %cst_115 = arith.constant dense<0.000000e+00> : vector<256xf32>
    %197 = vector.multi_reduction <add>, %192, %cst_115 [0] : vector<8x256xf32> to vector<256xf32>
    %198 = vector.shape_cast %197 : vector<256xf32> to vector<1x256xf32>
    %cst_116 = arith.constant 1.250000e-01 : f32
    %199 = vector.broadcast %cst_116 : f32 to vector<1x256xf32>
    %200 = arith.mulf %198, %199 : vector<1x256xf32>
    %201 = arith.mulf %192, %192 : vector<8x256xf32>
    %cst_117 = arith.constant dense<0.000000e+00> : vector<256xf32>
    %202 = vector.multi_reduction <add>, %201, %cst_117 [0] : vector<8x256xf32> to vector<256xf32>
    %203 = vector.shape_cast %202 : vector<256xf32> to vector<1x256xf32>
    %cst_118 = arith.constant 1.250000e-01 : f32
    %204 = vector.broadcast %cst_118 : f32 to vector<1x256xf32>
    %205 = arith.mulf %203, %204 : vector<1x256xf32>
    %206 = arith.mulf %200, %200 : vector<1x256xf32>
    %207 = arith.subf %205, %206 : vector<1x256xf32>
    %cst_119 = arith.constant 0.000000e+00 : f32
    %208 = vector.broadcast %cst_119 : f32 to vector<1x256xf32>
    %209 = arith.maximumf %207, %208 : vector<1x256xf32>
    %cst_120 = arith.constant 9.99999974E-6 : f32
    %210 = vector.broadcast %cst_120 : f32 to vector<1x256xf32>
    %211 = arith.addf %209, %210 : vector<1x256xf32>
    %212 = math.rsqrt %211 : vector<1x256xf32>
    %213 = arith.mulf %194, %212 : vector<1x256xf32>
    %214 = arith.mulf %200, %213 : vector<1x256xf32>
    %215 = arith.subf %196, %214 : vector<1x256xf32>
    %216 = vector.broadcast %213 : vector<1x256xf32> to vector<8x256xf32>
    %217 = arith.mulf %192, %216 : vector<8x256xf32>
    %218 = vector.broadcast %215 : vector<1x256xf32> to vector<8x256xf32>
    %219 = arith.addf %217, %218 : vector<8x256xf32>
    %cst_121 = arith.constant 0.000000e+00 : f32
    %220 = vector.broadcast %cst_121 : f32 to vector<8x256xf32>
    %221 = arith.maximumf %219, %220 : vector<8x256xf32>
    %222 = arith.truncf %221 : vector<8x256xf32> to vector<8x256xbf16>
    %c1_122 = arith.constant 1 : index
    %c0_123 = arith.constant 0 : index
    %c0_124 = arith.constant 0 : index
    %c0_125 = arith.constant 0 : index
    %223 = vector.load %arg9[%c1_122, %c0_123, %c0_124, %c0_125] : memref<2x2x256x256xbf16, #tpu.memory_space<vmem>>, vector<1x1x256x256xbf16>
    %224 = vector.shape_cast %223 : vector<1x1x256x256xbf16> to vector<256x256xbf16>
    %cst_126 = arith.constant dense<0.000000e+00> : vector<8x256xf32>
    %225 = tpu.matmul %222, %224, %cst_126 {dimension_numbers = #tpu.dot_dimension_numbers<[1], [0], [0], [1], [0, 0, 1, 1], [], []>} : vector<8x256xbf16>, vector<256x256xbf16>, vector<8x256xf32> -> vector<8x256xf32>
    %c1_127 = arith.constant 1 : index
    %c0_128 = arith.constant 0 : index
    %c0_129 = arith.constant 0 : index
    %c0_130 = arith.constant 0 : index
    %226 = vector.load %arg10[%c1_127, %c0_128, %c0_129, %c0_130] : memref<2x2x1x256xf32, #tpu.memory_space<vmem>>, vector<1x1x1x256xf32>
    %227 = vector.shape_cast %226 : vector<1x1x1x256xf32> to vector<1x256xf32>
    %c1_131 = arith.constant 1 : index
    %c0_132 = arith.constant 0 : index
    %c0_133 = arith.constant 0 : index
    %c0_134 = arith.constant 0 : index
    %228 = vector.load %arg11[%c1_131, %c0_132, %c0_133, %c0_134] : memref<2x2x1x256xf32, #tpu.memory_space<vmem>>, vector<1x1x1x256xf32>
    %229 = vector.shape_cast %228 : vector<1x1x1x256xf32> to vector<1x256xf32>
    %cst_135 = arith.constant dense<0.000000e+00> : vector<256xf32>
    %230 = vector.multi_reduction <add>, %225, %cst_135 [0] : vector<8x256xf32> to vector<256xf32>
    %231 = vector.shape_cast %230 : vector<256xf32> to vector<1x256xf32>
    %cst_136 = arith.constant 1.250000e-01 : f32
    %232 = vector.broadcast %cst_136 : f32 to vector<1x256xf32>
    %233 = arith.mulf %231, %232 : vector<1x256xf32>
    %234 = arith.mulf %225, %225 : vector<8x256xf32>
    %cst_137 = arith.constant dense<0.000000e+00> : vector<256xf32>
    %235 = vector.multi_reduction <add>, %234, %cst_137 [0] : vector<8x256xf32> to vector<256xf32>
    %236 = vector.shape_cast %235 : vector<256xf32> to vector<1x256xf32>
    %cst_138 = arith.constant 1.250000e-01 : f32
    %237 = vector.broadcast %cst_138 : f32 to vector<1x256xf32>
    %238 = arith.mulf %236, %237 : vector<1x256xf32>
    %239 = arith.mulf %233, %233 : vector<1x256xf32>
    %240 = arith.subf %238, %239 : vector<1x256xf32>
    %cst_139 = arith.constant 0.000000e+00 : f32
    %241 = vector.broadcast %cst_139 : f32 to vector<1x256xf32>
    %242 = arith.maximumf %240, %241 : vector<1x256xf32>
    %cst_140 = arith.constant 9.99999974E-6 : f32
    %243 = vector.broadcast %cst_140 : f32 to vector<1x256xf32>
    %244 = arith.addf %242, %243 : vector<1x256xf32>
    %245 = math.rsqrt %244 : vector<1x256xf32>
    %246 = arith.mulf %227, %245 : vector<1x256xf32>
    %247 = arith.mulf %233, %246 : vector<1x256xf32>
    %248 = arith.subf %229, %247 : vector<1x256xf32>
    %249 = vector.broadcast %246 : vector<1x256xf32> to vector<8x256xf32>
    %250 = arith.mulf %225, %249 : vector<8x256xf32>
    %251 = vector.broadcast %248 : vector<1x256xf32> to vector<8x256xf32>
    %252 = arith.addf %250, %251 : vector<8x256xf32>
    %253 = arith.addf %252, %54 : vector<8x256xf32>
    %cst_141 = arith.constant 0.000000e+00 : f32
    %254 = vector.broadcast %cst_141 : f32 to vector<8x256xf32>
    %255 = arith.maximumf %253, %254 : vector<8x256xf32>
    %256 = arith.truncf %255 : vector<8x256xf32> to vector<8x256xbf16>
    %c1_142 = arith.constant 1 : index
    %c1_143 = arith.constant 1 : index
    %c0_144 = arith.constant 0 : index
    %c0_145 = arith.constant 0 : index
    %257 = vector.load %arg6[%c1_142, %c1_143, %c0_144, %c0_145] : memref<2x2x256x256xbf16, #tpu.memory_space<vmem>>, vector<1x1x256x256xbf16>
    %258 = vector.shape_cast %257 : vector<1x1x256x256xbf16> to vector<256x256xbf16>
    %cst_146 = arith.constant dense<0.000000e+00> : vector<8x256xf32>
    %259 = tpu.matmul %256, %258, %cst_146 {dimension_numbers = #tpu.dot_dimension_numbers<[1], [0], [0], [1], [0, 0, 1, 1], [], []>} : vector<8x256xbf16>, vector<256x256xbf16>, vector<8x256xf32> -> vector<8x256xf32>
    %c1_147 = arith.constant 1 : index
    %c1_148 = arith.constant 1 : index
    %c0_149 = arith.constant 0 : index
    %c0_150 = arith.constant 0 : index
    %260 = vector.load %arg7[%c1_147, %c1_148, %c0_149, %c0_150] : memref<2x2x1x256xf32, #tpu.memory_space<vmem>>, vector<1x1x1x256xf32>
    %261 = vector.shape_cast %260 : vector<1x1x1x256xf32> to vector<1x256xf32>
    %c1_151 = arith.constant 1 : index
    %c1_152 = arith.constant 1 : index
    %c0_153 = arith.constant 0 : index
    %c0_154 = arith.constant 0 : index
    %262 = vector.load %arg8[%c1_151, %c1_152, %c0_153, %c0_154] : memref<2x2x1x256xf32, #tpu.memory_space<vmem>>, vector<1x1x1x256xf32>
    %263 = vector.shape_cast %262 : vector<1x1x1x256xf32> to vector<1x256xf32>
    %cst_155 = arith.constant dense<0.000000e+00> : vector<256xf32>
    %264 = vector.multi_reduction <add>, %259, %cst_155 [0] : vector<8x256xf32> to vector<256xf32>
    %265 = vector.shape_cast %264 : vector<256xf32> to vector<1x256xf32>
    %cst_156 = arith.constant 1.250000e-01 : f32
    %266 = vector.broadcast %cst_156 : f32 to vector<1x256xf32>
    %267 = arith.mulf %265, %266 : vector<1x256xf32>
    %268 = arith.mulf %259, %259 : vector<8x256xf32>
    %cst_157 = arith.constant dense<0.000000e+00> : vector<256xf32>
    %269 = vector.multi_reduction <add>, %268, %cst_157 [0] : vector<8x256xf32> to vector<256xf32>
    %270 = vector.shape_cast %269 : vector<256xf32> to vector<1x256xf32>
    %cst_158 = arith.constant 1.250000e-01 : f32
    %271 = vector.broadcast %cst_158 : f32 to vector<1x256xf32>
    %272 = arith.mulf %270, %271 : vector<1x256xf32>
    %273 = arith.mulf %267, %267 : vector<1x256xf32>
    %274 = arith.subf %272, %273 : vector<1x256xf32>
    %cst_159 = arith.constant 0.000000e+00 : f32
    %275 = vector.broadcast %cst_159 : f32 to vector<1x256xf32>
    %276 = arith.maximumf %274, %275 : vector<1x256xf32>
    %cst_160 = arith.constant 9.99999974E-6 : f32
    %277 = vector.broadcast %cst_160 : f32 to vector<1x256xf32>
    %278 = arith.addf %276, %277 : vector<1x256xf32>
    %279 = math.rsqrt %278 : vector<1x256xf32>
    %280 = arith.mulf %261, %279 : vector<1x256xf32>
    %281 = arith.mulf %267, %280 : vector<1x256xf32>
    %282 = arith.subf %263, %281 : vector<1x256xf32>
    %283 = vector.broadcast %280 : vector<1x256xf32> to vector<8x256xf32>
    %284 = arith.mulf %259, %283 : vector<8x256xf32>
    %285 = vector.broadcast %282 : vector<1x256xf32> to vector<8x256xf32>
    %286 = arith.addf %284, %285 : vector<8x256xf32>
    %cst_161 = arith.constant 0.000000e+00 : f32
    %287 = vector.broadcast %cst_161 : f32 to vector<8x256xf32>
    %288 = arith.maximumf %286, %287 : vector<8x256xf32>
    %289 = arith.truncf %288 : vector<8x256xf32> to vector<8x256xbf16>
    %c1_162 = arith.constant 1 : index
    %c1_163 = arith.constant 1 : index
    %c0_164 = arith.constant 0 : index
    %c0_165 = arith.constant 0 : index
    %290 = vector.load %arg9[%c1_162, %c1_163, %c0_164, %c0_165] : memref<2x2x256x256xbf16, #tpu.memory_space<vmem>>, vector<1x1x256x256xbf16>
    %291 = vector.shape_cast %290 : vector<1x1x256x256xbf16> to vector<256x256xbf16>
    %cst_166 = arith.constant dense<0.000000e+00> : vector<8x256xf32>
    %292 = tpu.matmul %289, %291, %cst_166 {dimension_numbers = #tpu.dot_dimension_numbers<[1], [0], [0], [1], [0, 0, 1, 1], [], []>} : vector<8x256xbf16>, vector<256x256xbf16>, vector<8x256xf32> -> vector<8x256xf32>
    %c1_167 = arith.constant 1 : index
    %c1_168 = arith.constant 1 : index
    %c0_169 = arith.constant 0 : index
    %c0_170 = arith.constant 0 : index
    %293 = vector.load %arg10[%c1_167, %c1_168, %c0_169, %c0_170] : memref<2x2x1x256xf32, #tpu.memory_space<vmem>>, vector<1x1x1x256xf32>
    %294 = vector.shape_cast %293 : vector<1x1x1x256xf32> to vector<1x256xf32>
    %c1_171 = arith.constant 1 : index
    %c1_172 = arith.constant 1 : index
    %c0_173 = arith.constant 0 : index
    %c0_174 = arith.constant 0 : index
    %295 = vector.load %arg11[%c1_171, %c1_172, %c0_173, %c0_174] : memref<2x2x1x256xf32, #tpu.memory_space<vmem>>, vector<1x1x1x256xf32>
    %296 = vector.shape_cast %295 : vector<1x1x1x256xf32> to vector<1x256xf32>
    %cst_175 = arith.constant dense<0.000000e+00> : vector<256xf32>
    %297 = vector.multi_reduction <add>, %292, %cst_175 [0] : vector<8x256xf32> to vector<256xf32>
    %298 = vector.shape_cast %297 : vector<256xf32> to vector<1x256xf32>
    %cst_176 = arith.constant 1.250000e-01 : f32
    %299 = vector.broadcast %cst_176 : f32 to vector<1x256xf32>
    %300 = arith.mulf %298, %299 : vector<1x256xf32>
    %301 = arith.mulf %292, %292 : vector<8x256xf32>
    %cst_177 = arith.constant dense<0.000000e+00> : vector<256xf32>
    %302 = vector.multi_reduction <add>, %301, %cst_177 [0] : vector<8x256xf32> to vector<256xf32>
    %303 = vector.shape_cast %302 : vector<256xf32> to vector<1x256xf32>
    %cst_178 = arith.constant 1.250000e-01 : f32
    %304 = vector.broadcast %cst_178 : f32 to vector<1x256xf32>
    %305 = arith.mulf %303, %304 : vector<1x256xf32>
    %306 = arith.mulf %300, %300 : vector<1x256xf32>
    %307 = arith.subf %305, %306 : vector<1x256xf32>
    %cst_179 = arith.constant 0.000000e+00 : f32
    %308 = vector.broadcast %cst_179 : f32 to vector<1x256xf32>
    %309 = arith.maximumf %307, %308 : vector<1x256xf32>
    %cst_180 = arith.constant 9.99999974E-6 : f32
    %310 = vector.broadcast %cst_180 : f32 to vector<1x256xf32>
    %311 = arith.addf %309, %310 : vector<1x256xf32>
    %312 = math.rsqrt %311 : vector<1x256xf32>
    %313 = arith.mulf %294, %312 : vector<1x256xf32>
    %314 = arith.mulf %300, %313 : vector<1x256xf32>
    %315 = arith.subf %296, %314 : vector<1x256xf32>
    %316 = vector.broadcast %313 : vector<1x256xf32> to vector<8x256xf32>
    %317 = arith.mulf %292, %316 : vector<8x256xf32>
    %318 = vector.broadcast %315 : vector<1x256xf32> to vector<8x256xf32>
    %319 = arith.addf %317, %318 : vector<8x256xf32>
    %320 = arith.addf %319, %255 : vector<8x256xf32>
    %cst_181 = arith.constant 0.000000e+00 : f32
    %321 = vector.broadcast %cst_181 : f32 to vector<8x256xf32>
    %322 = arith.maximumf %320, %321 : vector<8x256xf32>
    %c0_182 = arith.constant 0 : index
    %c0_183 = arith.constant 0 : index
    %323 = vector.load %arg13[%c0_182, %c0_183] : memref<1x128xf32, #tpu.memory_space<vmem>>, vector<1x128xf32>
    %324 = arith.truncf %188 : vector<8x256xf32> to vector<8x256xbf16>
    %c0_184 = arith.constant 0 : index
    %c0_185 = arith.constant 0 : index
    %c0_186 = arith.constant 0 : index
    %325 = vector.load %arg12[%c0_184, %c0_185, %c0_186] : memref<2x256x128xbf16, #tpu.memory_space<vmem>>, vector<1x256x128xbf16>
    %326 = vector.shape_cast %325 : vector<1x256x128xbf16> to vector<256x128xbf16>
    %cst_187 = arith.constant dense<0.000000e+00> : vector<8x128xf32>
    %327 = tpu.matmul %324, %326, %cst_187 {dimension_numbers = #tpu.dot_dimension_numbers<[1], [0], [0], [1], [0, 0, 1, 1], [], []>} : vector<8x256xbf16>, vector<256x128xbf16>, vector<8x128xf32> -> vector<8x128xf32>
    %328 = vector.broadcast %323 : vector<1x128xf32> to vector<8x128xf32>
    %329 = arith.addf %328, %327 : vector<8x128xf32>
    %330 = arith.truncf %322 : vector<8x256xf32> to vector<8x256xbf16>
    %c1_188 = arith.constant 1 : index
    %c0_189 = arith.constant 0 : index
    %c0_190 = arith.constant 0 : index
    %331 = vector.load %arg12[%c1_188, %c0_189, %c0_190] : memref<2x256x128xbf16, #tpu.memory_space<vmem>>, vector<1x256x128xbf16>
    %332 = vector.shape_cast %331 : vector<1x256x128xbf16> to vector<256x128xbf16>
    %cst_191 = arith.constant dense<0.000000e+00> : vector<8x128xf32>
    %333 = tpu.matmul %330, %332, %cst_191 {dimension_numbers = #tpu.dot_dimension_numbers<[1], [0], [0], [1], [0, 0, 1, 1], [], []>} : vector<8x256xbf16>, vector<256x128xbf16>, vector<8x128xf32> -> vector<8x128xf32>
    %334 = arith.addf %329, %333 : vector<8x128xf32>
    %c0_192 = arith.constant 0 : index
    %c0_193 = arith.constant 0 : index
    %335 = vector.load %arg14[%c0_192, %c0_193] : memref<8x128xf32, #tpu.memory_space<vmem>>, vector<8x128xf32>
    tpu.vector_store %arg14[%c0_192, %c0_193], %334 {strides = array<i32>} : memref<8x128xf32, #tpu.memory_space<vmem>>, vector<8x128xf32>,
    return
  }
}

</mosaic_0001>

<llo_original>
// kernel: fwd.1
$region0: #{fwd.1}
  #allocation0 [shape = 'u32[]', space=smem, size = 0x4, offset = 0x4, fixed_abs, tag = 'smem constant byte address 0x4 - core index']
  #allocation1 [shape = 'u32[144,128]{1,0:T(1,128)}', space=vmem, size = 0x12000, scoped, tag = 'internal scratch']
  %s0 = inlined_call_operand.vmem [shape: f32[8,32], index: 0, kind: input, shape index: {}]
  %s1 = inlined_call_operand.vmem [shape: f32[1,32], index: 1, kind: input, shape index: {}]
  %s2 = inlined_call_operand.hbm [shape: f32[1,32], index: 2, kind: input, shape index: {}]
  %s3 = inlined_call_operand.hbm [shape: f32[32,512], index: 3, kind: input, shape index: {}]
  %s4 = inlined_call_operand.vmem [shape: f32[1,512], index: 4, kind: input, shape index: {}]
  %s5 = inlined_call_operand.hbm [shape: f32[1,512], index: 5, kind: input, shape index: {}]
  %s6 = inlined_call_operand.hbm [shape: bf16[2,2,256,256], index: 6, kind: input, shape index: {}]
  %s7 = inlined_call_operand.vmem [shape: f32[2,2,1,256], index: 7, kind: input, shape index: {}]
  %s8 = inlined_call_operand.hbm [shape: f32[2,2,1,256], index: 8, kind: input, shape index: {}]
  %s9 = inlined_call_operand.hbm [shape: bf16[2,2,256,256], index: 9, kind: input, shape index: {}]
  %s10 = inlined_call_operand.vmem [shape: f32[2,2,1,256], index: 10, kind: input, shape index: {}]
  %s11 = inlined_call_operand.hbm [shape: f32[2,2,1,256], index: 11, kind: input, shape index: {}]
  %s12 = inlined_call_operand.hbm [shape: bf16[2,256,128], index: 12, kind: input, shape index: {}]
  %s13 = inlined_call_operand.vmem [shape: f32[1,128], index: 13, kind: input, shape index: {}]
  %s14 = inlined_call_operand.hbm [shape: f32[8,128], index: 14, kind: output, shape index: {}]
  %s15 = sld [smem:[#allocation0]]
  $region98: #{fwd.1} parent=0
    _
  %s17 = ssub.s32 1, %s15
  %s18 = scalar_select 0, %s17, %s15
  $region1: #{fwd.1} parent=0
    #allocation2 [shape = 'u8[512]{0}', space=vmem, size = 0x400, scoped, tag = 'input window, operand 2, single buffered']
    #allocation3 [shape = 's32[1]{0}', space=sflag, size = 0x4, scoped, tag = 'scoped memory for fwd.1']
    #allocation4 [shape = 's32[1]{0}', space=sflag, size = 0x4, scoped, tag = 'scoped memory for fwd.1']
    #allocation5 [shape = 'u8[65536]{0}', space=vmem, size = 0x10000, scoped, tag = 'input window, operand 3, single buffered']
    #allocation6 [shape = 's32[1]{0}', space=sflag, size = 0x4, scoped, tag = 'scoped memory for fwd.1']
    #allocation7 [shape = 'u8[2048]{0}', space=vmem, size = 0x800, scoped, tag = 'input window, operand 5, single buffered']
    #allocation8 [shape = 'u8[524288]{0}', space=vmem, size = 0x80000, scoped, tag = 'input window, operand 6, single buffered']
    #allocation9 [shape = 's32[1]{0}', space=sflag, size = 0x4, scoped, tag = 'scoped memory for fwd.1']
    #allocation10 [shape = 'u8[4096]{0}', space=vmem, size = 0x1000, scoped, tag = 'input window, operand 8, single buffered']
    #allocation11 [shape = 'u8[524288]{0}', space=vmem, size = 0x80000, scoped, tag = 'input window, operand 9, single buffered']
    #allocation12 [shape = 's32[1]{0}', space=sflag, size = 0x4, scoped, tag = 'scoped memory for fwd.1']
    #allocation13 [shape = 'u8[4096]{0}', space=vmem, size = 0x1000, scoped, tag = 'input window, operand 11, single buffered']
    #allocation14 [shape = 'u8[131072]{0}', space=vmem, size = 0x20000, scoped, tag = 'input window, operand 12, single buffered']
    #allocation15 [shape = 's32[1]{0}', space=sflag, size = 0x4, scoped, tag = 'scoped memory for fwd.1']
    #allocation16 [shape = 'u8[4096]{0}', space=vmem, size = 0x1000, scoped, tag = 'output window, operand 0, single buffered']
    %19 = vsyncpa [#allocation3], 0
    %20 = vsyncpa [#allocation6], 0
    %21 = vsyncpa [#allocation9], 0
    %22 = vsyncpa [#allocation12], 0
    %23 = vsyncpa [#allocation15], 0
    %24 = vsyncpa [#allocation4], 0
    // Predicated region
    $region2: #{fwd.1} parent=1 // pred_check
      _
    $region3: #{fwd.1} parent=1 // pred_check_branch
      %26 = sbr.rel (0) target = $region5
    $region4: #{fwd.1} parent=1 // pred_region
      _
    $region5: #{fwd.1} parent=1 // pred_fallthru
      _
    // Predicated region
    $region6: #{fwd.1} parent=1 // pred_check
      _
    $region7: #{fwd.1} parent=1 // pred_check_branch
      %28 = sbr.rel (0) target = $region9
    $region8: #{fwd.1} parent=1 // pred_region
      _
    $region9: #{fwd.1} parent=1 // pred_fallthru
      _
    // Predicated region
    $region10: #{fwd.1} parent=1 // pred_check
      _
    $region11: #{fwd.1} parent=1 // pred_check_branch
      %30 = sbr.rel (0) target = $region13
    $region12: #{fwd.1} parent=1 // pred_region
      %s32 = ssub.s32 16, 16
      %33 = vsyncadd [#allocation3], %s32
      %s35 = sshll.u32 [#allocation2], 4
      %s36 = int_to_ptr.vmem [resolvable:$true] %s35
      %38 = dma.hbm_to_vmem [thread:$0]  %s2, 16, %s36, [#allocation3]
    $region13: #{fwd.1} parent=1 // pred_fallthru
      _
    // Predicated region
    $region14: #{fwd.1} parent=1 // pred_check
      _
    $region15: #{fwd.1} parent=1 // pred_check_branch
      %40 = sbr.rel (0) target = $region17
    $region16: #{fwd.1} parent=1 // pred_region
      %s42 = ssub.s32 2048, 2048
      %43 = vsyncadd [#allocation6], %s42
      %s44 = sshll.u32 [#allocation5], 4
      %s45 = int_to_ptr.vmem [resolvable:$true] %s44
      %50 = dma.hbm_to_vmem [thread:$0]  %s3, 2048, %s45, [#allocation6], 512, 512, 32
    $region17: #{fwd.1} parent=1 // pred_fallthru
      _
    // Predicated region
    $region18: #{fwd.1} parent=1 // pred_check
      _
    $region19: #{fwd.1} parent=1 // pred_check_branch
      %52 = sbr.rel (0) target = $region21
    $region20: #{fwd.1} parent=1 // pred_region
      _
    $region21: #{fwd.1} parent=1 // pred_fallthru
      _
    // Predicated region
    $region22: #{fwd.1} parent=1 // pred_check
      _
    $region23: #{fwd.1} parent=1 // pred_check_branch
      %54 = sbr.rel (0) target = $region25
    $region24: #{fwd.1} parent=1 // pred_region
      %s56 = ssub.s32 64, 64
      %57 = vsyncadd [#allocation6], %s56
      %s59 = sshll.u32 [#allocation7], 4
      %s60 = int_to_ptr.vmem [resolvable:$true] %s59
      %62 = dma.hbm_to_vmem [thread:$0]  %s5, 64, %s60, [#allocation6]
    $region25: #{fwd.1} parent=1 // pred_fallthru
      _
    // Predicated region
    $region26: #{fwd.1} parent=1 // pred_check
      _
    $region27: #{fwd.1} parent=1 // pred_check_branch
      %64 = sbr.rel (0) target = $region29
    $region28: #{fwd.1} parent=1 // pred_region
      %s66 = ssub.s32 16384, 16384
      %67 = vsyncadd [#allocation9], %s66
      %s68 = sshll.u32 [#allocation8], 4
      %s69 = int_to_ptr.vmem [resolvable:$true] %s68
      %74 = dma.hbm_to_vmem [thread:$0]  %s6, 16384, %s69, [#allocation9], 128, 128, 8
    $region29: #{fwd.1} parent=1 // pred_fallthru
      _
    // Predicated region
    $region30: #{fwd.1} parent=1 // pred_check
      _
    $region31: #{fwd.1} parent=1 // pred_check_branch
      %76 = sbr.rel (0) target = $region33
    $region32: #{fwd.1} parent=1 // pred_region
      _
    $region33: #{fwd.1} parent=1 // pred_fallthru
      _
    // Predicated region
    $region34: #{fwd.1} parent=1 // pred_check
      _
    $region35: #{fwd.1} parent=1 // pred_check_branch
      %78 = sbr.rel (0) target = $region37
    $region36: #{fwd.1} parent=1 // pred_region
      %s80 = ssub.s32 128, 128
      %81 = vsyncadd [#allocation9], %s80
      %s82 = sshll.u32 [#allocation10], 4
      %s83 = int_to_ptr.vmem [resolvable:$true] %s82
      %88 = dma.hbm_to_vmem [thread:$0]  %s8, 128, %s83, [#allocation9], 32, 32, 2
    $region37: #{fwd.1} parent=1 // pred_fallthru
      _
    // Predicated region
    $region38: #{fwd.1} parent=1 // pred_check
      _
    $region39: #{fwd.1} parent=1 // pred_check_branch
      %90 = sbr.rel (0) target = $region41
    $region40: #{fwd.1} parent=1 // pred_region
      %s92 = ssub.s32 16384, 16384
      %93 = vsyncadd [#allocation12], %s92
      %s94 = sshll.u32 [#allocation11], 4
      %s95 = int_to_ptr.vmem [resolvable:$true] %s94
      %100 = dma.hbm_to_vmem [thread:$0]  %s9, 16384, %s95, [#allocation12], 128, 128, 8
    $region41: #{fwd.1} parent=1 // pred_fallthru
      _
    // Predicated region
    $region42: #{fwd.1} parent=1 // pred_check
      _
    $region43: #{fwd.1} parent=1 // pred_check_branch
      %102 = sbr.rel (0) target = $region45
    $region44: #{fwd.1} parent=1 // pred_region
      _
    $region45: #{fwd.1} parent=1 // pred_fallthru
      _
    // Predicated region
    $region46: #{fwd.1} parent=1 // pred_check
      _
    $region47: #{fwd.1} parent=1 // pred_check_branch
      %104 = sbr.rel (0) target = $region49
    $region48: #{fwd.1} parent=1 // pred_region
      %s106 = ssub.s32 128, 128
      %107 = vsyncadd [#allocation12], %s106
      %s108 = sshll.u32 [#allocation13], 4
      %s109 = int_to_ptr.vmem [resolvable:$true] %s108
      %114 = dma.hbm_to_vmem [thread:$0]  %s11, 128, %s109, [#allocation12], 32, 32, 2
    $region49: #{fwd.1} parent=1 // pred_fallthru
      _
    // Predicated region
    $region50: #{fwd.1} parent=1 // pred_check
      _
    $region51: #{fwd.1} parent=1 // pred_check_branch
      %116 = sbr.rel (0) target = $region53
    $region52: #{fwd.1} parent=1 // pred_region
      %s118 = ssub.s32 4096, 4096
      %119 = vsyncadd [#allocation15], %s118
      %s120 = sshll.u32 [#allocation14], 4
      %s121 = int_to_ptr.vmem [resolvable:$true] %s120
      %126 = dma.hbm_to_vmem [thread:$0]  %s12, 4096, %s121, [#allocation15], 64, 64, 4
    $region53: #{fwd.1} parent=1 // pred_fallthru
      _
    // Predicated region
    $region54: #{fwd.1} parent=1 // pred_check
      _
    $region55: #{fwd.1} parent=1 // pred_check_branch
      %128 = sbr.rel (0) target = $region57
    $region56: #{fwd.1} parent=1 // pred_region
      _
    $region57: #{fwd.1} parent=1 // pred_fallthru
      _
    // Predicated region
    $region58: #{fwd.1} parent=1 // pred_check
      _
    $region59: #{fwd.1} parent=1 // pred_check_branch
      %130 = sbr.rel (0) target = $region61
    $region60: #{fwd.1} parent=1 // pred_region
      %131 = dma.done [#allocation3], 16
    $region61: #{fwd.1} parent=1 // pred_fallthru
      _
    // Predicated region
    $region62: #{fwd.1} parent=1 // pred_check
      _
    $region63: #{fwd.1} parent=1 // pred_check_branch
      %133 = sbr.rel (0) target = $region65
    $region64: #{fwd.1} parent=1 // pred_region
      %134 = dma.done [#allocation6], 2048
    $region65: #{fwd.1} parent=1 // pred_fallthru
      _
    // Predicated region
    $region66: #{fwd.1} parent=1 // pred_check
      _
    $region67: #{fwd.1} parent=1 // pred_check_branch
      %136 = sbr.rel (0) target = $region69
    $region68: #{fwd.1} parent=1 // pred_region
      %137 = dma.done [#allocation6], 64
    $region69: #{fwd.1} parent=1 // pred_fallthru
      _
    // Predicated region
    $region70: #{fwd.1} parent=1 // pred_check
      _
    $region71: #{fwd.1} parent=1 // pred_check_branch
      %139 = sbr.rel (0) target = $region73
    $region72: #{fwd.1} parent=1 // pred_region
      %140 = dma.done [#allocation9], 16384
    $region73: #{fwd.1} parent=1 // pred_fallthru
      _
    // Predicated region
    $region74: #{fwd.1} parent=1 // pred_check
      _
    $region75: #{fwd.1} parent=1 // pred_check_branch
      %142 = sbr.rel (0) target = $region77
    $region76: #{fwd.1} parent=1 // pred_region
      %143 = dma.done [#allocation9], 128
    $region77: #{fwd.1} parent=1 // pred_fallthru
      _
    // Predicated region
    $region78: #{fwd.1} parent=1 // pred_check
      _
    $region79: #{fwd.1} parent=1 // pred_check_branch
      %145 = sbr.rel (0) target = $region81
    $region80: #{fwd.1} parent=1 // pred_region
      %146 = dma.done [#allocation12], 16384
    $region81: #{fwd.1} parent=1 // pred_fallthru
      _
    // Predicated region
    $region82: #{fwd.1} parent=1 // pred_check
      _
    $region83: #{fwd.1} parent=1 // pred_check_branch
      %148 = sbr.rel (0) target = $region85
    $region84: #{fwd.1} parent=1 // pred_region
      %149 = dma.done [#allocation12], 128
    $region85: #{fwd.1} parent=1 // pred_fallthru
      _
    // Predicated region
    $region86: #{fwd.1} parent=1 // pred_check
      _
    $region87: #{fwd.1} parent=1 // pred_check_branch
      %151 = sbr.rel (0) target = $region89
    $region88: #{fwd.1} parent=1 // pred_region
      %152 = dma.done [#allocation15], 4096
    $region89: #{fwd.1} parent=1 // pred_fallthru
      _
    %v154 = vld [vmem:[%s0] sm:$0xff]
    %v155 = vld [vmem:[%s1] sm:$0x1]
    %v156 = vld [vmem:[#allocation2] sm:$0x1]
    %vm157 = vcmask 261120
    %v158 = vsel %vm157, %v154, 0.0
    %v159 = vrot.slane %v158, 4
    %v160 = vadd.f32 %v158, %v159
    %v161 = vrot.slane %v160, 2
    %v162 = vadd.f32 %v160, %v161
    %v163 = vrot.slane %v162, 1
    %v164 = vadd.f32 %v162, %v163
    %v165 = vrcp.pop 8.0
    %v166 = vmul.f32 %v164, %v165
    %v167 = vsub.f32 %v154, %v166
    %v168 = vmul.f32 %v167, %v167
    %v169 = vsel %vm157, %v168, 0.0
    %v170 = vrot.slane %v169, 4
    %v171 = vadd.f32 %v169, %v170
    %v172 = vrot.slane %v171, 2
    %v173 = vadd.f32 %v171, %v172
    %v174 = vrot.slane %v173, 1
    %v175 = vadd.f32 %v173, %v174
    %v176 = vmul.f32 %v175, %v165
    %v177 = vadd.f32 %v176, 1e-05
    %v178 = vrsqrt.pop %v177
    %v179 = vmul.f32 %v155, %v178
    %v181 = vlaneseq
    %v182 = vshrl.u32 %v181, 7
    %v183 = vsub.s32 0, %v182
    %v184 = vrot.slane %v179, %v183
    %v186 = vmul.f32 %v167, %v184
    %v188 = vlaneseq
    %v189 = vshrl.u32 %v188, 7
    %v190 = vsub.s32 0, %v189
    %v191 = vrot.slane %v156, %v190
    %v193 = vadd.f32 %v186, %v191
    %v194 = vld [vmem:[#allocation5] sm:$0xff]
    %v195 = vld [vmem:[#allocation5 + $0x8] sm:$0xff]
    %v196 = vld [vmem:[#allocation5 + $0x10] sm:$0xff]
    %v197 = vld [vmem:[#allocation5 + $0x18] sm:$0xff]
    %v198 = vld [vmem:[#allocation5 + $0x20] sm:$0xff]
    %v199 = vld [vmem:[#allocation5 + $0x28] sm:$0xff]
    %v200 = vld [vmem:[#allocation5 + $0x30] sm:$0xff]
    %v201 = vld [vmem:[#allocation5 + $0x38] sm:$0xff]
    %v202 = vld [vmem:[#allocation5 + $0x40] sm:$0xff]
    %v203 = vld [vmem:[#allocation5 + $0x48] sm:$0xff]
    %v204 = vld [vmem:[#allocation5 + $0x50] sm:$0xff]
    %v205 = vld [vmem:[#allocation5 + $0x58] sm:$0xff]
    %v206 = vld [vmem:[#allocation5 + $0x60] sm:$0xff]
    %v207 = vld [vmem:[#allocation5 + $0x68] sm:$0xff]
    %v208 = vld [vmem:[#allocation5 + $0x70] sm:$0xff]
    %v209 = vld [vmem:[#allocation5 + $0x78] sm:$0xff]
    %v211 = vsel %vm157, %v193, 0
    %213 = vmatprep.subr.mxu0 %v195
    %214 = vmatpush1.msra.mxu0 %v194
    %215 = vmatprep.subr.mxu0 %v199
    %216 = vmatpush1.msra.mxu0 %v198
    %217 = vmatprep.subr.mxu0 %v203
    %218 = vmatpush1.msra.mxu0 %v202
    %219 = vmatprep.subr.mxu0 %v207
    %220 = vmatpush1.msra.mxu0 %v206
    %221 = vmatprep.subr.mxu0 0.0
    %222 = vmatpush1.msra.mxu0 0.0
    %223 = vmatprep.subr.mxu0 0.0
    %224 = vmatpush1.msra.mxu0 0.0
    %225 = vmatprep.subr.mxu0 0.0
    %226 = vmatpush1.msra.mxu0 0.0
    %227 = vmatprep.subr.mxu0 0.0
    %228 = vmatpush1.msra.mxu0 0.0
    %229 = vmatprep.subr.mxu0 0.0
    %230 = vmatpush1.msra.mxu0 0.0
    %231 = vmatprep.subr.mxu0 0.0
    %232 = vmatpush1.msra.mxu0 0.0
    %233 = vmatprep.subr.mxu0 0.0
    %234 = vmatpush1.msra.mxu0 0.0
    %235 = vmatprep.subr.mxu0 0.0
    %236 = vmatpush1.msra.mxu0 0.0
    %237 = vmatprep.subr.mxu0 0.0
    %238 = vmatpush1.msra.mxu0 0.0
    %239 = vmatprep.subr.mxu0 0.0
    %240 = vmatpush1.msra.mxu0 0.0
    %241 = vmatprep.subr.mxu0 0.0
    %242 = vmatpush1.msra.mxu0 0.0
    %243 = vmatprep.subr.mxu0 0.0
    %244 = vmatpush1.msra.mxu0 0.0
    %245 = vmatprep.subr.mxu0 0.0
    %246 = vmatpush1.msra.mxu0 0.0
    %247 = vmatprep.subr.mxu0 0.0
    %248 = vmatpush1.msra.mxu0 0.0
    %249 = vmatprep.subr.mxu0 0.0
    %250 = vmatpush1.msra.mxu0 0.0
    %251 = vmatprep.subr.mxu0 0.0
    %252 = vmatpush1.msra.mxu0 0.0
    %253 = vmatprep.subr.mxu0 0.0
    %254 = vmatpush1.msra.mxu0 0.0
    %255 = vmatprep.subr.mxu0 0.0
    %256 = vmatpush1.msra.mxu0 0.0
    %257 = vmatprep.subr.mxu0 0.0
    %258 = vmatpush1.msra.mxu0 0.0
    %259 = vmatprep.subr.mxu0 0.0
    %260 = vmatpush1.msra.mxu0 0.0
    %261 = vmatprep.subr.mxu0 0.0
    %262 = vmatpush1.msra.mxu0 0.0
    %263 = vmatprep.subr.mxu0 0.0
    %264 = vmatpush1.msra.mxu0 0.0
    %265 = vmatprep.subr.mxu0 0.0
    %266 = vmatpush1.msra.mxu0 0.0
    %267 = vmatprep.subr.mxu0 0.0
    %268 = vmatpush1.msra.mxu0 0.0
    %269 = vmatprep.subr.mxu0 0.0
    %270 = vmatpush1.msra.mxu0 0.0
    %271 = vmatprep.subr.mxu0 0.0
    %272 = vmatpush1.msra.mxu0 0.0
    %273 = vmatprep.subr.mxu0 0.0
    %274 = vmatpush1.msra.mxu0 0.0
    %275 = vmatprep.subr.mxu0 0.0
    %276 = vmatpush1.msra.mxu0 0.0
    %277 = vmatprep.mubr.f32.mxu0 0.0
    %278 = vmatmul.mubr.f32.gmra.mrb[0].mxu0 %v211
    %v279 = vpop.f32.mrb[0].mxu0
    %v280 = vadd.f32 0.0, %v279
    %v281 = vpop.f32.mrb[0].mxu0
    %v282 = vadd.f32 0.0, %v281
    %283 = vdwg.mxu0
    %284 = vmatprep.subr.mxu0 %v197
    %285 = vmatpush1.msra.mxu0 %v196
    %286 = vmatprep.subr.mxu0 %v201
    %287 = vmatpush1.msra.mxu0 %v200
    %288 = vmatprep.subr.mxu0 %v205
    %289 = vmatpush1.msra.mxu0 %v204
    %290 = vmatprep.subr.mxu0 %v209
    %291 = vmatpush1.msra.mxu0 %v208
    %292 = vmatprep.subr.mxu0 0.0
    %293 = vmatpush1.msra.mxu0 0.0
    %294 = vmatprep.subr.mxu0 0.0
    %295 = vmatpush1.msra.mxu0 0.0
    %296 = vmatprep.subr.mxu0 0.0
    %297 = vmatpush1.msra.mxu0 0.0
    %298 = vmatprep.subr.mxu0 0.0
    %299 = vmatpush1.msra.mxu0 0.0
    %300 = vmatprep.subr.mxu0 0.0
    %301 = vmatpush1.msra.mxu0 0.0
    %302 = vmatprep.subr.mxu0 0.0
    %303 = vmatpush1.msra.mxu0 0.0
    %304 = vmatprep.subr.mxu0 0.0
    %305 = vmatpush1.msra.mxu0 0.0
    %306 = vmatprep.subr.mxu0 0.0
    %307 = vmatpush1.msra.mxu0 0.0
    %308 = vmatprep.subr.mxu0 0.0
    %309 = vmatpush1.msra.mxu0 0.0
    %310 = vmatprep.subr.mxu0 0.0
    %311 = vmatpush1.msra.mxu0 0.0
    %312 = vmatprep.subr.mxu0 0.0
    %313 = vmatpush1.msra.mxu0 0.0
    %314 = vmatprep.subr.mxu0 0.0
    %315 = vmatpush1.msra.mxu0 0.0
    %316 = vmatprep.subr.mxu0 0.0
    %317 = vmatpush1.msra.mxu0 0.0
    %318 = vmatprep.subr.mxu0 0.0
    %319 = vmatpush1.msra.mxu0 0.0
    %320 = vmatprep.subr.mxu0 0.0
    %321 = vmatpush1.msra.mxu0 0.0
    %322 = vmatprep.subr.mxu0 0.0
    %323 = vmatpush1.msra.mxu0 0.0
    %324 = vmatprep.subr.mxu0 0.0
    %325 = vmatpush1.msra.mxu0 0.0
    %326 = vmatprep.subr.mxu0 0.0
    %327 = vmatpush1.msra.mxu0 0.0
    %328 = vmatprep.subr.mxu0 0.0
    %329 = vmatpush1.msra.mxu0 0.0
    %330 = vmatprep.subr.mxu0 0.0
    %331 = vmatpush1.msra.mxu0 0.0
    %332 = vmatprep.subr.mxu0 0.0
    %333 = vmatpush1.msra.mxu0 0.0
    %334 = vmatprep.subr.mxu0 0.0
    %335 = vmatpush1.msra.mxu0 0.0
    %336 = vmatprep.subr.mxu0 0.0
    %337 = vmatpush1.msra.mxu0 0.0
    %338 = vmatprep.subr.mxu0 0.0
    %339 = vmatpush1.msra.mxu0 0.0
    %340 = vmatprep.subr.mxu0 0.0
    %341 = vmatpush1.msra.mxu0 0.0
    %342 = vmatprep.subr.mxu0 0.0
    %343 = vmatpush1.msra.mxu0 0.0
    %344 = vmatprep.subr.mxu0 0.0
    %345 = vmatpush1.msra.mxu0 0.0
    %346 = vmatprep.subr.mxu0 0.0
    %347 = vmatpush1.msra.mxu0 0.0
    %348 = vmatprep.mubr.f32.mxu0 0.0
    %349 = vmatmul.mubr.f32.gmra.mrb[0].mxu0 %v211
    %v350 = vpop.f32.mrb[0].mxu0
    %v351 = vadd.f32 0.0, %v350
    %v352 = vpop.f32.mrb[0].mxu0
    %v353 = vadd.f32 0.0, %v352
    %354 = vdwg.mxu0
    %v355 = vld [vmem:[%s4] sm:$0xf]
    %v356 = vld [vmem:[#allocation7] sm:$0xf]
    %v357 = vrot.slane %v280, 4
    %v358 = vadd.f32 %v280, %v357
    %v359 = vrot.slane %v358, 2
    %v360 = vadd.f32 %v358, %v359
    %v361 = vrot.slane %v360, 1
    %v362 = vadd.f32 %v360, %v361
    %v363 = vrot.slane %v282, 4
    %v364 = vadd.f32 %v282, %v363
    %v365 = vrot.slane %v364, 2
    %v366 = vadd.f32 %v364, %v365
    %v367 = vrot.slane %v366, 1
    %v368 = vadd.f32 %v366, %v367
    %v369 = vrot.slane %v351, 4
    %v370 = vadd.f32 %v351, %v369
    %v371 = vrot.slane %v370, 2
    %v372 = vadd.f32 %v370, %v371
    %v373 = vrot.slane %v372, 1
    %v374 = vadd.f32 %v372, %v373
    %v375 = vrot.slane %v353, 4
    %v376 = vadd.f32 %v353, %v375
    %v377 = vrot.slane %v376, 2
    %v378 = vadd.f32 %v376, %v377
    %v379 = vrot.slane %v378, 1
    %v380 = vadd.f32 %v378, %v379
    %v381 = vmul.f32 %v362, 0.125
    %v382 = vmul.f32 %v368, 0.125
    %v383 = vmul.f32 %v374, 0.125
    %v384 = vmul.f32 %v380, 0.125
    %v385 = vmul.f32 %v280, %v280
    %v386 = vmul.f32 %v282, %v282
    %v387 = vmul.f32 %v351, %v351
    %v388 = vmul.f32 %v353, %v353
    %v389 = vrot.slane %v385, 4
    %v390 = vadd.f32 %v385, %v389
    %v391 = vrot.slane %v390, 2
    %v392 = vadd.f32 %v390, %v391
    %v393 = vrot.slane %v392, 1
    %v394 = vadd.f32 %v392, %v393
    %v395 = vrot.slane %v386, 4
    %v396 = vadd.f32 %v386, %v395
    %v397 = vrot.slane %v396, 2
    %v398 = vadd.f32 %v396, %v397
    %v399 = vrot.slane %v398, 1
    %v400 = vadd.f32 %v398, %v399
    %v401 = vrot.slane %v387, 4
    %v402 = vadd.f32 %v387, %v401
    %v403 = vrot.slane %v402, 2
    %v404 = vadd.f32 %v402, %v403
    %v405 = vrot.slane %v404, 1
    %v406 = vadd.f32 %v404, %v405
    %v407 = vrot.slane %v388, 4
    %v408 = vadd.f32 %v388, %v407
    %v409 = vrot.slane %v408, 2
    %v410 = vadd.f32 %v408, %v409
    %v411 = vrot.slane %v410, 1
    %v412 = vadd.f32 %v410, %v411
    %v413 = vmul.f32 %v394, 0.125
    %v414 = vmul.f32 %v400, 0.125
    %v415 = vmul.f32 %v406, 0.125
    %v416 = vmul.f32 %v412, 0.125
    %v417 = vmul.f32 %v381, %v381
    %v418 = vmul.f32 %v382, %v382
    %v419 = vmul.f32 %v383, %v383
    %v420 = vmul.f32 %v384, %v384
    %v421 = vsub.f32 %v413, %v417
    %v422 = vsub.f32 %v414, %v418
    %v423 = vsub.f32 %v415, %v419
    %v424 = vsub.f32 %v416, %v420
    %v425 = vmax.f32 %v421, 0.0
    %v426 = vmax.f32 %v422, 0.0
    %v427 = vmax.f32 %v423, 0.0
    %v428 = vmax.f32 %v424, 0.0
    %v429 = vadd.f32 %v425, 1e-05
    %v430 = vadd.f32 %v426, 1e-05
    %v431 = vadd.f32 %v427, 1e-05
    %v432 = vadd.f32 %v428, 1e-05
    %v433 = vrsqrt.pop %v429
    %v434 = vrsqrt.pop %v430
    %v435 = vrsqrt.pop %v431
    %v436 = vrsqrt.pop %v432
    %v441 = vcombine.low %v433, %v434
    %v442 = vcombine.low %v435, %v436
    %v444 = vunpack.c.l.s4 1966171168
    %v445 = vunpack.c.0.s8 %v444
    %v446 = vlaneseq
    %v447 = vshrl.u32 %v446, 7
    %v448 = vsub.s32 %v445, %v447
    %v449 = vrot.slane %v441, %v448
    %v451 = vunpack.c.l.s4 1966171168
    %v452 = vunpack.c.0.s8 %v451
    %v453 = vlaneseq
    %v454 = vshrl.u32 %v453, 7
    %v455 = vsub.s32 %v452, %v454
    %v456 = vrot.slane %v442, %v455
    %v457 = vcombine.low %v449, %v456
    %v459 = vunpack.c.l.s4 1966171168
    %v460 = vunpack.c.0.s8 %v459
    %v461 = vlaneseq
    %v462 = vshrl.u32 %v461, 7
    %v463 = vsub.s32 %v460, %v462
    %v464 = vrot.slane %v457, %v463
    %v466 = vmul.f32 %v355, %v464
    %v468 = vlaneseq
    %v469 = vshrl.u32 %v468, 7
    %v470 = vsub.s32 0, %v469
    %v471 = vrot.slane %v466, %v470
    %v472 = vlaneseq
    %v473 = vshrl.u32 %v472, 7
    %v474 = vsub.s32 1, %v473
    %v475 = vrot.slane %v466, %v474
    %v476 = vlaneseq
    %v477 = vshrl.u32 %v476, 7
    %v478 = vsub.s32 2, %v477
    %v479 = vrot.slane %v466, %v478
    %v480 = vlaneseq
    %v481 = vshrl.u32 %v480, 7
    %v482 = vsub.s32 3, %v481
    %v483 = vrot.slane %v466, %v482
    %v488 = vmul.f32 %v381, %v471
    %v489 = vmul.f32 %v382, %v475
    %v490 = vmul.f32 %v383, %v479
    %v491 = vmul.f32 %v384, %v483
    %v496 = vcombine.low %v488, %v489
    %v497 = vcombine.low %v490, %v491
    %v499 = vunpack.c.l.s4 1966171168
    %v500 = vunpack.c.0.s8 %v499
    %v501 = vlaneseq
    %v502 = vshrl.u32 %v501, 7
    %v503 = vsub.s32 %v500, %v502
    %v504 = vrot.slane %v496, %v503
    %v506 = vunpack.c.l.s4 1966171168
    %v507 = vunpack.c.0.s8 %v506
    %v508 = vlaneseq
    %v509 = vshrl.u32 %v508, 7
    %v510 = vsub.s32 %v507, %v509
    %v511 = vrot.slane %v497, %v510
    %v512 = vcombine.low %v504, %v511
    %v514 = vunpack.c.l.s4 1966171168
    %v515 = vunpack.c.0.s8 %v514
    %v516 = vlaneseq
    %v517 = vshrl.u32 %v516, 7
    %v518 = vsub.s32 %v515, %v517
    %v519 = vrot.slane %v512, %v518
    %v521 = vsub.f32 %v356, %v519
    %v522 = vmul.f32 %v280, %v471
    %v523 = vmul.f32 %v282, %v475
    %v524 = vmul.f32 %v351, %v479
    %v525 = vmul.f32 %v353, %v483
    %v527 = vlaneseq
    %v528 = vshrl.u32 %v527, 7
    %v529 = vsub.s32 0, %v528
    %v530 = vrot.slane %v521, %v529
    %v531 = vlaneseq
    %v532 = vshrl.u32 %v531, 7
    %v533 = vsub.s32 1, %v532
    %v534 = vrot.slane %v521, %v533
    %v535 = vlaneseq
    %v536 = vshrl.u32 %v535, 7
    %v537 = vsub.s32 2, %v536
    %v538 = vrot.slane %v521, %v537
    %v539 = vlaneseq
    %v540 = vshrl.u32 %v539, 7
    %v541 = vsub.s32 3, %v540
    %v542 = vrot.slane %v521, %v541
    %v547 = vadd.f32 %v522, %v530
    %v548 = vadd.f32 %v523, %v534
    %v549 = vadd.f32 %v524, %v538
    %v550 = vadd.f32 %v525, %v542
    %v551 = vmax.f32 %v547, 0.0
    %v552 = vmax.f32 %v548, 0.0
    %v553 = vmax.f32 %v549, 0.0
    %v554 = vmax.f32 %v550, 0.0
    %v555 = vpack.c.bf16 %v551, %v551
    %v556 = vpack.c.bf16 %v552, %v552
    %v557 = vld [vmem:[#allocation8] sm:$0xff]
    %v558 = vld [vmem:[#allocation8 + $0x8] sm:$0xff]
    %v559 = vld [vmem:[#allocation8 + $0x10] sm:$0xff]
    %v560 = vld [vmem:[#allocation8 + $0x18] sm:$0xff]
    %v561 = vld [vmem:[#allocation8 + $0x20] sm:$0xff]
    %v562 = vld [vmem:[#allocation8 + $0x28] sm:$0xff]
    %v563 = vld [vmem:[#allocation8 + $0x30] sm:$0xff]
    %v564 = vld [vmem:[#allocation8 + $0x38] sm:$0xff]
    %v565 = vld [vmem:[#allocation8 + $0x40] sm:$0xff]
    %v566 = vld [vmem:[#allocation8 + $0x48] sm:$0xff]
    %v567 = vld [vmem:[#allocation8 + $0x50] sm:$0xff]
    %v568 = vld [vmem:[#allocation8 + $0x58] sm:$0xff]
    %v569 = vld [vmem:[#allocation8 + $0x60] sm:$0xff]
    %v570 = vld [vmem:[#allocation8 + $0x68] sm:$0xff]
    %v571 = vld [vmem:[#allocation8 + $0x70] sm:$0xff]
    %v572 = vld [vmem:[#allocation8 + $0x78] sm:$0xff]
    %v573 = vld [vmem:[#allocation8 + $0x80] sm:$0xff]
    %v574 = vld [vmem:[#allocation8 + $0x88] sm:$0xff]
    %v575 = vld [vmem:[#allocation8 + $0x90] sm:$0xff]
    %v576 = vld [vmem:[#allocation8 + $0x98] sm:$0xff]
    %v577 = vld [vmem:[#allocation8 + $0xa0] sm:$0xff]
    %v578 = vld [vmem:[#allocation8 + $0xa8] sm:$0xff]
    %v579 = vld [vmem:[#allocation8 + $0xb0] sm:$0xff]
    %v580 = vld [vmem:[#allocation8 + $0xb8] sm:$0xff]
    %v581 = vld [vmem:[#allocation8 + $0xc0] sm:$0xff]
    %v582 = vld [vmem:[#allocation8 + $0xc8] sm:$0xff]
    %v583 = vld [vmem:[#allocation8 + $0xd0] sm:$0xff]
    %v584 = vld [vmem:[#allocation8 + $0xd8] sm:$0xff]
    %v585 = vld [vmem:[#allocation8 + $0xe0] sm:$0xff]
    %v586 = vld [vmem:[#allocation8 + $0xe8] sm:$0xff]
    %v587 = vld [vmem:[#allocation8 + $0xf0] sm:$0xff]
    %v588 = vld [vmem:[#allocation8 + $0xf8] sm:$0xff]
    %v621 = vunpack.c.l.b16 %v557
    %v622 = vunpack.c.h.b16 %v557
    %v623 = vunpack.c.l.b16 %v558
    %v624 = vunpack.c.h.b16 %v558
    %v625 = vunpack.c.l.b16 %v559
    %v626 = vunpack.c.h.b16 %v559
    %v627 = vunpack.c.l.b16 %v560
    %v628 = vunpack.c.h.b16 %v560
    %v629 = vunpack.c.l.b16 %v561
    %v630 = vunpack.c.h.b16 %v561
    %v631 = vunpack.c.l.b16 %v562
    %v632 = vunpack.c.h.b16 %v562
    %v633 = vunpack.c.l.b16 %v563
    %v634 = vunpack.c.h.b16 %v563
    %v635 = vunpack.c.l.b16 %v564
    %v636 = vunpack.c.h.b16 %v564
    %v637 = vunpack.c.l.b16 %v565
    %v638 = vunpack.c.h.b16 %v565
    %v639 = vunpack.c.l.b16 %v566
    %v640 = vunpack.c.h.b16 %v566
    %v641 = vunpack.c.l.b16 %v567
    %v642 = vunpack.c.h.b16 %v567
    %v643 = vunpack.c.l.b16 %v568
    %v644 = vunpack.c.h.b16 %v568
    %v645 = vunpack.c.l.b16 %v569
    %v646 = vunpack.c.h.b16 %v569
    %v647 = vunpack.c.l.b16 %v570
    %v648 = vunpack.c.h.b16 %v570
    %v649 = vunpack.c.l.b16 %v571
    %v650 = vunpack.c.h.b16 %v571
    %v651 = vunpack.c.l.b16 %v572
    %v652 = vunpack.c.h.b16 %v572
    %v653 = vunpack.c.l.b16 %v573
    %v654 = vunpack.c.h.b16 %v573
    %v655 = vunpack.c.l.b16 %v574
    %v656 = vunpack.c.h.b16 %v574
    %v657 = vunpack.c.l.b16 %v575
    %v658 = vunpack.c.h.b16 %v575
    %v659 = vunpack.c.l.b16 %v576
    %v660 = vunpack.c.h.b16 %v576
    %v661 = vunpack.c.l.b16 %v577
    %v662 = vunpack.c.h.b16 %v577
    %v663 = vunpack.c.l.b16 %v578
    %v664 = vunpack.c.h.b16 %v578
    %v665 = vunpack.c.l.b16 %v579
    %v666 = vunpack.c.h.b16 %v579
    %v667 = vunpack.c.l.b16 %v580
    %v668 = vunpack.c.h.b16 %v580
    %v669 = vunpack.c.l.b16 %v581
    %v670 = vunpack.c.h.b16 %v581
    %v671 = vunpack.c.l.b16 %v582
    %v672 = vunpack.c.h.b16 %v582
    %v673 = vunpack.c.l.b16 %v583
    %v674 = vunpack.c.h.b16 %v583
    %v675 = vunpack.c.l.b16 %v584
    %v676 = vunpack.c.h.b16 %v584
    %v677 = vunpack.c.l.b16 %v585
    %v678 = vunpack.c.h.b16 %v585
    %v679 = vunpack.c.l.b16 %v586
    %v680 = vunpack.c.h.b16 %v586
    %v681 = vunpack.c.l.b16 %v587
    %v682 = vunpack.c.h.b16 %v587
    %v683 = vunpack.c.l.b16 %v588
    %v684 = vunpack.c.h.b16 %v588
    %v685 = vpack.c.b16 %v623, %v621
    %v686 = vpack.c.b16 %v624, %v622
    %v687 = vpack.c.b16 %v627, %v625
    %v688 = vpack.c.b16 %v628, %v626
    %v689 = vpack.c.b16 %v631, %v629
    %v690 = vpack.c.b16 %v632, %v630
    %v691 = vpack.c.b16 %v635, %v633
    %v692 = vpack.c.b16 %v636, %v634
    %v693 = vpack.c.b16 %v639, %v637
    %v694 = vpack.c.b16 %v640, %v638
    %v695 = vpack.c.b16 %v643, %v641
    %v696 = vpack.c.b16 %v644, %v642
    %v697 = vpack.c.b16 %v647, %v645
    %v698 = vpack.c.b16 %v648, %v646
    %v699 = vpack.c.b16 %v651, %v649
    %v700 = vpack.c.b16 %v652, %v650
    %v701 = vpack.c.b16 %v655, %v653
    %v702 = vpack.c.b16 %v656, %v654
    %v703 = vpack.c.b16 %v659, %v657
    %v704 = vpack.c.b16 %v660, %v658
    %v705 = vpack.c.b16 %v663, %v661
    %v706 = vpack.c.b16 %v664, %v662
    %v707 = vpack.c.b16 %v667, %v665
    %v708 = vpack.c.b16 %v668, %v666
    %v709 = vpack.c.b16 %v671, %v669
    %v710 = vpack.c.b16 %v672, %v670
    %v711 = vpack.c.b16 %v675, %v673
    %v712 = vpack.c.b16 %v676, %v674
    %v713 = vpack.c.b16 %v679, %v677
    %v714 = vpack.c.b16 %v680, %v678
    %v715 = vpack.c.b16 %v683, %v681
    %v716 = vpack.c.b16 %v684, %v682
    %749 = vmatprep.subr.bf16.mxu0 %v686
    %750 = vmatpush1.bf16.msra.mxu0 %v685
    %751 = vmatprep.subr.bf16.mxu0 %v688
    %752 = vmatpush1.bf16.msra.mxu0 %v687
    %753 = vmatprep.subr.bf16.mxu0 %v690
    %754 = vmatpush1.bf16.msra.mxu0 %v689
    %755 = vmatprep.subr.bf16.mxu0 %v692
    %756 = vmatpush1.bf16.msra.mxu0 %v691
    %757 = vmatprep.subr.bf16.mxu0 %v694
    %758 = vmatpush1.bf16.msra.mxu0 %v693
    %759 = vmatprep.subr.bf16.mxu0 %v696
    %760 = vmatpush1.bf16.msra.mxu0 %v695
    %761 = vmatprep.subr.bf16.mxu0 %v698
    %762 = vmatpush1.bf16.msra.mxu0 %v697
    %763 = vmatprep.subr.bf16.mxu0 %v700
    %764 = vmatpush1.bf16.msra.mxu0 %v699
    %765 = vmatprep.subr.bf16.mxu0 %v702
    %766 = vmatpush1.bf16.msra.mxu0 %v701
    %767 = vmatprep.subr.bf16.mxu0 %v704
    %768 = vmatpush1.bf16.msra.mxu0 %v703
    %769 = vmatprep.subr.bf16.mxu0 %v706
    %770 = vmatpush1.bf16.msra.mxu0 %v705
    %771 = vmatprep.subr.bf16.mxu0 %v708
    %772 = vmatpush1.bf16.msra.mxu0 %v707
    %773 = vmatprep.subr.bf16.mxu0 %v710
    %774 = vmatpush1.bf16.msra.mxu0 %v709
    %775 = vmatprep.subr.bf16.mxu0 %v712
    %776 = vmatpush1.bf16.msra.mxu0 %v711
    %777 = vmatprep.subr.bf16.mxu0 %v714
    %778 = vmatpush1.bf16.msra.mxu0 %v713
    %779 = vmatprep.subr.bf16.mxu0 %v716
    %780 = vmatpush1.bf16.msra.mxu0 %v715
    %781 = vmatprep.mubr.bf16.mxu0 %v556
    %782 = vmatmul.mubr.bf16.gmra.mrb[0].mxu0 %v555
    %v783 = vpop.f32.mrb[0].mxu0
    %v784 = vadd.f32 0.0, %v783
    %v785 = vpop.f32.mrb[0].mxu0
    %v786 = vadd.f32 0.0, %v785
    %v787 = vpop.f32.mrb[0].mxu0
    %v788 = vpop.f32.mrb[0].mxu0
    %789 = vdwg.mxu0
    %v790 = vld [vmem:[%s7] sm:$0x3]
    %v791 = vld [vmem:[#allocation10] sm:$0x3]
    %v792 = vrot.slane %v784, 4
    %v793 = vadd.f32 %v784, %v792
    %v794 = vrot.slane %v793, 2
    %v795 = vadd.f32 %v793, %v794
    %v796 = vrot.slane %v795, 1
    %v797 = vadd.f32 %v795, %v796
    %v798 = vrot.slane %v786, 4
    %v799 = vadd.f32 %v786, %v798
    %v800 = vrot.slane %v799, 2
    %v801 = vadd.f32 %v799, %v800
    %v802 = vrot.slane %v801, 1
    %v803 = vadd.f32 %v801, %v802
    %v804 = vmul.f32 %v797, 0.125
    %v805 = vmul.f32 %v803, 0.125
    %v806 = vmul.f32 %v784, %v784
    %v807 = vmul.f32 %v786, %v786
    %v808 = vrot.slane %v806, 4
    %v809 = vadd.f32 %v806, %v808
    %v810 = vrot.slane %v809, 2
    %v811 = vadd.f32 %v809, %v810
    %v812 = vrot.slane %v811, 1
    %v813 = vadd.f32 %v811, %v812
    %v814 = vrot.slane %v807, 4
    %v815 = vadd.f32 %v807, %v814
    %v816 = vrot.slane %v815, 2
    %v817 = vadd.f32 %v815, %v816
    %v818 = vrot.slane %v817, 1
    %v819 = vadd.f32 %v817, %v818
    %v820 = vmul.f32 %v813, 0.125
    %v821 = vmul.f32 %v819, 0.125
    %v822 = vmul.f32 %v804, %v804
    %v823 = vmul.f32 %v805, %v805
    %v824 = vsub.f32 %v820, %v822
    %v825 = vsub.f32 %v821, %v823
    %v826 = vmax.f32 %v824, 0.0
    %v827 = vmax.f32 %v825, 0.0
    %v828 = vadd.f32 %v826, 1e-05
    %v829 = vadd.f32 %v827, 1e-05
    %v830 = vrsqrt.pop %v828
    %v831 = vrsqrt.pop %v829
    %v834 = vcombine.low %v830, %v831
    %v836 = vunpack.c.l.s4 1966171168
    %v837 = vunpack.c.0.s8 %v836
    %v838 = vlaneseq
    %v839 = vshrl.u32 %v838, 7
    %v840 = vsub.s32 %v837, %v839
    %v841 = vrot.slane %v834, %v840
    %v843 = vunpack.c.l.s4 1966171168
    %v844 = vunpack.c.0.s8 %v843
    %v845 = vlaneseq
    %v846 = vshrl.u32 %v845, 7
    %v847 = vsub.s32 %v844, %v846
    %v848 = vrot.slane %v841, %v847
    %v850 = vmul.f32 %v790, %v848
    %v852 = vlaneseq
    %v853 = vshrl.u32 %v852, 7
    %v854 = vsub.s32 0, %v853
    %v855 = vrot.slane %v850, %v854
    %v856 = vlaneseq
    %v857 = vshrl.u32 %v856, 7
    %v858 = vsub.s32 1, %v857
    %v859 = vrot.slane %v850, %v858
    %v862 = vmul.f32 %v804, %v855
    %v863 = vmul.f32 %v805, %v859
    %v866 = vcombine.low %v862, %v863
    %v868 = vunpack.c.l.s4 1966171168
    %v869 = vunpack.c.0.s8 %v868
    %v870 = vlaneseq
    %v871 = vshrl.u32 %v870, 7
    %v872 = vsub.s32 %v869, %v871
    %v873 = vrot.slane %v866, %v872
    %v875 = vunpack.c.l.s4 1966171168
    %v876 = vunpack.c.0.s8 %v875
    %v877 = vlaneseq
    %v878 = vshrl.u32 %v877, 7
    %v879 = vsub.s32 %v876, %v878
    %v880 = vrot.slane %v873, %v879
    %v882 = vsub.f32 %v791, %v880
    %v883 = vmul.f32 %v784, %v855
    %v884 = vmul.f32 %v786, %v859
    %v886 = vlaneseq
    %v887 = vshrl.u32 %v886, 7
    %v888 = vsub.s32 0, %v887
    %v889 = vrot.slane %v882, %v888
    %v890 = vlaneseq
    %v891 = vshrl.u32 %v890, 7
    %v892 = vsub.s32 1, %v891
    %v893 = vrot.slane %v882, %v892
    %v896 = vadd.f32 %v883, %v889
    %v897 = vadd.f32 %v884, %v893
    %v898 = vmax.f32 %v896, 0.0
    %v899 = vmax.f32 %v897, 0.0
    %v900 = vpack.c.bf16 %v898, %v898
    %v901 = vpack.c.bf16 %v899, %v899
    %v902 = vld [vmem:[#allocation11] sm:$0xff]
    %v903 = vld [vmem:[#allocation11 + $0x8] sm:$0xff]
    %v904 = vld [vmem:[#allocation11 + $0x10] sm:$0xff]
    %v905 = vld [vmem:[#allocation11 + $0x18] sm:$0xff]
    %v906 = vld [vmem:[#allocation11 + $0x20] sm:$0xff]
    %v907 = vld [vmem:[#allocation11 + $0x28] sm:$0xff]
    %v908 = vld [vmem:[#allocation11 + $0x30] sm:$0xff]
    %v909 = vld [vmem:[#allocation11 + $0x38] sm:$0xff]
    %v910 = vld [vmem:[#allocation11 + $0x40] sm:$0xff]
    %v911 = vld [vmem:[#allocation11 + $0x48] sm:$0xff]
    %v912 = vld [vmem:[#allocation11 + $0x50] sm:$0xff]
    %v913 = vld [vmem:[#allocation11 + $0x58] sm:$0xff]
    %v914 = vld [vmem:[#allocation11 + $0x60] sm:$0xff]
    %v915 = vld [vmem:[#allocation11 + $0x68] sm:$0xff]
    %v916 = vld [vmem:[#allocation11 + $0x70] sm:$0xff]
    %v917 = vld [vmem:[#allocation11 + $0x78] sm:$0xff]
    %v918 = vld [vmem:[#allocation11 + $0x80] sm:$0xff]
    %v919 = vld [vmem:[#allocation11 + $0x88] sm:$0xff]
    %v920 = vld [vmem:[#allocation11 + $0x90] sm:$0xff]
    %v921 = vld [vmem:[#allocation11 + $0x98] sm:$0xff]
    %v922 = vld [vmem:[#allocation11 + $0xa0] sm:$0xff]
    %v923 = vld [vmem:[#allocation11 + $0xa8] sm:$0xff]
    %v924 = vld [vmem:[#allocation11 + $0xb0] sm:$0xff]
    %v925 = vld [vmem:[#allocation11 + $0xb8] sm:$0xff]
    %v926 = vld [vmem:[#allocation11 + $0xc0] sm:$0xff]
    %v927 = vld [vmem:[#allocation11 + $0xc8] sm:$0xff]
    %v928 = vld [vmem:[#allocation11 + $0xd0] sm:$0xff]
    %v929 = vld [vmem:[#allocation11 + $0xd8] sm:$0xff]
    %v930 = vld [vmem:[#allocation11 + $0xe0] sm:$0xff]
    %v931 = vld [vmem:[#allocation11 + $0xe8] sm:$0xff]
    %v932 = vld [vmem:[#allocation11 + $0xf0] sm:$0xff]
    %v933 = vld [vmem:[#allocation11 + $0xf8] sm:$0xff]
    %v966 = vunpack.c.l.b16 %v902
    %v967 = vunpack.c.h.b16 %v902
    %v968 = vunpack.c.l.b16 %v903
    %v969 = vunpack.c.h.b16 %v903
    %v970 = vunpack.c.l.b16 %v904
    %v971 = vunpack.c.h.b16 %v904
    %v972 = vunpack.c.l.b16 %v905
    %v973 = vunpack.c.h.b16 %v905
    %v974 = vunpack.c.l.b16 %v906
    %v975 = vunpack.c.h.b16 %v906
    %v976 = vunpack.c.l.b16 %v907
    %v977 = vunpack.c.h.b16 %v907
    %v978 = vunpack.c.l.b16 %v908
    %v979 = vunpack.c.h.b16 %v908
    %v980 = vunpack.c.l.b16 %v909
    %v981 = vunpack.c.h.b16 %v909
    %v982 = vunpack.c.l.b16 %v910
    %v983 = vunpack.c.h.b16 %v910
    %v984 = vunpack.c.l.b16 %v911
    %v985 = vunpack.c.h.b16 %v911
    %v986 = vunpack.c.l.b16 %v912
    %v987 = vunpack.c.h.b16 %v912
    %v988 = vunpack.c.l.b16 %v913
    %v989 = vunpack.c.h.b16 %v913
    %v990 = vunpack.c.l.b16 %v914
    %v991 = vunpack.c.h.b16 %v914
    %v992 = vunpack.c.l.b16 %v915
    %v993 = vunpack.c.h.b16 %v915
    %v994 = vunpack.c.l.b16 %v916
    %v995 = vunpack.c.h.b16 %v916
    %v996 = vunpack.c.l.b16 %v917
    %v997 = vunpack.c.h.b16 %v917
    %v998 = vunpack.c.l.b16 %v918
    %v999 = vunpack.c.h.b16 %v918
    %v1000 = vunpack.c.l.b16 %v919
    %v1001 = vunpack.c.h.b16 %v919
    %v1002 = vunpack.c.l.b16 %v920
    %v1003 = vunpack.c.h.b16 %v920
    %v1004 = vunpack.c.l.b16 %v921
    %v1005 = vunpack.c.h.b16 %v921
    %v1006 = vunpack.c.l.b16 %v922
    %v1007 = vunpack.c.h.b16 %v922
    %v1008 = vunpack.c.l.b16 %v923
    %v1009 = vunpack.c.h.b16 %v923
    %v1010 = vunpack.c.l.b16 %v924
    %v1011 = vunpack.c.h.b16 %v924
    %v1012 = vunpack.c.l.b16 %v925
    %v1013 = vunpack.c.h.b16 %v925
    %v1014 = vunpack.c.l.b16 %v926
    %v1015 = vunpack.c.h.b16 %v926
    %v1016 = vunpack.c.l.b16 %v927
    %v1017 = vunpack.c.h.b16 %v927
    %v1018 = vunpack.c.l.b16 %v928
    %v1019 = vunpack.c.h.b16 %v928
    %v1020 = vunpack.c.l.b16 %v929
    %v1021 = vunpack.c.h.b16 %v929
    %v1022 = vunpack.c.l.b16 %v930
    %v1023 = vunpack.c.h.b16 %v930
    %v1024 = vunpack.c.l.b16 %v931
    %v1025 = vunpack.c.h.b16 %v931
    %v1026 = vunpack.c.l.b16 %v932
    %v1027 = vunpack.c.h.b16 %v932
    %v1028 = vunpack.c.l.b16 %v933
    %v1029 = vunpack.c.h.b16 %v933
    %v1030 = vpack.c.b16 %v968, %v966
    %v1031 = vpack.c.b16 %v969, %v967
    %v1032 = vpack.c.b16 %v972, %v970
    %v1033 = vpack.c.b16 %v973, %v971
    %v1034 = vpack.c.b16 %v976, %v974
    %v1035 = vpack.c.b16 %v977, %v975
    %v1036 = vpack.c.b16 %v980, %v978
    %v1037 = vpack.c.b16 %v981, %v979
    %v1038 = vpack.c.b16 %v984, %v982
    %v1039 = vpack.c.b16 %v985, %v983
    %v1040 = vpack.c.b16 %v988, %v986
    %v1041 = vpack.c.b16 %v989, %v987
    %v1042 = vpack.c.b16 %v992, %v990
    %v1043 = vpack.c.b16 %v993, %v991
    %v1044 = vpack.c.b16 %v996, %v994
    %v1045 = vpack.c.b16 %v997, %v995
    %v1046 = vpack.c.b16 %v1000, %v998
    %v1047 = vpack.c.b16 %v1001, %v999
    %v1048 = vpack.c.b16 %v1004, %v1002
    %v1049 = vpack.c.b16 %v1005, %v1003
    %v1050 = vpack.c.b16 %v1008, %v1006
    %v1051 = vpack.c.b16 %v1009, %v1007
    %v1052 = vpack.c.b16 %v1012, %v1010
    %v1053 = vpack.c.b16 %v1013, %v1011
    %v1054 = vpack.c.b16 %v1016, %v1014
    %v1055 = vpack.c.b16 %v1017, %v1015
    %v1056 = vpack.c.b16 %v1020, %v1018
    %v1057 = vpack.c.b16 %v1021, %v1019
    %v1058 = vpack.c.b16 %v1024, %v1022
    %v1059 = vpack.c.b16 %v1025, %v1023
    %v1060 = vpack.c.b16 %v1028, %v1026
    %v1061 = vpack.c.b16 %v1029, %v1027
    %1094 = vmatprep.subr.bf16.mxu0 %v1031
    %1095 = vmatpush1.bf16.msra.mxu0 %v1030
    %1096 = vmatprep.subr.bf16.mxu0 %v1033
    %1097 = vmatpush1.bf16.msra.mxu0 %v1032
    %1098 = vmatprep.subr.bf16.mxu0 %v1035
    %1099 = vmatpush1.bf16.msra.mxu0 %v1034
    %1100 = vmatprep.subr.bf16.mxu0 %v1037
    %1101 = vmatpush1.bf16.msra.mxu0 %v1036
    %1102 = vmatprep.subr.bf16.mxu0 %v1039
    %1103 = vmatpush1.bf16.msra.mxu0 %v1038
    %1104 = vmatprep.subr.bf16.mxu0 %v1041
    %1105 = vmatpush1.bf16.msra.mxu0 %v1040
    %1106 = vmatprep.subr.bf16.mxu0 %v1043
    %1107 = vmatpush1.bf16.msra.mxu0 %v1042
    %1108 = vmatprep.subr.bf16.mxu0 %v1045
    %1109 = vmatpush1.bf16.msra.mxu0 %v1044
    %1110 = vmatprep.subr.bf16.mxu0 %v1047
    %1111 = vmatpush1.bf16.msra.mxu0 %v1046
    %1112 = vmatprep.subr.bf16.mxu0 %v1049
    %1113 = vmatpush1.bf16.msra.mxu0 %v1048
    %1114 = vmatprep.subr.bf16.mxu0 %v1051
    %1115 = vmatpush1.bf16.msra.mxu0 %v1050
    %1116 = vmatprep.subr.bf16.mxu0 %v1053
    %1117 = vmatpush1.bf16.msra.mxu0 %v1052
    %1118 = vmatprep.subr.bf16.mxu0 %v1055
    %1119 = vmatpush1.bf16.msra.mxu0 %v1054
    %1120 = vmatprep.subr.bf16.mxu0 %v1057
    %1121 = vmatpush1.bf16.msra.mxu0 %v1056
    %1122 = vmatprep.subr.bf16.mxu0 %v1059
    %1123 = vmatpush1.bf16.msra.mxu0 %v1058
    %1124 = vmatprep.subr.bf16.mxu0 %v1061
    %1125 = vmatpush1.bf16.msra.mxu0 %v1060
    %1126 = vmatprep.mubr.bf16.mxu0 %v901
    %1127 = vmatmul.mubr.bf16.gmra.mrb[0].mxu0 %v900
    %v1128 = vpop.f32.mrb[0].mxu0
    %v1129 = vadd.f32 0.0, %v1128
    %v1130 = vpop.f32.mrb[0].mxu0
    %v1131 = vadd.f32 0.0, %v1130
    %v1132 = vpop.f32.mrb[0].mxu0
    %v1133 = vpop.f32.mrb[0].mxu0
    %1134 = vdwg.mxu0
    %v1135 = vld [vmem:[%s10] sm:$0x3]
    %v1136 = vld [vmem:[#allocation13] sm:$0x3]
    %v1137 = vrot.slane %v1129, 4
    %v1138 = vadd.f32 %v1129, %v1137
    %v1139 = vrot.slane %v1138, 2
    %v1140 = vadd.f32 %v1138, %v1139
    %v1141 = vrot.slane %v1140, 1
    %v1142 = vadd.f32 %v1140, %v1141
    %v1143 = vrot.slane %v1131, 4
    %v1144 = vadd.f32 %v1131, %v1143
    %v1145 = vrot.slane %v1144, 2
    %v1146 = vadd.f32 %v1144, %v1145
    %v1147 = vrot.slane %v1146, 1
    %v1148 = vadd.f32 %v1146, %v1147
    %v1149 = vmul.f32 %v1142, 0.125
    %v1150 = vmul.f32 %v1148, 0.125
    %v1151 = vmul.f32 %v1129, %v1129
    %v1152 = vmul.f32 %v1131, %v1131
    %v1153 = vrot.slane %v1151, 4
    %v1154 = vadd.f32 %v1151, %v1153
    %v1155 = vrot.slane %v1154, 2
    %v1156 = vadd.f32 %v1154, %v1155
    %v1157 = vrot.slane %v1156, 1
    %v1158 = vadd.f32 %v1156, %v1157
    %v1159 = vrot.slane %v1152, 4
    %v1160 = vadd.f32 %v1152, %v1159
    %v1161 = vrot.slane %v1160, 2
    %v1162 = vadd.f32 %v1160, %v1161
    %v1163 = vrot.slane %v1162, 1
    %v1164 = vadd.f32 %v1162, %v1163
    %v1165 = vmul.f32 %v1158, 0.125
    %v1166 = vmul.f32 %v1164, 0.125
    %v1167 = vmul.f32 %v1149, %v1149
    %v1168 = vmul.f32 %v1150, %v1150
    %v1169 = vsub.f32 %v1165, %v1167
    %v1170 = vsub.f32 %v1166, %v1168
    %v1171 = vmax.f32 %v1169, 0.0
    %v1172 = vmax.f32 %v1170, 0.0
    %v1173 = vadd.f32 %v1171, 1e-05
    %v1174 = vadd.f32 %v1172, 1e-05
    %v1175 = vrsqrt.pop %v1173
    %v1176 = vrsqrt.pop %v1174
    %v1179 = vcombine.low %v1175, %v1176
    %v1181 = vunpack.c.l.s4 1966171168
    %v1182 = vunpack.c.0.s8 %v1181
    %v1183 = vlaneseq
    %v1184 = vshrl.u32 %v1183, 7
    %v1185 = vsub.s32 %v1182, %v1184
    %v1186 = vrot.slane %v1179, %v1185
    %v1188 = vunpack.c.l.s4 1966171168
    %v1189 = vunpack.c.0.s8 %v1188
    %v1190 = vlaneseq
    %v1191 = vshrl.u32 %v1190, 7
    %v1192 = vsub.s32 %v1189, %v1191
    %v1193 = vrot.slane %v1186, %v1192
    %v1195 = vmul.f32 %v1135, %v1193
    %v1197 = vlaneseq
    %v1198 = vshrl.u32 %v1197, 7
    %v1199 = vsub.s32 0, %v1198
    %v1200 = vrot.slane %v1195, %v1199
    %v1201 = vlaneseq
    %v1202 = vshrl.u32 %v1201, 7
    %v1203 = vsub.s32 1, %v1202
    %v1204 = vrot.slane %v1195, %v1203
    %v1207 = vmul.f32 %v1149, %v1200
    %v1208 = vmul.f32 %v1150, %v1204
    %v1211 = vcombine.low %v1207, %v1208
    %v1213 = vunpack.c.l.s4 1966171168
    %v1214 = vunpack.c.0.s8 %v1213
    %v1215 = vlaneseq
    %v1216 = vshrl.u32 %v1215, 7
    %v1217 = vsub.s32 %v1214, %v1216
    %v1218 = vrot.slane %v1211, %v1217
    %v1220 = vunpack.c.l.s4 1966171168
    %v1221 = vunpack.c.0.s8 %v1220
    %v1222 = vlaneseq
    %v1223 = vshrl.u32 %v1222, 7
    %v1224 = vsub.s32 %v1221, %v1223
    %v1225 = vrot.slane %v1218, %v1224
    %v1227 = vsub.f32 %v1136, %v1225
    %v1228 = vmul.f32 %v1129, %v1200
    %v1229 = vmul.f32 %v1131, %v1204
    %v1231 = vlaneseq
    %v1232 = vshrl.u32 %v1231, 7
    %v1233 = vsub.s32 0, %v1232
    %v1234 = vrot.slane %v1227, %v1233
    %v1235 = vlaneseq
    %v1236 = vshrl.u32 %v1235, 7
    %v1237 = vsub.s32 1, %v1236
    %v1238 = vrot.slane %v1227, %v1237
    %v1241 = vadd.f32 %v1228, %v1234
    %v1242 = vadd.f32 %v1229, %v1238
    %v1243 = vadd.f32 %v1241, %v551
    %v1244 = vadd.f32 %v1242, %v552
    %v1245 = vmax.f32 %v1243, 0.0
    %v1246 = vmax.f32 %v1244, 0.0
    %v1247 = vpack.c.bf16 %v1245, %v1245
    %v1248 = vpack.c.bf16 %v1246, %v1246
    %s1249 = scalar_lea.vmem [#allocation8], 256
    %v1250 = vld [vmem:[%s1249] sm:$0xff]
    %v1251 = vld [vmem:[%s1249 + $0x8] sm:$0xff]
    %v1252 = vld [vmem:[%s1249 + $0x10] sm:$0xff]
    %v1253 = vld [vmem:[%s1249 + $0x18] sm:$0xff]
    %v1254 = vld [vmem:[%s1249 + $0x20] sm:$0xff]
    %v1255 = vld [vmem:[%s1249 + $0x28] sm:$0xff]
    %v1256 = vld [vmem:[%s1249 + $0x30] sm:$0xff]
    %v1257 = vld [vmem:[%s1249 + $0x38] sm:$0xff]
    %v1258 = vld [vmem:[%s1249 + $0x40] sm:$0xff]
    %v1259 = vld [vmem:[%s1249 + $0x48] sm:$0xff]
    %v1260 = vld [vmem:[%s1249 + $0x50] sm:$0xff]
    %v1261 = vld [vmem:[%s1249 + $0x58] sm:$0xff]
    %v1262 = vld [vmem:[%s1249 + $0x60] sm:$0xff]
    %v1263 = vld [vmem:[%s1249 + $0x68] sm:$0xff]
    %v1264 = vld [vmem:[%s1249 + $0x70] sm:$0xff]
    %v1265 = vld [vmem:[%s1249 + $0x78] sm:$0xff]
    %v1266 = vld [vmem:[%s1249 + $0x80] sm:$0xff]
    %v1267 = vld [vmem:[%s1249 + $0x88] sm:$0xff]
    %v1268 = vld [vmem:[%s1249 + $0x90] sm:$0xff]
    %v1269 = vld [vmem:[%s1249 + $0x98] sm:$0xff]
    %v1270 = vld [vmem:[%s1249 + $0xa0] sm:$0xff]
    %v1271 = vld [vmem:[%s1249 + $0xa8] sm:$0xff]
    %v1272 = vld [vmem:[%s1249 + $0xb0] sm:$0xff]
    %v1273 = vld [vmem:[%s1249 + $0xb8] sm:$0xff]
    %v1274 = vld [vmem:[%s1249 + $0xc0] sm:$0xff]
    %v1275 = vld [vmem:[%s1249 + $0xc8] sm:$0xff]
    %v1276 = vld [vmem:[%s1249 + $0xd0] sm:$0xff]
    %v1277 = vld [vmem:[%s1249 + $0xd8] sm:$0xff]
    %v1278 = vld [vmem:[%s1249 + $0xe0] sm:$0xff]
    %v1279 = vld [vmem:[%s1249 + $0xe8] sm:$0xff]
    %v1280 = vld [vmem:[%s1249 + $0xf0] sm:$0xff]
    %v1281 = vld [vmem:[%s1249 + $0xf8] sm:$0xff]
    %v1314 = vunpack.c.l.b16 %v1250
    %v1315 = vunpack.c.h.b16 %v1250
    %v1316 = vunpack.c.l.b16 %v1251
    %v1317 = vunpack.c.h.b16 %v1251
    %v1318 = vunpack.c.l.b16 %v1252
    %v1319 = vunpack.c.h.b16 %v1252
    %v1320 = vunpack.c.l.b16 %v1253
    %v1321 = vunpack.c.h.b16 %v1253
    %v1322 = vunpack.c.l.b16 %v1254
    %v1323 = vunpack.c.h.b16 %v1254
    %v1324 = vunpack.c.l.b16 %v1255
    %v1325 = vunpack.c.h.b16 %v1255
    %v1326 = vunpack.c.l.b16 %v1256
    %v1327 = vunpack.c.h.b16 %v1256
    %v1328 = vunpack.c.l.b16 %v1257
    %v1329 = vunpack.c.h.b16 %v1257
    %v1330 = vunpack.c.l.b16 %v1258
    %v1331 = vunpack.c.h.b16 %v1258
    %v1332 = vunpack.c.l.b16 %v1259
    %v1333 = vunpack.c.h.b16 %v1259
    %v1334 = vunpack.c.l.b16 %v1260
    %v1335 = vunpack.c.h.b16 %v1260
    %v1336 = vunpack.c.l.b16 %v1261
    %v1337 = vunpack.c.h.b16 %v1261
    %v1338 = vunpack.c.l.b16 %v1262
    %v1339 = vunpack.c.h.b16 %v1262
    %v1340 = vunpack.c.l.b16 %v1263
    %v1341 = vunpack.c.h.b16 %v1263
    %v1342 = vunpack.c.l.b16 %v1264
    %v1343 = vunpack.c.h.b16 %v1264
    %v1344 = vunpack.c.l.b16 %v1265
    %v1345 = vunpack.c.h.b16 %v1265
    %v1346 = vunpack.c.l.b16 %v1266
    %v1347 = vunpack.c.h.b16 %v1266
    %v1348 = vunpack.c.l.b16 %v1267
    %v1349 = vunpack.c.h.b16 %v1267
    %v1350 = vunpack.c.l.b16 %v1268
    %v1351 = vunpack.c.h.b16 %v1268
    %v1352 = vunpack.c.l.b16 %v1269
    %v1353 = vunpack.c.h.b16 %v1269
    %v1354 = vunpack.c.l.b16 %v1270
    %v1355 = vunpack.c.h.b16 %v1270
    %v1356 = vunpack.c.l.b16 %v1271
    %v1357 = vunpack.c.h.b16 %v1271
    %v1358 = vunpack.c.l.b16 %v1272
    %v1359 = vunpack.c.h.b16 %v1272
    %v1360 = vunpack.c.l.b16 %v1273
    %v1361 = vunpack.c.h.b16 %v1273
    %v1362 = vunpack.c.l.b16 %v1274
    %v1363 = vunpack.c.h.b16 %v1274
    %v1364 = vunpack.c.l.b16 %v1275
    %v1365 = vunpack.c.h.b16 %v1275
    %v1366 = vunpack.c.l.b16 %v1276
    %v1367 = vunpack.c.h.b16 %v1276
    %v1368 = vunpack.c.l.b16 %v1277
    %v1369 = vunpack.c.h.b16 %v1277
    %v1370 = vunpack.c.l.b16 %v1278
    %v1371 = vunpack.c.h.b16 %v1278
    %v1372 = vunpack.c.l.b16 %v1279
    %v1373 = vunpack.c.h.b16 %v1279
    %v1374 = vunpack.c.l.b16 %v1280
    %v1375 = vunpack.c.h.b16 %v1280
    %v1376 = vunpack.c.l.b16 %v1281
    %v1377 = vunpack.c.h.b16 %v1281
    %v1378 = vpack.c.b16 %v1316, %v1314
    %v1379 = vpack.c.b16 %v1317, %v1315
    %v1380 = vpack.c.b16 %v1320, %v1318
    %v1381 = vpack.c.b16 %v1321, %v1319
    %v1382 = vpack.c.b16 %v1324, %v1322
    %v1383 = vpack.c.b16 %v1325, %v1323
    %v1384 = vpack.c.b16 %v1328, %v1326
    %v1385 = vpack.c.b16 %v1329, %v1327
    %v1386 = vpack.c.b16 %v1332, %v1330
    %v1387 = vpack.c.b16 %v1333, %v1331
    %v1388 = vpack.c.b16 %v1336, %v1334
    %v1389 = vpack.c.b16 %v1337, %v1335
    %v1390 = vpack.c.b16 %v1340, %v1338
    %v1391 = vpack.c.b16 %v1341, %v1339
    %v1392 = vpack.c.b16 %v1344, %v1342
    %v1393 = vpack.c.b16 %v1345, %v1343
    %v1394 = vpack.c.b16 %v1348, %v1346
    %v1395 = vpack.c.b16 %v1349, %v1347
    %v1396 = vpack.c.b16 %v1352, %v1350
    %v1397 = vpack.c.b16 %v1353, %v1351
    %v1398 = vpack.c.b16 %v1356, %v1354
    %v1399 = vpack.c.b16 %v1357, %v1355
    %v1400 = vpack.c.b16 %v1360, %v1358
    %v1401 = vpack.c.b16 %v1361, %v1359
    %v1402 = vpack.c.b16 %v1364, %v1362
    %v1403 = vpack.c.b16 %v1365, %v1363
    %v1404 = vpack.c.b16 %v1368, %v1366
    %v1405 = vpack.c.b16 %v1369, %v1367
    %v1406 = vpack.c.b16 %v1372, %v1370
    %v1407 = vpack.c.b16 %v1373, %v1371
    %v1408 = vpack.c.b16 %v1376, %v1374
    %v1409 = vpack.c.b16 %v1377, %v1375
    %1442 = vmatprep.subr.bf16.mxu0 %v1379
    %1443 = vmatpush1.bf16.msra.mxu0 %v1378
    %1444 = vmatprep.subr.bf16.mxu0 %v1381
    %1445 = vmatpush1.bf16.msra.mxu0 %v1380
    %1446 = vmatprep.subr.bf16.mxu0 %v1383
    %1447 = vmatpush1.bf16.msra.mxu0 %v1382
    %1448 = vmatprep.subr.bf16.mxu0 %v1385
    %1449 = vmatpush1.bf16.msra.mxu0 %v1384
    %1450 = vmatprep.subr.bf16.mxu0 %v1387
    %1451 = vmatpush1.bf16.msra.mxu0 %v1386
    %1452 = vmatprep.subr.bf16.mxu0 %v1389
    %1453 = vmatpush1.bf16.msra.mxu0 %v1388
    %1454 = vmatprep.subr.bf16.mxu0 %v1391
    %1455 = vmatpush1.bf16.msra.mxu0 %v1390
    %1456 = vmatprep.subr.bf16.mxu0 %v1393
    %1457 = vmatpush1.bf16.msra.mxu0 %v1392
    %1458 = vmatprep.subr.bf16.mxu0 %v1395
    %1459 = vmatpush1.bf16.msra.mxu0 %v1394
    %1460 = vmatprep.subr.bf16.mxu0 %v1397
    %1461 = vmatpush1.bf16.msra.mxu0 %v1396
    %1462 = vmatprep.subr.bf16.mxu0 %v1399
    %1463 = vmatpush1.bf16.msra.mxu0 %v1398
    %1464 = vmatprep.subr.bf16.mxu0 %v1401
    %1465 = vmatpush1.bf16.msra.mxu0 %v1400
    %1466 = vmatprep.subr.bf16.mxu0 %v1403
    %1467 = vmatpush1.bf16.msra.mxu0 %v1402
    %1468 = vmatprep.subr.bf16.mxu0 %v1405
    %1469 = vmatpush1.bf16.msra.mxu0 %v1404
    %1470 = vmatprep.subr.bf16.mxu0 %v1407
    %1471 = vmatpush1.bf16.msra.mxu0 %v1406
    %1472 = vmatprep.subr.bf16.mxu0 %v1409
    %1473 = vmatpush1.bf16.msra.mxu0 %v1408
    %1474 = vmatprep.mubr.bf16.mxu0 %v1248
    %1475 = vmatmul.mubr.bf16.gmra.mrb[0].mxu0 %v1247
    %v1476 = vpop.f32.mrb[0].mxu0
    %v1477 = vadd.f32 0.0, %v1476
    %v1478 = vpop.f32.mrb[0].mxu0
    %v1479 = vadd.f32 0.0, %v1478
    %v1480 = vpop.f32.mrb[0].mxu0
    %v1481 = vpop.f32.mrb[0].mxu0
    %1482 = vdwg.mxu0
    %s1483 = scalar_lea.vmem %s7, 2
    %v1484 = vld [vmem:[%s1483] sm:$0x3]
    %s1485 = scalar_lea.vmem [#allocation10], 2
    %v1486 = vld [vmem:[%s1485] sm:$0x3]
    %v1487 = vrot.slane %v1477, 4
    %v1488 = vadd.f32 %v1477, %v1487
    %v1489 = vrot.slane %v1488, 2
    %v1490 = vadd.f32 %v1488, %v1489
    %v1491 = vrot.slane %v1490, 1
    %v1492 = vadd.f32 %v1490, %v1491
    %v1493 = vrot.slane %v1479, 4
    %v1494 = vadd.f32 %v1479, %v1493
    %v1495 = vrot.slane %v1494, 2
    %v1496 = vadd.f32 %v1494, %v1495
    %v1497 = vrot.slane %v1496, 1
    %v1498 = vadd.f32 %v1496, %v1497
    %v1499 = vmul.f32 %v1492, 0.125
    %v1500 = vmul.f32 %v1498, 0.125
    %v1501 = vmul.f32 %v1477, %v1477
    %v1502 = vmul.f32 %v1479, %v1479
    %v1503 = vrot.slane %v1501, 4
    %v1504 = vadd.f32 %v1501, %v1503
    %v1505 = vrot.slane %v1504, 2
    %v1506 = vadd.f32 %v1504, %v1505
    %v1507 = vrot.slane %v1506, 1
    %v1508 = vadd.f32 %v1506, %v1507
    %v1509 = vrot.slane %v1502, 4
    %v1510 = vadd.f32 %v1502, %v1509
    %v1511 = vrot.slane %v1510, 2
    %v1512 = vadd.f32 %v1510, %v1511
    %v1513 = vrot.slane %v1512, 1
    %v1514 = vadd.f32 %v1512, %v1513
    %v1515 = vmul.f32 %v1508, 0.125
    %v1516 = vmul.f32 %v1514, 0.125
    %v1517 = vmul.f32 %v1499, %v1499
    %v1518 = vmul.f32 %v1500, %v1500
    %v1519 = vsub.f32 %v1515, %v1517
    %v1520 = vsub.f32 %v1516, %v1518
    %v1521 = vmax.f32 %v1519, 0.0
    %v1522 = vmax.f32 %v1520, 0.0
    %v1523 = vadd.f32 %v1521, 1e-05
    %v1524 = vadd.f32 %v1522, 1e-05
    %v1525 = vrsqrt.pop %v1523
    %v1526 = vrsqrt.pop %v1524
    %v1529 = vcombine.low %v1525, %v1526
    %v1531 = vunpack.c.l.s4 1966171168
    %v1532 = vunpack.c.0.s8 %v1531
    %v1533 = vlaneseq
    %v1534 = vshrl.u32 %v1533, 7
    %v1535 = vsub.s32 %v1532, %v1534
    %v1536 = vrot.slane %v1529, %v1535
    %v1538 = vunpack.c.l.s4 1966171168
    %v1539 = vunpack.c.0.s8 %v1538
    %v1540 = vlaneseq
    %v1541 = vshrl.u32 %v1540, 7
    %v1542 = vsub.s32 %v1539, %v1541
    %v1543 = vrot.slane %v1536, %v1542
    %v1545 = vmul.f32 %v1484, %v1543
    %v1547 = vlaneseq
    %v1548 = vshrl.u32 %v1547, 7
    %v1549 = vsub.s32 0, %v1548
    %v1550 = vrot.slane %v1545, %v1549
    %v1551 = vlaneseq
    %v1552 = vshrl.u32 %v1551, 7
    %v1553 = vsub.s32 1, %v1552
    %v1554 = vrot.slane %v1545, %v1553
    %v1557 = vmul.f32 %v1499, %v1550
    %v1558 = vmul.f32 %v1500, %v1554
    %v1561 = vcombine.low %v1557, %v1558
    %v1563 = vunpack.c.l.s4 1966171168
    %v1564 = vunpack.c.0.s8 %v1563
    %v1565 = vlaneseq
    %v1566 = vshrl.u32 %v1565, 7
    %v1567 = vsub.s32 %v1564, %v1566
    %v1568 = vrot.slane %v1561, %v1567
    %v1570 = vunpack.c.l.s4 1966171168
    %v1571 = vunpack.c.0.s8 %v1570
    %v1572 = vlaneseq
    %v1573 = vshrl.u32 %v1572, 7
    %v1574 = vsub.s32 %v1571, %v1573
    %v1575 = vrot.slane %v1568, %v1574
    %v1577 = vsub.f32 %v1486, %v1575
    %v1578 = vmul.f32 %v1477, %v1550
    %v1579 = vmul.f32 %v1479, %v1554
    %v1581 = vlaneseq
    %v1582 = vshrl.u32 %v1581, 7
    %v1583 = vsub.s32 0, %v1582
    %v1584 = vrot.slane %v1577, %v1583
    %v1585 = vlaneseq
    %v1586 = vshrl.u32 %v1585, 7
    %v1587 = vsub.s32 1, %v1586
    %v1588 = vrot.slane %v1577, %v1587
    %v1591 = vadd.f32 %v1578, %v1584
    %v1592 = vadd.f32 %v1579, %v1588
    %v1593 = vmax.f32 %v1591, 0.0
    %v1594 = vmax.f32 %v1592, 0.0
    %v1595 = vpack.c.bf16 %v1593, %v1593
    %v1596 = vpack.c.bf16 %v1594, %v1594
    %s1597 = scalar_lea.vmem [#allocation11], 256
    %v1598 = vld [vmem:[%s1597] sm:$0xff]
    %v1599 = vld [vmem:[%s1597 + $0x8] sm:$0xff]
    %v1600 = vld [vmem:[%s1597 + $0x10] sm:$0xff]
    %v1601 = vld [vmem:[%s1597 + $0x18] sm:$0xff]
    %v1602 = vld [vmem:[%s1597 + $0x20] sm:$0xff]
    %v1603 = vld [vmem:[%s1597 + $0x28] sm:$0xff]
    %v1604 = vld [vmem:[%s1597 + $0x30] sm:$0xff]
    %v1605 = vld [vmem:[%s1597 + $0x38] sm:$0xff]
    %v1606 = vld [vmem:[%s1597 + $0x40] sm:$0xff]
    %v1607 = vld [vmem:[%s1597 + $0x48] sm:$0xff]
    %v1608 = vld [vmem:[%s1597 + $0x50] sm:$0xff]
    %v1609 = vld [vmem:[%s1597 + $0x58] sm:$0xff]
    %v1610 = vld [vmem:[%s1597 + $0x60] sm:$0xff]
    %v1611 = vld [vmem:[%s1597 + $0x68] sm:$0xff]
    %v1612 = vld [vmem:[%s1597 + $0x70] sm:$0xff]
    %v1613 = vld [vmem:[%s1597 + $0x78] sm:$0xff]
    %v1614 = vld [vmem:[%s1597 + $0x80] sm:$0xff]
    %v1615 = vld [vmem:[%s1597 + $0x88] sm:$0xff]
    %v1616 = vld [vmem:[%s1597 + $0x90] sm:$0xff]
    %v1617 = vld [vmem:[%s1597 + $0x98] sm:$0xff]
    %v1618 = vld [vmem:[%s1597 + $0xa0] sm:$0xff]
    %v1619 = vld [vmem:[%s1597 + $0xa8] sm:$0xff]
    %v1620 = vld [vmem:[%s1597 + $0xb0] sm:$0xff]
    %v1621 = vld [vmem:[%s1597 + $0xb8] sm:$0xff]
    %v1622 = vld [vmem:[%s1597 + $0xc0] sm:$0xff]
    %v1623 = vld [vmem:[%s1597 + $0xc8] sm:$0xff]
    %v1624 = vld [vmem:[%s1597 + $0xd0] sm:$0xff]
    %v1625 = vld [vmem:[%s1597 + $0xd8] sm:$0xff]
    %v1626 = vld [vmem:[%s1597 + $0xe0] sm:$0xff]
    %v1627 = vld [vmem:[%s1597 + $0xe8] sm:$0xff]
    %v1628 = vld [vmem:[%s1597 + $0xf0] sm:$0xff]
    %v1629 = vld [vmem:[%s1597 + $0xf8] sm:$0xff]
    %v1662 = vunpack.c.l.b16 %v1598
    %v1663 = vunpack.c.h.b16 %v1598
    %v1664 = vunpack.c.l.b16 %v1599
    %v1665 = vunpack.c.h.b16 %v1599
    %v1666 = vunpack.c.l.b16 %v1600
    %v1667 = vunpack.c.h.b16 %v1600
    %v1668 = vunpack.c.l.b16 %v1601
    %v1669 = vunpack.c.h.b16 %v1601
    %v1670 = vunpack.c.l.b16 %v1602
    %v1671 = vunpack.c.h.b16 %v1602
    %v1672 = vunpack.c.l.b16 %v1603
    %v1673 = vunpack.c.h.b16 %v1603
    %v1674 = vunpack.c.l.b16 %v1604
    %v1675 = vunpack.c.h.b16 %v1604
    %v1676 = vunpack.c.l.b16 %v1605
    %v1677 = vunpack.c.h.b16 %v1605
    %v1678 = vunpack.c.l.b16 %v1606
    %v1679 = vunpack.c.h.b16 %v1606
    %v1680 = vunpack.c.l.b16 %v1607
    %v1681 = vunpack.c.h.b16 %v1607
    %v1682 = vunpack.c.l.b16 %v1608
    %v1683 = vunpack.c.h.b16 %v1608
    %v1684 = vunpack.c.l.b16 %v1609
    %v1685 = vunpack.c.h.b16 %v1609
    %v1686 = vunpack.c.l.b16 %v1610
    %v1687 = vunpack.c.h.b16 %v1610
    %v1688 = vunpack.c.l.b16 %v1611
    %v1689 = vunpack.c.h.b16 %v1611
    %v1690 = vunpack.c.l.b16 %v1612
    %v1691 = vunpack.c.h.b16 %v1612
    %v1692 = vunpack.c.l.b16 %v1613
    %v1693 = vunpack.c.h.b16 %v1613
    %v1694 = vunpack.c.l.b16 %v1614
    %v1695 = vunpack.c.h.b16 %v1614
    %v1696 = vunpack.c.l.b16 %v1615
    %v1697 = vunpack.c.h.b16 %v1615
    %v1698 = vunpack.c.l.b16 %v1616
    %v1699 = vunpack.c.h.b16 %v1616
    %v1700 = vunpack.c.l.b16 %v1617
    %v1701 = vunpack.c.h.b16 %v1617
    %v1702 = vunpack.c.l.b16 %v1618
    %v1703 = vunpack.c.h.b16 %v1618
    %v1704 = vunpack.c.l.b16 %v1619
    %v1705 = vunpack.c.h.b16 %v1619
    %v1706 = vunpack.c.l.b16 %v1620
    %v1707 = vunpack.c.h.b16 %v1620
    %v1708 = vunpack.c.l.b16 %v1621
    %v1709 = vunpack.c.h.b16 %v1621
    %v1710 = vunpack.c.l.b16 %v1622
    %v1711 = vunpack.c.h.b16 %v1622
    %v1712 = vunpack.c.l.b16 %v1623
    %v1713 = vunpack.c.h.b16 %v1623
    %v1714 = vunpack.c.l.b16 %v1624
    %v1715 = vunpack.c.h.b16 %v1624
    %v1716 = vunpack.c.l.b16 %v1625
    %v1717 = vunpack.c.h.b16 %v1625
    %v1718 = vunpack.c.l.b16 %v1626
    %v1719 = vunpack.c.h.b16 %v1626
    %v1720 = vunpack.c.l.b16 %v1627
    %v1721 = vunpack.c.h.b16 %v1627
    %v1722 = vunpack.c.l.b16 %v1628
    %v1723 = vunpack.c.h.b16 %v1628
    %v1724 = vunpack.c.l.b16 %v1629
    %v1725 = vunpack.c.h.b16 %v1629
    %v1726 = vpack.c.b16 %v1664, %v1662
    %v1727 = vpack.c.b16 %v1665, %v1663
    %v1728 = vpack.c.b16 %v1668, %v1666
    %v1729 = vpack.c.b16 %v1669, %v1667
    %v1730 = vpack.c.b16 %v1672, %v1670
    %v1731 = vpack.c.b16 %v1673, %v1671
    %v1732 = vpack.c.b16 %v1676, %v1674
    %v1733 = vpack.c.b16 %v1677, %v1675
    %v1734 = vpack.c.b16 %v1680, %v1678
    %v1735 = vpack.c.b16 %v1681, %v1679
    %v1736 = vpack.c.b16 %v1684, %v1682
    %v1737 = vpack.c.b16 %v1685, %v1683
    %v1738 = vpack.c.b16 %v1688, %v1686
    %v1739 = vpack.c.b16 %v1689, %v1687
    %v1740 = vpack.c.b16 %v1692, %v1690
    %v1741 = vpack.c.b16 %v1693, %v1691
    %v1742 = vpack.c.b16 %v1696, %v1694
    %v1743 = vpack.c.b16 %v1697, %v1695
    %v1744 = vpack.c.b16 %v1700, %v1698
    %v1745 = vpack.c.b16 %v1701, %v1699
    %v1746 = vpack.c.b16 %v1704, %v1702
    %v1747 = vpack.c.b16 %v1705, %v1703
    %v1748 = vpack.c.b16 %v1708, %v1706
    %v1749 = vpack.c.b16 %v1709, %v1707
    %v1750 = vpack.c.b16 %v1712, %v1710
    %v1751 = vpack.c.b16 %v1713, %v1711
    %v1752 = vpack.c.b16 %v1716, %v1714
    %v1753 = vpack.c.b16 %v1717, %v1715
    %v1754 = vpack.c.b16 %v1720, %v1718
    %v1755 = vpack.c.b16 %v1721, %v1719
    %v1756 = vpack.c.b16 %v1724, %v1722
    %v1757 = vpack.c.b16 %v1725, %v1723
    %1790 = vmatprep.subr.bf16.mxu0 %v1727
    %1791 = vmatpush1.bf16.msra.mxu0 %v1726
    %1792 = vmatprep.subr.bf16.mxu0 %v1729
    %1793 = vmatpush1.bf16.msra.mxu0 %v1728
    %1794 = vmatprep.subr.bf16.mxu0 %v1731
    %1795 = vmatpush1.bf16.msra.mxu0 %v1730
    %1796 = vmatprep.subr.bf16.mxu0 %v1733
    %1797 = vmatpush1.bf16.msra.mxu0 %v1732
    %1798 = vmatprep.subr.bf16.mxu0 %v1735
    %1799 = vmatpush1.bf16.msra.mxu0 %v1734
    %1800 = vmatprep.subr.bf16.mxu0 %v1737
    %1801 = vmatpush1.bf16.msra.mxu0 %v1736
    %1802 = vmatprep.subr.bf16.mxu0 %v1739
    %1803 = vmatpush1.bf16.msra.mxu0 %v1738
    %1804 = vmatprep.subr.bf16.mxu0 %v1741
    %1805 = vmatpush1.bf16.msra.mxu0 %v1740
    %1806 = vmatprep.subr.bf16.mxu0 %v1743
    %1807 = vmatpush1.bf16.msra.mxu0 %v1742
    %1808 = vmatprep.subr.bf16.mxu0 %v1745
    %1809 = vmatpush1.bf16.msra.mxu0 %v1744
    %1810 = vmatprep.subr.bf16.mxu0 %v1747
    %1811 = vmatpush1.bf16.msra.mxu0 %v1746
    %1812 = vmatprep.subr.bf16.mxu0 %v1749
    %1813 = vmatpush1.bf16.msra.mxu0 %v1748
    %1814 = vmatprep.subr.bf16.mxu0 %v1751
    %1815 = vmatpush1.bf16.msra.mxu0 %v1750
    %1816 = vmatprep.subr.bf16.mxu0 %v1753
    %1817 = vmatpush1.bf16.msra.mxu0 %v1752
    %1818 = vmatprep.subr.bf16.mxu0 %v1755
    %1819 = vmatpush1.bf16.msra.mxu0 %v1754
    %1820 = vmatprep.subr.bf16.mxu0 %v1757
    %1821 = vmatpush1.bf16.msra.mxu0 %v1756
    %1822 = vmatprep.mubr.bf16.mxu0 %v1596
    %1823 = vmatmul.mubr.bf16.gmra.mrb[0].mxu0 %v1595
    %v1824 = vpop.f32.mrb[0].mxu0
    %v1825 = vadd.f32 0.0, %v1824
    %v1826 = vpop.f32.mrb[0].mxu0
    %v1827 = vadd.f32 0.0, %v1826
    %v1828 = vpop.f32.mrb[0].mxu0
    %v1829 = vpop.f32.mrb[0].mxu0
    %1830 = vdwg.mxu0
    %s1831 = scalar_lea.vmem %s10, 2
    %v1832 = vld [vmem:[%s1831] sm:$0x3]
    %s1833 = scalar_lea.vmem [#allocation13], 2
    %v1834 = vld [vmem:[%s1833] sm:$0x3]
    %v1835 = vrot.slane %v1825, 4
    %v1836 = vadd.f32 %v1825, %v1835
    %v1837 = vrot.slane %v1836, 2
    %v1838 = vadd.f32 %v1836, %v1837
    %v1839 = vrot.slane %v1838, 1
    %v1840 = vadd.f32 %v1838, %v1839
    %v1841 = vrot.slane %v1827, 4
    %v1842 = vadd.f32 %v1827, %v1841
    %v1843 = vrot.slane %v1842, 2
    %v1844 = vadd.f32 %v1842, %v1843
    %v1845 = vrot.slane %v1844, 1
    %v1846 = vadd.f32 %v1844, %v1845
    %v1847 = vmul.f32 %v1840, 0.125
    %v1848 = vmul.f32 %v1846, 0.125
    %v1849 = vmul.f32 %v1825, %v1825
    %v1850 = vmul.f32 %v1827, %v1827
    %v1851 = vrot.slane %v1849, 4
    %v1852 = vadd.f32 %v1849, %v1851
    %v1853 = vrot.slane %v1852, 2
    %v1854 = vadd.f32 %v1852, %v1853
    %v1855 = vrot.slane %v1854, 1
    %v1856 = vadd.f32 %v1854, %v1855
    %v1857 = vrot.slane %v1850, 4
    %v1858 = vadd.f32 %v1850, %v1857
    %v1859 = vrot.slane %v1858, 2
    %v1860 = vadd.f32 %v1858, %v1859
    %v1861 = vrot.slane %v1860, 1
    %v1862 = vadd.f32 %v1860, %v1861
    %v1863 = vmul.f32 %v1856, 0.125
    %v1864 = vmul.f32 %v1862, 0.125
    %v1865 = vmul.f32 %v1847, %v1847
    %v1866 = vmul.f32 %v1848, %v1848
    %v1867 = vsub.f32 %v1863, %v1865
    %v1868 = vsub.f32 %v1864, %v1866
    %v1869 = vmax.f32 %v1867, 0.0
    %v1870 = vmax.f32 %v1868, 0.0
    %v1871 = vadd.f32 %v1869, 1e-05
    %v1872 = vadd.f32 %v1870, 1e-05
    %v1873 = vrsqrt.pop %v1871
    %v1874 = vrsqrt.pop %v1872
    %v1877 = vcombine.low %v1873, %v1874
    %v1879 = vunpack.c.l.s4 1966171168
    %v1880 = vunpack.c.0.s8 %v1879
    %v1881 = vlaneseq
    %v1882 = vshrl.u32 %v1881, 7
    %v1883 = vsub.s32 %v1880, %v1882
    %v1884 = vrot.slane %v1877, %v1883
    %v1886 = vunpack.c.l.s4 1966171168
    %v1887 = vunpack.c.0.s8 %v1886
    %v1888 = vlaneseq
    %v1889 = vshrl.u32 %v1888, 7
    %v1890 = vsub.s32 %v1887, %v1889
    %v1891 = vrot.slane %v1884, %v1890
    %v1893 = vmul.f32 %v1832, %v1891
    %v1895 = vlaneseq
    %v1896 = vshrl.u32 %v1895, 7
    %v1897 = vsub.s32 0, %v1896
    %v1898 = vrot.slane %v1893, %v1897
    %v1899 = vlaneseq
    %v1900 = vshrl.u32 %v1899, 7
    %v1901 = vsub.s32 1, %v1900
    %v1902 = vrot.slane %v1893, %v1901
    %v1905 = vmul.f32 %v1847, %v1898
    %v1906 = vmul.f32 %v1848, %v1902
    %v1909 = vcombine.low %v1905, %v1906
    %v1911 = vunpack.c.l.s4 1966171168
    %v1912 = vunpack.c.0.s8 %v1911
    %v1913 = vlaneseq
    %v1914 = vshrl.u32 %v1913, 7
    %v1915 = vsub.s32 %v1912, %v1914
    %v1916 = vrot.slane %v1909, %v1915
    %v1918 = vunpack.c.l.s4 1966171168
    %v1919 = vunpack.c.0.s8 %v1918
    %v1920 = vlaneseq
    %v1921 = vshrl.u32 %v1920, 7
    %v1922 = vsub.s32 %v1919, %v1921
    %v1923 = vrot.slane %v1916, %v1922
    %v1925 = vsub.f32 %v1834, %v1923
    %v1926 = vmul.f32 %v1825, %v1898
    %v1927 = vmul.f32 %v1827, %v1902
    %v1929 = vlaneseq
    %v1930 = vshrl.u32 %v1929, 7
    %v1931 = vsub.s32 0, %v1930
    %v1932 = vrot.slane %v1925, %v1931
    %v1933 = vlaneseq
    %v1934 = vshrl.u32 %v1933, 7
    %v1935 = vsub.s32 1, %v1934
    %v1936 = vrot.slane %v1925, %v1935
    %v1939 = vadd.f32 %v1926, %v1932
    %v1940 = vadd.f32 %v1927, %v1936
    %v1941 = vadd.f32 %v1939, %v1245
    %v1942 = vadd.f32 %v1940, %v1246
    %v1943 = vmax.f32 %v1941, 0.0
    %v1944 = vmax.f32 %v1942, 0.0
    %v1945 = vpack.c.bf16 %v553, %v553
    %v1946 = vpack.c.bf16 %v554, %v554
    %s1947 = scalar_lea.vmem [#allocation8], 512
    %v1948 = vld [vmem:[%s1947] sm:$0xff]
    %v1949 = vld [vmem:[%s1947 + $0x8] sm:$0xff]
    %v1950 = vld [vmem:[%s1947 + $0x10] sm:$0xff]
    %v1951 = vld [vmem:[%s1947 + $0x18] sm:$0xff]
    %v1952 = vld [vmem:[%s1947 + $0x20] sm:$0xff]
    %v1953 = vld [vmem:[%s1947 + $0x28] sm:$0xff]
    %v1954 = vld [vmem:[%s1947 + $0x30] sm:$0xff]
    %v1955 = vld [vmem:[%s1947 + $0x38] sm:$0xff]
    %v1956 = vld [vmem:[%s1947 + $0x40] sm:$0xff]
    %v1957 = vld [vmem:[%s1947 + $0x48] sm:$0xff]
    %v1958 = vld [vmem:[%s1947 + $0x50] sm:$0xff]
    %v1959 = vld [vmem:[%s1947 + $0x58] sm:$0xff]
    %v1960 = vld [vmem:[%s1947 + $0x60] sm:$0xff]
    %v1961 = vld [vmem:[%s1947 + $0x68] sm:$0xff]
    %v1962 = vld [vmem:[%s1947 + $0x70] sm:$0xff]
    %v1963 = vld [vmem:[%s1947 + $0x78] sm:$0xff]
    %v1964 = vld [vmem:[%s1947 + $0x80] sm:$0xff]
    %v1965 = vld [vmem:[%s1947 + $0x88] sm:$0xff]
    %v1966 = vld [vmem:[%s1947 + $0x90] sm:$0xff]
    %v1967 = vld [vmem:[%s1947 + $0x98] sm:$0xff]
    %v1968 = vld [vmem:[%s1947 + $0xa0] sm:$0xff]
    %v1969 = vld [vmem:[%s1947 + $0xa8] sm:$0xff]
    %v1970 = vld [vmem:[%s1947 + $0xb0] sm:$0xff]
    %v1971 = vld [vmem:[%s1947 + $0xb8] sm:$0xff]
    %v1972 = vld [vmem:[%s1947 + $0xc0] sm:$0xff]
    %v1973 = vld [vmem:[%s1947 + $0xc8] sm:$0xff]
    %v1974 = vld [vmem:[%s1947 + $0xd0] sm:$0xff]
    %v1975 = vld [vmem:[%s1947 + $0xd8] sm:$0xff]
    %v1976 = vld [vmem:[%s1947 + $0xe0] sm:$0xff]
    %v1977 = vld [vmem:[%s1947 + $0xe8] sm:$0xff]
    %v1978 = vld [vmem:[%s1947 + $0xf0] sm:$0xff]
    %v1979 = vld [vmem:[%s1947 + $0xf8] sm:$0xff]
    %v2012 = vunpack.c.l.b16 %v1948
    %v2013 = vunpack.c.h.b16 %v1948
    %v2014 = vunpack.c.l.b16 %v1949
    %v2015 = vunpack.c.h.b16 %v1949
    %v2016 = vunpack.c.l.b16 %v1950
    %v2017 = vunpack.c.h.b16 %v1950
    %v2018 = vunpack.c.l.b16 %v1951
    %v2019 = vunpack.c.h.b16 %v1951
    %v2020 = vunpack.c.l.b16 %v1952
    %v2021 = vunpack.c.h.b16 %v1952
    %v2022 = vunpack.c.l.b16 %v1953
    %v2023 = vunpack.c.h.b16 %v1953
    %v2024 = vunpack.c.l.b16 %v1954
    %v2025 = vunpack.c.h.b16 %v1954
    %v2026 = vunpack.c.l.b16 %v1955
    %v2027 = vunpack.c.h.b16 %v1955
    %v2028 = vunpack.c.l.b16 %v1956
    %v2029 = vunpack.c.h.b16 %v1956
    %v2030 = vunpack.c.l.b16 %v1957
    %v2031 = vunpack.c.h.b16 %v1957
    %v2032 = vunpack.c.l.b16 %v1958
    %v2033 = vunpack.c.h.b16 %v1958
    %v2034 = vunpack.c.l.b16 %v1959
    %v2035 = vunpack.c.h.b16 %v1959
    %v2036 = vunpack.c.l.b16 %v1960
    %v2037 = vunpack.c.h.b16 %v1960
    %v2038 = vunpack.c.l.b16 %v1961
    %v2039 = vunpack.c.h.b16 %v1961
    %v2040 = vunpack.c.l.b16 %v1962
    %v2041 = vunpack.c.h.b16 %v1962
    %v2042 = vunpack.c.l.b16 %v1963
    %v2043 = vunpack.c.h.b16 %v1963
    %v2044 = vunpack.c.l.b16 %v1964
    %v2045 = vunpack.c.h.b16 %v1964
    %v2046 = vunpack.c.l.b16 %v1965
    %v2047 = vunpack.c.h.b16 %v1965
    %v2048 = vunpack.c.l.b16 %v1966
    %v2049 = vunpack.c.h.b16 %v1966
    %v2050 = vunpack.c.l.b16 %v1967
    %v2051 = vunpack.c.h.b16 %v1967
    %v2052 = vunpack.c.l.b16 %v1968
    %v2053 = vunpack.c.h.b16 %v1968
    %v2054 = vunpack.c.l.b16 %v1969
    %v2055 = vunpack.c.h.b16 %v1969
    %v2056 = vunpack.c.l.b16 %v1970
    %v2057 = vunpack.c.h.b16 %v1970
    %v2058 = vunpack.c.l.b16 %v1971
    %v2059 = vunpack.c.h.b16 %v1971
    %v2060 = vunpack.c.l.b16 %v1972
    %v2061 = vunpack.c.h.b16 %v1972
    %v2062 = vunpack.c.l.b16 %v1973
    %v2063 = vunpack.c.h.b16 %v1973
    %v2064 = vunpack.c.l.b16 %v1974
    %v2065 = vunpack.c.h.b16 %v1974
    %v2066 = vunpack.c.l.b16 %v1975
    %v2067 = vunpack.c.h.b16 %v1975
    %v2068 = vunpack.c.l.b16 %v1976
    %v2069 = vunpack.c.h.b16 %v1976
    %v2070 = vunpack.c.l.b16 %v1977
    %v2071 = vunpack.c.h.b16 %v1977
    %v2072 = vunpack.c.l.b16 %v1978
    %v2073 = vunpack.c.h.b16 %v1978
    %v2074 = vunpack.c.l.b16 %v1979
    %v2075 = vunpack.c.h.b16 %v1979
    %v2076 = vpack.c.b16 %v2014, %v2012
    %v2077 = vpack.c.b16 %v2015, %v2013
    %v2078 = vpack.c.b16 %v2018, %v2016
    %v2079 = vpack.c.b16 %v2019, %v2017
    %v2080 = vpack.c.b16 %v2022, %v2020
    %v2081 = vpack.c.b16 %v2023, %v2021
    %v2082 = vpack.c.b16 %v2026, %v2024
    %v2083 = vpack.c.b16 %v2027, %v2025
    %v2084 = vpack.c.b16 %v2030, %v2028
    %v2085 = vpack.c.b16 %v2031, %v2029
    %v2086 = vpack.c.b16 %v2034, %v2032
    %v2087 = vpack.c.b16 %v2035, %v2033
    %v2088 = vpack.c.b16 %v2038, %v2036
    %v2089 = vpack.c.b16 %v2039, %v2037
    %v2090 = vpack.c.b16 %v2042, %v2040
    %v2091 = vpack.c.b16 %v2043, %v2041
    %v2092 = vpack.c.b16 %v2046, %v2044
    %v2093 = vpack.c.b16 %v2047, %v2045
    %v2094 = vpack.c.b16 %v2050, %v2048
    %v2095 = vpack.c.b16 %v2051, %v2049
    %v2096 = vpack.c.b16 %v2054, %v2052
    %v2097 = vpack.c.b16 %v2055, %v2053
    %v2098 = vpack.c.b16 %v2058, %v2056
    %v2099 = vpack.c.b16 %v2059, %v2057
    %v2100 = vpack.c.b16 %v2062, %v2060
    %v2101 = vpack.c.b16 %v2063, %v2061
    %v2102 = vpack.c.b16 %v2066, %v2064
    %v2103 = vpack.c.b16 %v2067, %v2065
    %v2104 = vpack.c.b16 %v2070, %v2068
    %v2105 = vpack.c.b16 %v2071, %v2069
    %v2106 = vpack.c.b16 %v2074, %v2072
    %v2107 = vpack.c.b16 %v2075, %v2073
    %2140 = vmatprep.subr.bf16.mxu0 %v2077
    %2141 = vmatpush1.bf16.msra.mxu0 %v2076
    %2142 = vmatprep.subr.bf16.mxu0 %v2079
    %2143 = vmatpush1.bf16.msra.mxu0 %v2078
    %2144 = vmatprep.subr.bf16.mxu0 %v2081
    %2145 = vmatpush1.bf16.msra.mxu0 %v2080
    %2146 = vmatprep.subr.bf16.mxu0 %v2083
    %2147 = vmatpush1.bf16.msra.mxu0 %v2082
    %2148 = vmatprep.subr.bf16.mxu0 %v2085
    %2149 = vmatpush1.bf16.msra.mxu0 %v2084
    %2150 = vmatprep.subr.bf16.mxu0 %v2087
    %2151 = vmatpush1.bf16.msra.mxu0 %v2086
    %2152 = vmatprep.subr.bf16.mxu0 %v2089
    %2153 = vmatpush1.bf16.msra.mxu0 %v2088
    %2154 = vmatprep.subr.bf16.mxu0 %v2091
    %2155 = vmatpush1.bf16.msra.mxu0 %v2090
    %2156 = vmatprep.subr.bf16.mxu0 %v2093
    %2157 = vmatpush1.bf16.msra.mxu0 %v2092
    %2158 = vmatprep.subr.bf16.mxu0 %v2095
    %2159 = vmatpush1.bf16.msra.mxu0 %v2094
    %2160 = vmatprep.subr.bf16.mxu0 %v2097
    %2161 = vmatpush1.bf16.msra.mxu0 %v2096
    %2162 = vmatprep.subr.bf16.mxu0 %v2099
    %2163 = vmatpush1.bf16.msra.mxu0 %v2098
    %2164 = vmatprep.subr.bf16.mxu0 %v2101
    %2165 = vmatpush1.bf16.msra.mxu0 %v2100
    %2166 = vmatprep.subr.bf16.mxu0 %v2103
    %2167 = vmatpush1.bf16.msra.mxu0 %v2102
    %2168 = vmatprep.subr.bf16.mxu0 %v2105
    %2169 = vmatpush1.bf16.msra.mxu0 %v2104
    %2170 = vmatprep.subr.bf16.mxu0 %v2107
    %2171 = vmatpush1.bf16.msra.mxu0 %v2106
    %2172 = vmatprep.mubr.bf16.mxu0 %v1946
    %2173 = vmatmul.mubr.bf16.gmra.mrb[0].mxu0 %v1945
    %v2174 = vpop.f32.mrb[0].mxu0
    %v2175 = vadd.f32 0.0, %v2174
    %v2176 = vpop.f32.mrb[0].mxu0
    %v2177 = vadd.f32 0.0, %v2176
    %v2178 = vpop.f32.mrb[0].mxu0
    %v2179 = vpop.f32.mrb[0].mxu0
    %2180 = vdwg.mxu0
    %s2181 = scalar_lea.vmem %s7, 4
    %v2182 = vld [vmem:[%s2181] sm:$0x3]
    %s2183 = scalar_lea.vmem [#allocation10], 4
    %v2184 = vld [vmem:[%s2183] sm:$0x3]
    %v2185 = vrot.slane %v2175, 4
    %v2186 = vadd.f32 %v2175, %v2185
    %v2187 = vrot.slane %v2186, 2
    %v2188 = vadd.f32 %v2186, %v2187
    %v2189 = vrot.slane %v2188, 1
    %v2190 = vadd.f32 %v2188, %v2189
    %v2191 = vrot.slane %v2177, 4
    %v2192 = vadd.f32 %v2177, %v2191
    %v2193 = vrot.slane %v2192, 2
    %v2194 = vadd.f32 %v2192, %v2193
    %v2195 = vrot.slane %v2194, 1
    %v2196 = vadd.f32 %v2194, %v2195
    %v2197 = vmul.f32 %v2190, 0.125
    %v2198 = vmul.f32 %v2196, 0.125
    %v2199 = vmul.f32 %v2175, %v2175
    %v2200 = vmul.f32 %v2177, %v2177
    %v2201 = vrot.slane %v2199, 4
    %v2202 = vadd.f32 %v2199, %v2201
    %v2203 = vrot.slane %v2202, 2
    %v2204 = vadd.f32 %v2202, %v2203
    %v2205 = vrot.slane %v2204, 1
    %v2206 = vadd.f32 %v2204, %v2205
    %v2207 = vrot.slane %v2200, 4
    %v2208 = vadd.f32 %v2200, %v2207
    %v2209 = vrot.slane %v2208, 2
    %v2210 = vadd.f32 %v2208, %v2209
    %v2211 = vrot.slane %v2210, 1
    %v2212 = vadd.f32 %v2210, %v2211
    %v2213 = vmul.f32 %v2206, 0.125
    %v2214 = vmul.f32 %v2212, 0.125
    %v2215 = vmul.f32 %v2197, %v2197
    %v2216 = vmul.f32 %v2198, %v2198
    %v2217 = vsub.f32 %v2213, %v2215
    %v2218 = vsub.f32 %v2214, %v2216
    %v2219 = vmax.f32 %v2217, 0.0
    %v2220 = vmax.f32 %v2218, 0.0
    %v2221 = vadd.f32 %v2219, 1e-05
    %v2222 = vadd.f32 %v2220, 1e-05
    %v2223 = vrsqrt.pop %v2221
    %v2224 = vrsqrt.pop %v2222
    %v2227 = vcombine.low %v2223, %v2224
    %v2229 = vunpack.c.l.s4 1966171168
    %v2230 = vunpack.c.0.s8 %v2229
    %v2231 = vlaneseq
    %v2232 = vshrl.u32 %v2231, 7
    %v2233 = vsub.s32 %v2230, %v2232
    %v2234 = vrot.slane %v2227, %v2233
    %v2236 = vunpack.c.l.s4 1966171168
    %v2237 = vunpack.c.0.s8 %v2236
    %v2238 = vlaneseq
    %v2239 = vshrl.u32 %v2238, 7
    %v2240 = vsub.s32 %v2237, %v2239
    %v2241 = vrot.slane %v2234, %v2240
    %v2243 = vmul.f32 %v2182, %v2241
    %v2245 = vlaneseq
    %v2246 = vshrl.u32 %v2245, 7
    %v2247 = vsub.s32 0, %v2246
    %v2248 = vrot.slane %v2243, %v2247
    %v2249 = vlaneseq
    %v2250 = vshrl.u32 %v2249, 7
    %v2251 = vsub.s32 1, %v2250
    %v2252 = vrot.slane %v2243, %v2251
    %v2255 = vmul.f32 %v2197, %v2248
    %v2256 = vmul.f32 %v2198, %v2252
    %v2259 = vcombine.low %v2255, %v2256
    %v2261 = vunpack.c.l.s4 1966171168
    %v2262 = vunpack.c.0.s8 %v2261
    %v2263 = vlaneseq
    %v2264 = vshrl.u32 %v2263, 7
    %v2265 = vsub.s32 %v2262, %v2264
    %v2266 = vrot.slane %v2259, %v2265
    %v2268 = vunpack.c.l.s4 1966171168
    %v2269 = vunpack.c.0.s8 %v2268
    %v2270 = vlaneseq
    %v2271 = vshrl.u32 %v2270, 7
    %v2272 = vsub.s32 %v2269, %v2271
    %v2273 = vrot.slane %v2266, %v2272
    %v2275 = vsub.f32 %v2184, %v2273
    %v2276 = vmul.f32 %v2175, %v2248
    %v2277 = vmul.f32 %v2177, %v2252
    %v2279 = vlaneseq
    %v2280 = vshrl.u32 %v2279, 7
    %v2281 = vsub.s32 0, %v2280
    %v2282 = vrot.slane %v2275, %v2281
    %v2283 = vlaneseq
    %v2284 = vshrl.u32 %v2283, 7
    %v2285 = vsub.s32 1, %v2284
    %v2286 = vrot.slane %v2275, %v2285
    %v2289 = vadd.f32 %v2276, %v2282
    %v2290 = vadd.f32 %v2277, %v2286
    %v2291 = vmax.f32 %v2289, 0.0
    %v2292 = vmax.f32 %v2290, 0.0
    %v2293 = vpack.c.bf16 %v2291, %v2291
    %v2294 = vpack.c.bf16 %v2292, %v2292
    %s2295 = scalar_lea.vmem [#allocation11], 512
    %v2296 = vld [vmem:[%s2295] sm:$0xff]
    %v2297 = vld [vmem:[%s2295 + $0x8] sm:$0xff]
    %v2298 = vld [vmem:[%s2295 + $0x10] sm:$0xff]
    %v2299 = vld [vmem:[%s2295 + $0x18] sm:$0xff]
    %v2300 = vld [vmem:[%s2295 + $0x20] sm:$0xff]
    %v2301 = vld [vmem:[%s2295 + $0x28] sm:$0xff]
    %v2302 = vld [vmem:[%s2295 + $0x30] sm:$0xff]
    %v2303 = vld [vmem:[%s2295 + $0x38] sm:$0xff]
    %v2304 = vld [vmem:[%s2295 + $0x40] sm:$0xff]
    %v2305 = vld [vmem:[%s2295 + $0x48] sm:$0xff]
    %v2306 = vld [vmem:[%s2295 + $0x50] sm:$0xff]
    %v2307 = vld [vmem:[%s2295 + $0x58] sm:$0xff]
    %v2308 = vld [vmem:[%s2295 + $0x60] sm:$0xff]
    %v2309 = vld [vmem:[%s2295 + $0x68] sm:$0xff]
    %v2310 = vld [vmem:[%s2295 + $0x70] sm:$0xff]
    %v2311 = vld [vmem:[%s2295 + $0x78] sm:$0xff]
    %v2312 = vld [vmem:[%s2295 + $0x80] sm:$0xff]
    %v2313 = vld [vmem:[%s2295 + $0x88] sm:$0xff]
    %v2314 = vld [vmem:[%s2295 + $0x90] sm:$0xff]
    %v2315 = vld [vmem:[%s2295 + $0x98] sm:$0xff]
    %v2316 = vld [vmem:[%s2295 + $0xa0] sm:$0xff]
    %v2317 = vld [vmem:[%s2295 + $0xa8] sm:$0xff]
    %v2318 = vld [vmem:[%s2295 + $0xb0] sm:$0xff]
    %v2319 = vld [vmem:[%s2295 + $0xb8] sm:$0xff]
    %v2320 = vld [vmem:[%s2295 + $0xc0] sm:$0xff]
    %v2321 = vld [vmem:[%s2295 + $0xc8] sm:$0xff]
    %v2322 = vld [vmem:[%s2295 + $0xd0] sm:$0xff]
    %v2323 = vld [vmem:[%s2295 + $0xd8] sm:$0xff]
    %v2324 = vld [vmem:[%s2295 + $0xe0] sm:$0xff]
    %v2325 = vld [vmem:[%s2295 + $0xe8] sm:$0xff]
    %v2326 = vld [vmem:[%s2295 + $0xf0] sm:$0xff]
    %v2327 = vld [vmem:[%s2295 + $0xf8] sm:$0xff]
    %v2360 = vunpack.c.l.b16 %v2296
    %v2361 = vunpack.c.h.b16 %v2296
    %v2362 = vunpack.c.l.b16 %v2297
    %v2363 = vunpack.c.h.b16 %v2297
    %v2364 = vunpack.c.l.b16 %v2298
    %v2365 = vunpack.c.h.b16 %v2298
    %v2366 = vunpack.c.l.b16 %v2299
    %v2367 = vunpack.c.h.b16 %v2299
    %v2368 = vunpack.c.l.b16 %v2300
    %v2369 = vunpack.c.h.b16 %v2300
    %v2370 = vunpack.c.l.b16 %v2301
    %v2371 = vunpack.c.h.b16 %v2301
    %v2372 = vunpack.c.l.b16 %v2302
    %v2373 = vunpack.c.h.b16 %v2302
    %v2374 = vunpack.c.l.b16 %v2303
    %v2375 = vunpack.c.h.b16 %v2303
    %v2376 = vunpack.c.l.b16 %v2304
    %v2377 = vunpack.c.h.b16 %v2304
    %v2378 = vunpack.c.l.b16 %v2305
    %v2379 = vunpack.c.h.b16 %v2305
    %v2380 = vunpack.c.l.b16 %v2306
    %v2381 = vunpack.c.h.b16 %v2306
    %v2382 = vunpack.c.l.b16 %v2307
    %v2383 = vunpack.c.h.b16 %v2307
    %v2384 = vunpack.c.l.b16 %v2308
    %v2385 = vunpack.c.h.b16 %v2308
    %v2386 = vunpack.c.l.b16 %v2309
    %v2387 = vunpack.c.h.b16 %v2309
    %v2388 = vunpack.c.l.b16 %v2310
    %v2389 = vunpack.c.h.b16 %v2310
    %v2390 = vunpack.c.l.b16 %v2311
    %v2391 = vunpack.c.h.b16 %v2311
    %v2392 = vunpack.c.l.b16 %v2312
    %v2393 = vunpack.c.h.b16 %v2312
    %v2394 = vunpack.c.l.b16 %v2313
    %v2395 = vunpack.c.h.b16 %v2313
    %v2396 = vunpack.c.l.b16 %v2314
    %v2397 = vunpack.c.h.b16 %v2314
    %v2398 = vunpack.c.l.b16 %v2315
    %v2399 = vunpack.c.h.b16 %v2315
    %v2400 = vunpack.c.l.b16 %v2316
    %v2401 = vunpack.c.h.b16 %v2316
    %v2402 = vunpack.c.l.b16 %v2317
    %v2403 = vunpack.c.h.b16 %v2317
    %v2404 = vunpack.c.l.b16 %v2318
    %v2405 = vunpack.c.h.b16 %v2318
    %v2406 = vunpack.c.l.b16 %v2319
    %v2407 = vunpack.c.h.b16 %v2319
    %v2408 = vunpack.c.l.b16 %v2320
    %v2409 = vunpack.c.h.b16 %v2320
    %v2410 = vunpack.c.l.b16 %v2321
    %v2411 = vunpack.c.h.b16 %v2321
    %v2412 = vunpack.c.l.b16 %v2322
    %v2413 = vunpack.c.h.b16 %v2322
    %v2414 = vunpack.c.l.b16 %v2323
    %v2415 = vunpack.c.h.b16 %v2323
    %v2416 = vunpack.c.l.b16 %v2324
    %v2417 = vunpack.c.h.b16 %v2324
    %v2418 = vunpack.c.l.b16 %v2325
    %v2419 = vunpack.c.h.b16 %v2325
    %v2420 = vunpack.c.l.b16 %v2326
    %v2421 = vunpack.c.h.b16 %v2326
    %v2422 = vunpack.c.l.b16 %v2327
    %v2423 = vunpack.c.h.b16 %v2327
    %v2424 = vpack.c.b16 %v2362, %v2360
    %v2425 = vpack.c.b16 %v2363, %v2361
    %v2426 = vpack.c.b16 %v2366, %v2364
    %v2427 = vpack.c.b16 %v2367, %v2365
    %v2428 = vpack.c.b16 %v2370, %v2368
    %v2429 = vpack.c.b16 %v2371, %v2369
    %v2430 = vpack.c.b16 %v2374, %v2372
    %v2431 = vpack.c.b16 %v2375, %v2373
    %v2432 = vpack.c.b16 %v2378, %v2376
    %v2433 = vpack.c.b16 %v2379, %v2377
    %v2434 = vpack.c.b16 %v2382, %v2380
    %v2435 = vpack.c.b16 %v2383, %v2381
    %v2436 = vpack.c.b16 %v2386, %v2384
    %v2437 = vpack.c.b16 %v2387, %v2385
    %v2438 = vpack.c.b16 %v2390, %v2388
    %v2439 = vpack.c.b16 %v2391, %v2389
    %v2440 = vpack.c.b16 %v2394, %v2392
    %v2441 = vpack.c.b16 %v2395, %v2393
    %v2442 = vpack.c.b16 %v2398, %v2396
    %v2443 = vpack.c.b16 %v2399, %v2397
    %v2444 = vpack.c.b16 %v2402, %v2400
    %v2445 = vpack.c.b16 %v2403, %v2401
    %v2446 = vpack.c.b16 %v2406, %v2404
    %v2447 = vpack.c.b16 %v2407, %v2405
    %v2448 = vpack.c.b16 %v2410, %v2408
    %v2449 = vpack.c.b16 %v2411, %v2409
    %v2450 = vpack.c.b16 %v2414, %v2412
    %v2451 = vpack.c.b16 %v2415, %v2413
    %v2452 = vpack.c.b16 %v2418, %v2416
    %v2453 = vpack.c.b16 %v2419, %v2417
    %v2454 = vpack.c.b16 %v2422, %v2420
    %v2455 = vpack.c.b16 %v2423, %v2421
    %2488 = vmatprep.subr.bf16.mxu0 %v2425
    %2489 = vmatpush1.bf16.msra.mxu0 %v2424
    %2490 = vmatprep.subr.bf16.mxu0 %v2427
    %2491 = vmatpush1.bf16.msra.mxu0 %v2426
    %2492 = vmatprep.subr.bf16.mxu0 %v2429
    %2493 = vmatpush1.bf16.msra.mxu0 %v2428
    %2494 = vmatprep.subr.bf16.mxu0 %v2431
    %2495 = vmatpush1.bf16.msra.mxu0 %v2430
    %2496 = vmatprep.subr.bf16.mxu0 %v2433
    %2497 = vmatpush1.bf16.msra.mxu0 %v2432
    %2498 = vmatprep.subr.bf16.mxu0 %v2435
    %2499 = vmatpush1.bf16.msra.mxu0 %v2434
    %2500 = vmatprep.subr.bf16.mxu0 %v2437
    %2501 = vmatpush1.bf16.msra.mxu0 %v2436
    %2502 = vmatprep.subr.bf16.mxu0 %v2439
    %2503 = vmatpush1.bf16.msra.mxu0 %v2438
    %2504 = vmatprep.subr.bf16.mxu0 %v2441
    %2505 = vmatpush1.bf16.msra.mxu0 %v2440
    %2506 = vmatprep.subr.bf16.mxu0 %v2443
    %2507 = vmatpush1.bf16.msra.mxu0 %v2442
    %2508 = vmatprep.subr.bf16.mxu0 %v2445
    %2509 = vmatpush1.bf16.msra.mxu0 %v2444
    %2510 = vmatprep.subr.bf16.mxu0 %v2447
    %2511 = vmatpush1.bf16.msra.mxu0 %v2446
    %2512 = vmatprep.subr.bf16.mxu0 %v2449
    %2513 = vmatpush1.bf16.msra.mxu0 %v2448
    %2514 = vmatprep.subr.bf16.mxu0 %v2451
    %2515 = vmatpush1.bf16.msra.mxu0 %v2450
    %2516 = vmatprep.subr.bf16.mxu0 %v2453
    %2517 = vmatpush1.bf16.msra.mxu0 %v2452
    %2518 = vmatprep.subr.bf16.mxu0 %v2455
    %2519 = vmatpush1.bf16.msra.mxu0 %v2454
    %2520 = vmatprep.mubr.bf16.mxu0 %v2294
    %2521 = vmatmul.mubr.bf16.gmra.mrb[0].mxu0 %v2293
    %v2522 = vpop.f32.mrb[0].mxu0
    %v2523 = vadd.f32 0.0, %v2522
    %v2524 = vpop.f32.mrb[0].mxu0
    %v2525 = vadd.f32 0.0, %v2524
    %v2526 = vpop.f32.mrb[0].mxu0
    %v2527 = vpop.f32.mrb[0].mxu0
    %2528 = vdwg.mxu0
    %s2529 = scalar_lea.vmem %s10, 4
    %v2530 = vld [vmem:[%s2529] sm:$0x3]
    %s2531 = scalar_lea.vmem [#allocation13], 4
    %v2532 = vld [vmem:[%s2531] sm:$0x3]
    %v2533 = vrot.slane %v2523, 4
    %v2534 = vadd.f32 %v2523, %v2533
    %v2535 = vrot.slane %v2534, 2
    %v2536 = vadd.f32 %v2534, %v2535
    %v2537 = vrot.slane %v2536, 1
    %v2538 = vadd.f32 %v2536, %v2537
    %v2539 = vrot.slane %v2525, 4
    %v2540 = vadd.f32 %v2525, %v2539
    %v2541 = vrot.slane %v2540, 2
    %v2542 = vadd.f32 %v2540, %v2541
    %v2543 = vrot.slane %v2542, 1
    %v2544 = vadd.f32 %v2542, %v2543
    %v2545 = vmul.f32 %v2538, 0.125
    %v2546 = vmul.f32 %v2544, 0.125
    %v2547 = vmul.f32 %v2523, %v2523
    %v2548 = vmul.f32 %v2525, %v2525
    %v2549 = vrot.slane %v2547, 4
    %v2550 = vadd.f32 %v2547, %v2549
    %v2551 = vrot.slane %v2550, 2
    %v2552 = vadd.f32 %v2550, %v2551
    %v2553 = vrot.slane %v2552, 1
    %v2554 = vadd.f32 %v2552, %v2553
    %v2555 = vrot.slane %v2548, 4
    %v2556 = vadd.f32 %v2548, %v2555
    %v2557 = vrot.slane %v2556, 2
    %v2558 = vadd.f32 %v2556, %v2557
    %v2559 = vrot.slane %v2558, 1
    %v2560 = vadd.f32 %v2558, %v2559
    %v2561 = vmul.f32 %v2554, 0.125
    %v2562 = vmul.f32 %v2560, 0.125
    %v2563 = vmul.f32 %v2545, %v2545
    %v2564 = vmul.f32 %v2546, %v2546
    %v2565 = vsub.f32 %v2561, %v2563
    %v2566 = vsub.f32 %v2562, %v2564
    %v2567 = vmax.f32 %v2565, 0.0
    %v2568 = vmax.f32 %v2566, 0.0
    %v2569 = vadd.f32 %v2567, 1e-05
    %v2570 = vadd.f32 %v2568, 1e-05
    %v2571 = vrsqrt.pop %v2569
    %v2572 = vrsqrt.pop %v2570
    %v2575 = vcombine.low %v2571, %v2572
    %v2577 = vunpack.c.l.s4 1966171168
    %v2578 = vunpack.c.0.s8 %v2577
    %v2579 = vlaneseq
    %v2580 = vshrl.u32 %v2579, 7
    %v2581 = vsub.s32 %v2578, %v2580
    %v2582 = vrot.slane %v2575, %v2581
    %v2584 = vunpack.c.l.s4 1966171168
    %v2585 = vunpack.c.0.s8 %v2584
    %v2586 = vlaneseq
    %v2587 = vshrl.u32 %v2586, 7
    %v2588 = vsub.s32 %v2585, %v2587
    %v2589 = vrot.slane %v2582, %v2588
    %v2591 = vmul.f32 %v2530, %v2589
    %v2593 = vlaneseq
    %v2594 = vshrl.u32 %v2593, 7
    %v2595 = vsub.s32 0, %v2594
    %v2596 = vrot.slane %v2591, %v2595
    %v2597 = vlaneseq
    %v2598 = vshrl.u32 %v2597, 7
    %v2599 = vsub.s32 1, %v2598
    %v2600 = vrot.slane %v2591, %v2599
    %v2603 = vmul.f32 %v2545, %v2596
    %v2604 = vmul.f32 %v2546, %v2600
    %v2607 = vcombine.low %v2603, %v2604
    %v2609 = vunpack.c.l.s4 1966171168
    %v2610 = vunpack.c.0.s8 %v2609
    %v2611 = vlaneseq
    %v2612 = vshrl.u32 %v2611, 7
    %v2613 = vsub.s32 %v2610, %v2612
    %v2614 = vrot.slane %v2607, %v2613
    %v2616 = vunpack.c.l.s4 1966171168
    %v2617 = vunpack.c.0.s8 %v2616
    %v2618 = vlaneseq
    %v2619 = vshrl.u32 %v2618, 7
    %v2620 = vsub.s32 %v2617, %v2619
    %v2621 = vrot.slane %v2614, %v2620
    %v2623 = vsub.f32 %v2532, %v2621
    %v2624 = vmul.f32 %v2523, %v2596
    %v2625 = vmul.f32 %v2525, %v2600
    %v2627 = vlaneseq
    %v2628 = vshrl.u32 %v2627, 7
    %v2629 = vsub.s32 0, %v2628
    %v2630 = vrot.slane %v2623, %v2629
    %v2631 = vlaneseq
    %v2632 = vshrl.u32 %v2631, 7
    %v2633 = vsub.s32 1, %v2632
    %v2634 = vrot.slane %v2623, %v2633
    %v2637 = vadd.f32 %v2624, %v2630
    %v2638 = vadd.f32 %v2625, %v2634
    %v2639 = vadd.f32 %v2637, %v553
    %v2640 = vadd.f32 %v2638, %v554
    %v2641 = vmax.f32 %v2639, 0.0
    %v2642 = vmax.f32 %v2640, 0.0
    %v2643 = vpack.c.bf16 %v2641, %v2641
    %v2644 = vpack.c.bf16 %v2642, %v2642
    %s2645 = scalar_lea.vmem [#allocation8], 768
    %v2646 = vld [vmem:[%s2645] sm:$0xff]
    %v2647 = vld [vmem:[%s2645 + $0x8] sm:$0xff]
    %v2648 = vld [vmem:[%s2645 + $0x10] sm:$0xff]
    %v2649 = vld [vmem:[%s2645 + $0x18] sm:$0xff]
    %v2650 = vld [vmem:[%s2645 + $0x20] sm:$0xff]
    %v2651 = vld [vmem:[%s2645 + $0x28] sm:$0xff]
    %v2652 = vld [vmem:[%s2645 + $0x30] sm:$0xff]
    %v2653 = vld [vmem:[%s2645 + $0x38] sm:$0xff]
    %v2654 = vld [vmem:[%s2645 + $0x40] sm:$0xff]
    %v2655 = vld [vmem:[%s2645 + $0x48] sm:$0xff]
    %v2656 = vld [vmem:[%s2645 + $0x50] sm:$0xff]
    %v2657 = vld [vmem:[%s2645 + $0x58] sm:$0xff]
    %v2658 = vld [vmem:[%s2645 + $0x60] sm:$0xff]
    %v2659 = vld [vmem:[%s2645 + $0x68] sm:$0xff]
    %v2660 = vld [vmem:[%s2645 + $0x70] sm:$0xff]
    %v2661 = vld [vmem:[%s2645 + $0x78] sm:$0xff]
    %v2662 = vld [vmem:[%s2645 + $0x80] sm:$0xff]
    %v2663 = vld [vmem:[%s2645 + $0x88] sm:$0xff]
    %v2664 = vld [vmem:[%s2645 + $0x90] sm:$0xff]
    %v2665 = vld [vmem:[%s2645 + $0x98] sm:$0xff]
    %v2666 = vld [vmem:[%s2645 + $0xa0] sm:$0xff]
    %v2667 = vld [vmem:[%s2645 + $0xa8] sm:$0xff]
    %v2668 = vld [vmem:[%s2645 + $0xb0] sm:$0xff]
    %v2669 = vld [vmem:[%s2645 + $0xb8] sm:$0xff]
    %v2670 = vld [vmem:[%s2645 + $0xc0] sm:$0xff]
    %v2671 = vld [vmem:[%s2645 + $0xc8] sm:$0xff]
    %v2672 = vld [vmem:[%s2645 + $0xd0] sm:$0xff]
    %v2673 = vld [vmem:[%s2645 + $0xd8] sm:$0xff]
    %v2674 = vld [vmem:[%s2645 + $0xe0] sm:$0xff]
    %v2675 = vld [vmem:[%s2645 + $0xe8] sm:$0xff]
    %v2676 = vld [vmem:[%s2645 + $0xf0] sm:$0xff]
    %v2677 = vld [vmem:[%s2645 + $0xf8] sm:$0xff]
    %v2710 = vunpack.c.l.b16 %v2646
    %v2711 = vunpack.c.h.b16 %v2646
    %v2712 = vunpack.c.l.b16 %v2647
    %v2713 = vunpack.c.h.b16 %v2647
    %v2714 = vunpack.c.l.b16 %v2648
    %v2715 = vunpack.c.h.b16 %v2648
    %v2716 = vunpack.c.l.b16 %v2649
    %v2717 = vunpack.c.h.b16 %v2649
    %v2718 = vunpack.c.l.b16 %v2650
    %v2719 = vunpack.c.h.b16 %v2650
    %v2720 = vunpack.c.l.b16 %v2651
    %v2721 = vunpack.c.h.b16 %v2651
    %v2722 = vunpack.c.l.b16 %v2652
    %v2723 = vunpack.c.h.b16 %v2652
    %v2724 = vunpack.c.l.b16 %v2653
    %v2725 = vunpack.c.h.b16 %v2653
    %v2726 = vunpack.c.l.b16 %v2654
    %v2727 = vunpack.c.h.b16 %v2654
    %v2728 = vunpack.c.l.b16 %v2655
    %v2729 = vunpack.c.h.b16 %v2655
    %v2730 = vunpack.c.l.b16 %v2656
    %v2731 = vunpack.c.h.b16 %v2656
    %v2732 = vunpack.c.l.b16 %v2657
    %v2733 = vunpack.c.h.b16 %v2657
    %v2734 = vunpack.c.l.b16 %v2658
    %v2735 = vunpack.c.h.b16 %v2658
    %v2736 = vunpack.c.l.b16 %v2659
    %v2737 = vunpack.c.h.b16 %v2659
    %v2738 = vunpack.c.l.b16 %v2660
    %v2739 = vunpack.c.h.b16 %v2660
    %v2740 = vunpack.c.l.b16 %v2661
    %v2741 = vunpack.c.h.b16 %v2661
    %v2742 = vunpack.c.l.b16 %v2662
    %v2743 = vunpack.c.h.b16 %v2662
    %v2744 = vunpack.c.l.b16 %v2663
    %v2745 = vunpack.c.h.b16 %v2663
    %v2746 = vunpack.c.l.b16 %v2664
    %v2747 = vunpack.c.h.b16 %v2664
    %v2748 = vunpack.c.l.b16 %v2665
    %v2749 = vunpack.c.h.b16 %v2665
    %v2750 = vunpack.c.l.b16 %v2666
    %v2751 = vunpack.c.h.b16 %v2666
    %v2752 = vunpack.c.l.b16 %v2667
    %v2753 = vunpack.c.h.b16 %v2667
    %v2754 = vunpack.c.l.b16 %v2668
    %v2755 = vunpack.c.h.b16 %v2668
    %v2756 = vunpack.c.l.b16 %v2669
    %v2757 = vunpack.c.h.b16 %v2669
    %v2758 = vunpack.c.l.b16 %v2670
    %v2759 = vunpack.c.h.b16 %v2670
    %v2760 = vunpack.c.l.b16 %v2671
    %v2761 = vunpack.c.h.b16 %v2671
    %v2762 = vunpack.c.l.b16 %v2672
    %v2763 = vunpack.c.h.b16 %v2672
    %v2764 = vunpack.c.l.b16 %v2673
    %v2765 = vunpack.c.h.b16 %v2673
    %v2766 = vunpack.c.l.b16 %v2674
    %v2767 = vunpack.c.h.b16 %v2674
    %v2768 = vunpack.c.l.b16 %v2675
    %v2769 = vunpack.c.h.b16 %v2675
    %v2770 = vunpack.c.l.b16 %v2676
    %v2771 = vunpack.c.h.b16 %v2676
    %v2772 = vunpack.c.l.b16 %v2677
    %v2773 = vunpack.c.h.b16 %v2677
    %v2774 = vpack.c.b16 %v2712, %v2710
    %v2775 = vpack.c.b16 %v2713, %v2711
    %v2776 = vpack.c.b16 %v2716, %v2714
    %v2777 = vpack.c.b16 %v2717, %v2715
    %v2778 = vpack.c.b16 %v2720, %v2718
    %v2779 = vpack.c.b16 %v2721, %v2719
    %v2780 = vpack.c.b16 %v2724, %v2722
    %v2781 = vpack.c.b16 %v2725, %v2723
    %v2782 = vpack.c.b16 %v2728, %v2726
    %v2783 = vpack.c.b16 %v2729, %v2727
    %v2784 = vpack.c.b16 %v2732, %v2730
    %v2785 = vpack.c.b16 %v2733, %v2731
    %v2786 = vpack.c.b16 %v2736, %v2734
    %v2787 = vpack.c.b16 %v2737, %v2735
    %v2788 = vpack.c.b16 %v2740, %v2738
    %v2789 = vpack.c.b16 %v2741, %v2739
    %v2790 = vpack.c.b16 %v2744, %v2742
    %v2791 = vpack.c.b16 %v2745, %v2743
    %v2792 = vpack.c.b16 %v2748, %v2746
    %v2793 = vpack.c.b16 %v2749, %v2747
    %v2794 = vpack.c.b16 %v2752, %v2750
    %v2795 = vpack.c.b16 %v2753, %v2751
    %v2796 = vpack.c.b16 %v2756, %v2754
    %v2797 = vpack.c.b16 %v2757, %v2755
    %v2798 = vpack.c.b16 %v2760, %v2758
    %v2799 = vpack.c.b16 %v2761, %v2759
    %v2800 = vpack.c.b16 %v2764, %v2762
    %v2801 = vpack.c.b16 %v2765, %v2763
    %v2802 = vpack.c.b16 %v2768, %v2766
    %v2803 = vpack.c.b16 %v2769, %v2767
    %v2804 = vpack.c.b16 %v2772, %v2770
    %v2805 = vpack.c.b16 %v2773, %v2771
    %2838 = vmatprep.subr.bf16.mxu0 %v2775
    %2839 = vmatpush1.bf16.msra.mxu0 %v2774
    %2840 = vmatprep.subr.bf16.mxu0 %v2777
    %2841 = vmatpush1.bf16.msra.mxu0 %v2776
    %2842 = vmatprep.subr.bf16.mxu0 %v2779
    %2843 = vmatpush1.bf16.msra.mxu0 %v2778
    %2844 = vmatprep.subr.bf16.mxu0 %v2781
    %2845 = vmatpush1.bf16.msra.mxu0 %v2780
    %2846 = vmatprep.subr.bf16.mxu0 %v2783
    %2847 = vmatpush1.bf16.msra.mxu0 %v2782
    %2848 = vmatprep.subr.bf16.mxu0 %v2785
    %2849 = vmatpush1.bf16.msra.mxu0 %v2784
    %2850 = vmatprep.subr.bf16.mxu0 %v2787
    %2851 = vmatpush1.bf16.msra.mxu0 %v2786
    %2852 = vmatprep.subr.bf16.mxu0 %v2789
    %2853 = vmatpush1.bf16.msra.mxu0 %v2788
    %2854 = vmatprep.subr.bf16.mxu0 %v2791
    %2855 = vmatpush1.bf16.msra.mxu0 %v2790
    %2856 = vmatprep.subr.bf16.mxu0 %v2793
    %2857 = vmatpush1.bf16.msra.mxu0 %v2792
    %2858 = vmatprep.subr.bf16.mxu0 %v2795
    %2859 = vmatpush1.bf16.msra.mxu0 %v2794
    %2860 = vmatprep.subr.bf16.mxu0 %v2797
    %2861 = vmatpush1.bf16.msra.mxu0 %v2796
    %2862 = vmatprep.subr.bf16.mxu0 %v2799
    %2863 = vmatpush1.bf16.msra.mxu0 %v2798
    %2864 = vmatprep.subr.bf16.mxu0 %v2801
    %2865 = vmatpush1.bf16.msra.mxu0 %v2800
    %2866 = vmatprep.subr.bf16.mxu0 %v2803
    %2867 = vmatpush1.bf16.msra.mxu0 %v2802
    %2868 = vmatprep.subr.bf16.mxu0 %v2805
    %2869 = vmatpush1.bf16.msra.mxu0 %v2804
    %2870 = vmatprep.mubr.bf16.mxu0 %v2644
    %2871 = vmatmul.mubr.bf16.gmra.mrb[0].mxu0 %v2643
    %v2872 = vpop.f32.mrb[0].mxu0
    %v2873 = vadd.f32 0.0, %v2872
    %v2874 = vpop.f32.mrb[0].mxu0
    %v2875 = vadd.f32 0.0, %v2874
    %v2876 = vpop.f32.mrb[0].mxu0
    %v2877 = vpop.f32.mrb[0].mxu0
    %2878 = vdwg.mxu0
    %s2879 = scalar_lea.vmem %s7, 6
    %v2880 = vld [vmem:[%s2879] sm:$0x3]
    %s2881 = scalar_lea.vmem [#allocation10], 6
    %v2882 = vld [vmem:[%s2881] sm:$0x3]
    %v2883 = vrot.slane %v2873, 4
    %v2884 = vadd.f32 %v2873, %v2883
    %v2885 = vrot.slane %v2884, 2
    %v2886 = vadd.f32 %v2884, %v2885
    %v2887 = vrot.slane %v2886, 1
    %v2888 = vadd.f32 %v2886, %v2887
    %v2889 = vrot.slane %v2875, 4
    %v2890 = vadd.f32 %v2875, %v2889
    %v2891 = vrot.slane %v2890, 2
    %v2892 = vadd.f32 %v2890, %v2891
    %v2893 = vrot.slane %v2892, 1
    %v2894 = vadd.f32 %v2892, %v2893
    %v2895 = vmul.f32 %v2888, 0.125
    %v2896 = vmul.f32 %v2894, 0.125
    %v2897 = vmul.f32 %v2873, %v2873
    %v2898 = vmul.f32 %v2875, %v2875
    %v2899 = vrot.slane %v2897, 4
    %v2900 = vadd.f32 %v2897, %v2899
    %v2901 = vrot.slane %v2900, 2
    %v2902 = vadd.f32 %v2900, %v2901
    %v2903 = vrot.slane %v2902, 1
    %v2904 = vadd.f32 %v2902, %v2903
    %v2905 = vrot.slane %v2898, 4
    %v2906 = vadd.f32 %v2898, %v2905
    %v2907 = vrot.slane %v2906, 2
    %v2908 = vadd.f32 %v2906, %v2907
    %v2909 = vrot.slane %v2908, 1
    %v2910 = vadd.f32 %v2908, %v2909
    %v2911 = vmul.f32 %v2904, 0.125
    %v2912 = vmul.f32 %v2910, 0.125
    %v2913 = vmul.f32 %v2895, %v2895
    %v2914 = vmul.f32 %v2896, %v2896
    %v2915 = vsub.f32 %v2911, %v2913
    %v2916 = vsub.f32 %v2912, %v2914
    %v2917 = vmax.f32 %v2915, 0.0
    %v2918 = vmax.f32 %v2916, 0.0
    %v2919 = vadd.f32 %v2917, 1e-05
    %v2920 = vadd.f32 %v2918, 1e-05
    %v2921 = vrsqrt.pop %v2919
    %v2922 = vrsqrt.pop %v2920
    %v2925 = vcombine.low %v2921, %v2922
    %v2927 = vunpack.c.l.s4 1966171168
    %v2928 = vunpack.c.0.s8 %v2927
    %v2929 = vlaneseq
    %v2930 = vshrl.u32 %v2929, 7
    %v2931 = vsub.s32 %v2928, %v2930
    %v2932 = vrot.slane %v2925, %v2931
    %v2934 = vunpack.c.l.s4 1966171168
    %v2935 = vunpack.c.0.s8 %v2934
    %v2936 = vlaneseq
    %v2937 = vshrl.u32 %v2936, 7
    %v2938 = vsub.s32 %v2935, %v2937
    %v2939 = vrot.slane %v2932, %v2938
    %v2941 = vmul.f32 %v2880, %v2939
    %v2943 = vlaneseq
    %v2944 = vshrl.u32 %v2943, 7
    %v2945 = vsub.s32 0, %v2944
    %v2946 = vrot.slane %v2941, %v2945
    %v2947 = vlaneseq
    %v2948 = vshrl.u32 %v2947, 7
    %v2949 = vsub.s32 1, %v2948
    %v2950 = vrot.slane %v2941, %v2949
    %v2953 = vmul.f32 %v2895, %v2946
    %v2954 = vmul.f32 %v2896, %v2950
    %v2957 = vcombine.low %v2953, %v2954
    %v2959 = vunpack.c.l.s4 1966171168
    %v2960 = vunpack.c.0.s8 %v2959
    %v2961 = vlaneseq
    %v2962 = vshrl.u32 %v2961, 7
    %v2963 = vsub.s32 %v2960, %v2962
    %v2964 = vrot.slane %v2957, %v2963
    %v2966 = vunpack.c.l.s4 1966171168
    %v2967 = vunpack.c.0.s8 %v2966
    %v2968 = vlaneseq
    %v2969 = vshrl.u32 %v2968, 7
    %v2970 = vsub.s32 %v2967, %v2969
    %v2971 = vrot.slane %v2964, %v2970
    %v2973 = vsub.f32 %v2882, %v2971
    %v2974 = vmul.f32 %v2873, %v2946
    %v2975 = vmul.f32 %v2875, %v2950
    %v2977 = vlaneseq
    %v2978 = vshrl.u32 %v2977, 7
    %v2979 = vsub.s32 0, %v2978
    %v2980 = vrot.slane %v2973, %v2979
    %v2981 = vlaneseq
    %v2982 = vshrl.u32 %v2981, 7
    %v2983 = vsub.s32 1, %v2982
    %v2984 = vrot.slane %v2973, %v2983
    %v2987 = vadd.f32 %v2974, %v2980
    %v2988 = vadd.f32 %v2975, %v2984
    %v2989 = vmax.f32 %v2987, 0.0
    %v2990 = vmax.f32 %v2988, 0.0
    %v2991 = vpack.c.bf16 %v2989, %v2989
    %v2992 = vpack.c.bf16 %v2990, %v2990
    %s2993 = scalar_lea.vmem [#allocation11], 768
    %v2994 = vld [vmem:[%s2993] sm:$0xff]
    %v2995 = vld [vmem:[%s2993 + $0x8] sm:$0xff]
    %v2996 = vld [vmem:[%s2993 + $0x10] sm:$0xff]
    %v2997 = vld [vmem:[%s2993 + $0x18] sm:$0xff]
    %v2998 = vld [vmem:[%s2993 + $0x20] sm:$0xff]
    %v2999 = vld [vmem:[%s2993 + $0x28] sm:$0xff]
    %v3000 = vld [vmem:[%s2993 + $0x30] sm:$0xff]
    %v3001 = vld [vmem:[%s2993 + $0x38] sm:$0xff]
    %v3002 = vld [vmem:[%s2993 + $0x40] sm:$0xff]
    %v3003 = vld [vmem:[%s2993 + $0x48] sm:$0xff]
    %v3004 = vld [vmem:[%s2993 + $0x50] sm:$0xff]
    %v3005 = vld [vmem:[%s2993 + $0x58] sm:$0xff]
    %v3006 = vld [vmem:[%s2993 + $0x60] sm:$0xff]
    %v3007 = vld [vmem:[%s2993 + $0x68] sm:$0xff]
    %v3008 = vld [vmem:[%s2993 + $0x70] sm:$0xff]
    %v3009 = vld [vmem:[%s2993 + $0x78] sm:$0xff]
    %v3010 = vld [vmem:[%s2993 + $0x80] sm:$0xff]
    %v3011 = vld [vmem:[%s2993 + $0x88] sm:$0xff]
    %v3012 = vld [vmem:[%s2993 + $0x90] sm:$0xff]
    %v3013 = vld [vmem:[%s2993 + $0x98] sm:$0xff]
    %v3014 = vld [vmem:[%s2993 + $0xa0] sm:$0xff]
    %v3015 = vld [vmem:[%s2993 + $0xa8] sm:$0xff]
    %v3016 = vld [vmem:[%s2993 + $0xb0] sm:$0xff]
    %v3017 = vld [vmem:[%s2993 + $0xb8] sm:$0xff]
    %v3018 = vld [vmem:[%s2993 + $0xc0] sm:$0xff]
    %v3019 = vld [vmem:[%s2993 + $0xc8] sm:$0xff]
    %v3020 = vld [vmem:[%s2993 + $0xd0] sm:$0xff]
    %v3021 = vld [vmem:[%s2993 + $0xd8] sm:$0xff]
    %v3022 = vld [vmem:[%s2993 + $0xe0] sm:$0xff]
    %v3023 = vld [vmem:[%s2993 + $0xe8] sm:$0xff]
    %v3024 = vld [vmem:[%s2993 + $0xf0] sm:$0xff]
    %v3025 = vld [vmem:[%s2993 + $0xf8] sm:$0xff]
    %v3058 = vunpack.c.l.b16 %v2994
    %v3059 = vunpack.c.h.b16 %v2994
    %v3060 = vunpack.c.l.b16 %v2995
    %v3061 = vunpack.c.h.b16 %v2995
    %v3062 = vunpack.c.l.b16 %v2996
    %v3063 = vunpack.c.h.b16 %v2996
    %v3064 = vunpack.c.l.b16 %v2997
    %v3065 = vunpack.c.h.b16 %v2997
    %v3066 = vunpack.c.l.b16 %v2998
    %v3067 = vunpack.c.h.b16 %v2998
    %v3068 = vunpack.c.l.b16 %v2999
    %v3069 = vunpack.c.h.b16 %v2999
    %v3070 = vunpack.c.l.b16 %v3000
    %v3071 = vunpack.c.h.b16 %v3000
    %v3072 = vunpack.c.l.b16 %v3001
    %v3073 = vunpack.c.h.b16 %v3001
    %v3074 = vunpack.c.l.b16 %v3002
    %v3075 = vunpack.c.h.b16 %v3002
    %v3076 = vunpack.c.l.b16 %v3003
    %v3077 = vunpack.c.h.b16 %v3003
    %v3078 = vunpack.c.l.b16 %v3004
    %v3079 = vunpack.c.h.b16 %v3004
    %v3080 = vunpack.c.l.b16 %v3005
    %v3081 = vunpack.c.h.b16 %v3005
    %v3082 = vunpack.c.l.b16 %v3006
    %v3083 = vunpack.c.h.b16 %v3006
    %v3084 = vunpack.c.l.b16 %v3007
    %v3085 = vunpack.c.h.b16 %v3007
    %v3086 = vunpack.c.l.b16 %v3008
    %v3087 = vunpack.c.h.b16 %v3008
    %v3088 = vunpack.c.l.b16 %v3009
    %v3089 = vunpack.c.h.b16 %v3009
    %v3090 = vunpack.c.l.b16 %v3010
    %v3091 = vunpack.c.h.b16 %v3010
    %v3092 = vunpack.c.l.b16 %v3011
    %v3093 = vunpack.c.h.b16 %v3011
    %v3094 = vunpack.c.l.b16 %v3012
    %v3095 = vunpack.c.h.b16 %v3012
    %v3096 = vunpack.c.l.b16 %v3013
    %v3097 = vunpack.c.h.b16 %v3013
    %v3098 = vunpack.c.l.b16 %v3014
    %v3099 = vunpack.c.h.b16 %v3014
    %v3100 = vunpack.c.l.b16 %v3015
    %v3101 = vunpack.c.h.b16 %v3015
    %v3102 = vunpack.c.l.b16 %v3016
    %v3103 = vunpack.c.h.b16 %v3016
    %v3104 = vunpack.c.l.b16 %v3017
    %v3105 = vunpack.c.h.b16 %v3017
    %v3106 = vunpack.c.l.b16 %v3018
    %v3107 = vunpack.c.h.b16 %v3018
    %v3108 = vunpack.c.l.b16 %v3019
    %v3109 = vunpack.c.h.b16 %v3019
    %v3110 = vunpack.c.l.b16 %v3020
    %v3111 = vunpack.c.h.b16 %v3020
    %v3112 = vunpack.c.l.b16 %v3021
    %v3113 = vunpack.c.h.b16 %v3021
    %v3114 = vunpack.c.l.b16 %v3022
    %v3115 = vunpack.c.h.b16 %v3022
    %v3116 = vunpack.c.l.b16 %v3023
    %v3117 = vunpack.c.h.b16 %v3023
    %v3118 = vunpack.c.l.b16 %v3024
    %v3119 = vunpack.c.h.b16 %v3024
    %v3120 = vunpack.c.l.b16 %v3025
    %v3121 = vunpack.c.h.b16 %v3025
    %v3122 = vpack.c.b16 %v3060, %v3058
    %v3123 = vpack.c.b16 %v3061, %v3059
    %v3124 = vpack.c.b16 %v3064, %v3062
    %v3125 = vpack.c.b16 %v3065, %v3063
    %v3126 = vpack.c.b16 %v3068, %v3066
    %v3127 = vpack.c.b16 %v3069, %v3067
    %v3128 = vpack.c.b16 %v3072, %v3070
    %v3129 = vpack.c.b16 %v3073, %v3071
    %v3130 = vpack.c.b16 %v3076, %v3074
    %v3131 = vpack.c.b16 %v3077, %v3075
    %v3132 = vpack.c.b16 %v3080, %v3078
    %v3133 = vpack.c.b16 %v3081, %v3079
    %v3134 = vpack.c.b16 %v3084, %v3082
    %v3135 = vpack.c.b16 %v3085, %v3083
    %v3136 = vpack.c.b16 %v3088, %v3086
    %v3137 = vpack.c.b16 %v3089, %v3087
    %v3138 = vpack.c.b16 %v3092, %v3090
    %v3139 = vpack.c.b16 %v3093, %v3091
    %v3140 = vpack.c.b16 %v3096, %v3094
    %v3141 = vpack.c.b16 %v3097, %v3095
    %v3142 = vpack.c.b16 %v3100, %v3098
    %v3143 = vpack.c.b16 %v3101, %v3099
    %v3144 = vpack.c.b16 %v3104, %v3102
    %v3145 = vpack.c.b16 %v3105, %v3103
    %v3146 = vpack.c.b16 %v3108, %v3106
    %v3147 = vpack.c.b16 %v3109, %v3107
    %v3148 = vpack.c.b16 %v3112, %v3110
    %v3149 = vpack.c.b16 %v3113, %v3111
    %v3150 = vpack.c.b16 %v3116, %v3114
    %v3151 = vpack.c.b16 %v3117, %v3115
    %v3152 = vpack.c.b16 %v3120, %v3118
    %v3153 = vpack.c.b16 %v3121, %v3119
    %3186 = vmatprep.subr.bf16.mxu0 %v3123
    %3187 = vmatpush1.bf16.msra.mxu0 %v3122
    %3188 = vmatprep.subr.bf16.mxu0 %v3125
    %3189 = vmatpush1.bf16.msra.mxu0 %v3124
    %3190 = vmatprep.subr.bf16.mxu0 %v3127
    %3191 = vmatpush1.bf16.msra.mxu0 %v3126
    %3192 = vmatprep.subr.bf16.mxu0 %v3129
    %3193 = vmatpush1.bf16.msra.mxu0 %v3128
    %3194 = vmatprep.subr.bf16.mxu0 %v3131
    %3195 = vmatpush1.bf16.msra.mxu0 %v3130
    %3196 = vmatprep.subr.bf16.mxu0 %v3133
    %3197 = vmatpush1.bf16.msra.mxu0 %v3132
    %3198 = vmatprep.subr.bf16.mxu0 %v3135
    %3199 = vmatpush1.bf16.msra.mxu0 %v3134
    %3200 = vmatprep.subr.bf16.mxu0 %v3137
    %3201 = vmatpush1.bf16.msra.mxu0 %v3136
    %3202 = vmatprep.subr.bf16.mxu0 %v3139
    %3203 = vmatpush1.bf16.msra.mxu0 %v3138
    %3204 = vmatprep.subr.bf16.mxu0 %v3141
    %3205 = vmatpush1.bf16.msra.mxu0 %v3140
    %3206 = vmatprep.subr.bf16.mxu0 %v3143
    %3207 = vmatpush1.bf16.msra.mxu0 %v3142
    %3208 = vmatprep.subr.bf16.mxu0 %v3145
    %3209 = vmatpush1.bf16.msra.mxu0 %v3144
    %3210 = vmatprep.subr.bf16.mxu0 %v3147
    %3211 = vmatpush1.bf16.msra.mxu0 %v3146
    %3212 = vmatprep.subr.bf16.mxu0 %v3149
    %3213 = vmatpush1.bf16.msra.mxu0 %v3148
    %3214 = vmatprep.subr.bf16.mxu0 %v3151
    %3215 = vmatpush1.bf16.msra.mxu0 %v3150
    %3216 = vmatprep.subr.bf16.mxu0 %v3153
    %3217 = vmatpush1.bf16.msra.mxu0 %v3152
    %3218 = vmatprep.mubr.bf16.mxu0 %v2992
    %3219 = vmatmul.mubr.bf16.gmra.mrb[0].mxu0 %v2991
    %v3220 = vpop.f32.mrb[0].mxu0
    %v3221 = vadd.f32 0.0, %v3220
    %v3222 = vpop.f32.mrb[0].mxu0
    %v3223 = vadd.f32 0.0, %v3222
    %v3224 = vpop.f32.mrb[0].mxu0
    %v3225 = vpop.f32.mrb[0].mxu0
    %3226 = vdwg.mxu0
    %s3227 = scalar_lea.vmem %s10, 6
    %v3228 = vld [vmem:[%s3227] sm:$0x3]
    %s3229 = scalar_lea.vmem [#allocation13], 6
    %v3230 = vld [vmem:[%s3229] sm:$0x3]
    %v3231 = vrot.slane %v3221, 4
    %v3232 = vadd.f32 %v3221, %v3231
    %v3233 = vrot.slane %v3232, 2
    %v3234 = vadd.f32 %v3232, %v3233
    %v3235 = vrot.slane %v3234, 1
    %v3236 = vadd.f32 %v3234, %v3235
    %v3237 = vrot.slane %v3223, 4
    %v3238 = vadd.f32 %v3223, %v3237
    %v3239 = vrot.slane %v3238, 2
    %v3240 = vadd.f32 %v3238, %v3239
    %v3241 = vrot.slane %v3240, 1
    %v3242 = vadd.f32 %v3240, %v3241
    %v3243 = vmul.f32 %v3236, 0.125
    %v3244 = vmul.f32 %v3242, 0.125
    %v3245 = vmul.f32 %v3221, %v3221
    %v3246 = vmul.f32 %v3223, %v3223
    %v3247 = vrot.slane %v3245, 4
    %v3248 = vadd.f32 %v3245, %v3247
    %v3249 = vrot.slane %v3248, 2
    %v3250 = vadd.f32 %v3248, %v3249
    %v3251 = vrot.slane %v3250, 1
    %v3252 = vadd.f32 %v3250, %v3251
    %v3253 = vrot.slane %v3246, 4
    %v3254 = vadd.f32 %v3246, %v3253
    %v3255 = vrot.slane %v3254, 2
    %v3256 = vadd.f32 %v3254, %v3255
    %v3257 = vrot.slane %v3256, 1
    %v3258 = vadd.f32 %v3256, %v3257
    %v3259 = vmul.f32 %v3252, 0.125
    %v3260 = vmul.f32 %v3258, 0.125
    %v3261 = vmul.f32 %v3243, %v3243
    %v3262 = vmul.f32 %v3244, %v3244
    %v3263 = vsub.f32 %v3259, %v3261
    %v3264 = vsub.f32 %v3260, %v3262
    %v3265 = vmax.f32 %v3263, 0.0
    %v3266 = vmax.f32 %v3264, 0.0
    %v3267 = vadd.f32 %v3265, 1e-05
    %v3268 = vadd.f32 %v3266, 1e-05
    %v3269 = vrsqrt.pop %v3267
    %v3270 = vrsqrt.pop %v3268
    %v3273 = vcombine.low %v3269, %v3270
    %v3275 = vunpack.c.l.s4 1966171168
    %v3276 = vunpack.c.0.s8 %v3275
    %v3277 = vlaneseq
    %v3278 = vshrl.u32 %v3277, 7
    %v3279 = vsub.s32 %v3276, %v3278
    %v3280 = vrot.slane %v3273, %v3279
    %v3282 = vunpack.c.l.s4 1966171168
    %v3283 = vunpack.c.0.s8 %v3282
    %v3284 = vlaneseq
    %v3285 = vshrl.u32 %v3284, 7
    %v3286 = vsub.s32 %v3283, %v3285
    %v3287 = vrot.slane %v3280, %v3286
    %v3289 = vmul.f32 %v3228, %v3287
    %v3291 = vlaneseq
    %v3292 = vshrl.u32 %v3291, 7
    %v3293 = vsub.s32 0, %v3292
    %v3294 = vrot.slane %v3289, %v3293
    %v3295 = vlaneseq
    %v3296 = vshrl.u32 %v3295, 7
    %v3297 = vsub.s32 1, %v3296
    %v3298 = vrot.slane %v3289, %v3297
    %v3301 = vmul.f32 %v3243, %v3294
    %v3302 = vmul.f32 %v3244, %v3298
    %v3305 = vcombine.low %v3301, %v3302
    %v3307 = vunpack.c.l.s4 1966171168
    %v3308 = vunpack.c.0.s8 %v3307
    %v3309 = vlaneseq
    %v3310 = vshrl.u32 %v3309, 7
    %v3311 = vsub.s32 %v3308, %v3310
    %v3312 = vrot.slane %v3305, %v3311
    %v3314 = vunpack.c.l.s4 1966171168
    %v3315 = vunpack.c.0.s8 %v3314
    %v3316 = vlaneseq
    %v3317 = vshrl.u32 %v3316, 7
    %v3318 = vsub.s32 %v3315, %v3317
    %v3319 = vrot.slane %v3312, %v3318
    %v3321 = vsub.f32 %v3230, %v3319
    %v3322 = vmul.f32 %v3221, %v3294
    %v3323 = vmul.f32 %v3223, %v3298
    %v3325 = vlaneseq
    %v3326 = vshrl.u32 %v3325, 7
    %v3327 = vsub.s32 0, %v3326
    %v3328 = vrot.slane %v3321, %v3327
    %v3329 = vlaneseq
    %v3330 = vshrl.u32 %v3329, 7
    %v3331 = vsub.s32 1, %v3330
    %v3332 = vrot.slane %v3321, %v3331
    %v3335 = vadd.f32 %v3322, %v3328
    %v3336 = vadd.f32 %v3323, %v3332
    %v3337 = vadd.f32 %v3335, %v2641
    %v3338 = vadd.f32 %v3336, %v2642
    %v3339 = vmax.f32 %v3337, 0.0
    %v3340 = vmax.f32 %v3338, 0.0
    %v3341 = vld [vmem:[%s13] sm:$0x1]
    %v3342 = vpack.c.bf16 %v1943, %v1943
    %v3343 = vpack.c.bf16 %v1944, %v1944
    %v3344 = vld [vmem:[#allocation14] sm:$0xf]
    %v3345 = vld [vmem:[#allocation14 + $0x4] sm:$0xf]
    %v3346 = vld [vmem:[#allocation14 + $0x8] sm:$0xf]
    %v3347 = vld [vmem:[#allocation14 + $0xc] sm:$0xf]
    %v3348 = vld [vmem:[#allocation14 + $0x10] sm:$0xf]
    %v3349 = vld [vmem:[#allocation14 + $0x14] sm:$0xf]
    %v3350 = vld [vmem:[#allocation14 + $0x18] sm:$0xf]
    %v3351 = vld [vmem:[#allocation14 + $0x1c] sm:$0xf]
    %v3352 = vld [vmem:[#allocation14 + $0x20] sm:$0xf]
    %v3353 = vld [vmem:[#allocation14 + $0x24] sm:$0xf]
    %v3354 = vld [vmem:[#allocation14 + $0x28] sm:$0xf]
    %v3355 = vld [vmem:[#allocation14 + $0x2c] sm:$0xf]
    %v3356 = vld [vmem:[#allocation14 + $0x30] sm:$0xf]
    %v3357 = vld [vmem:[#allocation14 + $0x34] sm:$0xf]
    %v3358 = vld [vmem:[#allocation14 + $0x38] sm:$0xf]
    %v3359 = vld [vmem:[#allocation14 + $0x3c] sm:$0xf]
    %v3360 = vld [vmem:[#allocation14 + $0x40] sm:$0xf]
    %v3361 = vld [vmem:[#allocation14 + $0x44] sm:$0xf]
    %v3362 = vld [vmem:[#allocation14 + $0x48] sm:$0xf]
    %v3363 = vld [vmem:[#allocation14 + $0x4c] sm:$0xf]
    %v3364 = vld [vmem:[#allocation14 + $0x50] sm:$0xf]
    %v3365 = vld [vmem:[#allocation14 + $0x54] sm:$0xf]
    %v3366 = vld [vmem:[#allocation14 + $0x58] sm:$0xf]
    %v3367 = vld [vmem:[#allocation14 + $0x5c] sm:$0xf]
    %v3368 = vld [vmem:[#allocation14 + $0x60] sm:$0xf]
    %v3369 = vld [vmem:[#allocation14 + $0x64] sm:$0xf]
    %v3370 = vld [vmem:[#allocation14 + $0x68] sm:$0xf]
    %v3371 = vld [vmem:[#allocation14 + $0x6c] sm:$0xf]
    %v3372 = vld [vmem:[#allocation14 + $0x70] sm:$0xf]
    %v3373 = vld [vmem:[#allocation14 + $0x74] sm:$0xf]
    %v3374 = vld [vmem:[#allocation14 + $0x78] sm:$0xf]
    %v3375 = vld [vmem:[#allocation14 + $0x7c] sm:$0xf]
    %v3408 = vunpack.c.l.b16 %v3344
    %v3409 = vunpack.c.l.b16 %v3345
    %v3410 = vunpack.c.l.b16 %v3346
    %v3411 = vunpack.c.l.b16 %v3347
    %v3412 = vunpack.c.l.b16 %v3348
    %v3413 = vunpack.c.l.b16 %v3349
    %v3414 = vunpack.c.l.b16 %v3350
    %v3415 = vunpack.c.l.b16 %v3351
    %v3416 = vunpack.c.l.b16 %v3352
    %v3417 = vunpack.c.l.b16 %v3353
    %v3418 = vunpack.c.l.b16 %v3354
    %v3419 = vunpack.c.l.b16 %v3355
    %v3420 = vunpack.c.l.b16 %v3356
    %v3421 = vunpack.c.l.b16 %v3357
    %v3422 = vunpack.c.l.b16 %v3358
    %v3423 = vunpack.c.l.b16 %v3359
    %v3424 = vunpack.c.l.b16 %v3360
    %v3425 = vunpack.c.l.b16 %v3361
    %v3426 = vunpack.c.l.b16 %v3362
    %v3427 = vunpack.c.l.b16 %v3363
    %v3428 = vunpack.c.l.b16 %v3364
    %v3429 = vunpack.c.l.b16 %v3365
    %v3430 = vunpack.c.l.b16 %v3366
    %v3431 = vunpack.c.l.b16 %v3367
    %v3432 = vunpack.c.l.b16 %v3368
    %v3433 = vunpack.c.l.b16 %v3369
    %v3434 = vunpack.c.l.b16 %v3370
    %v3435 = vunpack.c.l.b16 %v3371
    %v3436 = vunpack.c.l.b16 %v3372
    %v3437 = vunpack.c.l.b16 %v3373
    %v3438 = vunpack.c.l.b16 %v3374
    %v3439 = vunpack.c.l.b16 %v3375
    %v3440 = vpack.c.b16 %v3409, %v3408
    %v3441 = vpack.c.b16 %v3411, %v3410
    %v3442 = vpack.c.b16 %v3413, %v3412
    %v3443 = vpack.c.b16 %v3415, %v3414
    %v3444 = vpack.c.b16 %v3417, %v3416
    %v3445 = vpack.c.b16 %v3419, %v3418
    %v3446 = vpack.c.b16 %v3421, %v3420
    %v3447 = vpack.c.b16 %v3423, %v3422
    %v3448 = vpack.c.b16 %v3425, %v3424
    %v3449 = vpack.c.b16 %v3427, %v3426
    %v3450 = vpack.c.b16 %v3429, %v3428
    %v3451 = vpack.c.b16 %v3431, %v3430
    %v3452 = vpack.c.b16 %v3433, %v3432
    %v3453 = vpack.c.b16 %v3435, %v3434
    %v3454 = vpack.c.b16 %v3437, %v3436
    %v3455 = vpack.c.b16 %v3439, %v3438
    %3472 = vmatprep.subr.bf16.mxu0 0
    %3473 = vmatpush1.bf16.msra.mxu0 %v3440
    %3474 = vmatprep.subr.bf16.mxu0 0
    %3475 = vmatpush1.bf16.msra.mxu0 %v3441
    %3476 = vmatprep.subr.bf16.mxu0 0
    %3477 = vmatpush1.bf16.msra.mxu0 %v3442
    %3478 = vmatprep.subr.bf16.mxu0 0
    %3479 = vmatpush1.bf16.msra.mxu0 %v3443
    %3480 = vmatprep.subr.bf16.mxu0 0
    %3481 = vmatpush1.bf16.msra.mxu0 %v3444
    %3482 = vmatprep.subr.bf16.mxu0 0
    %3483 = vmatpush1.bf16.msra.mxu0 %v3445
    %3484 = vmatprep.subr.bf16.mxu0 0
    %3485 = vmatpush1.bf16.msra.mxu0 %v3446
    %3486 = vmatprep.subr.bf16.mxu0 0
    %3487 = vmatpush1.bf16.msra.mxu0 %v3447
    %3488 = vmatprep.subr.bf16.mxu0 0
    %3489 = vmatpush1.bf16.msra.mxu0 %v3448
    %3490 = vmatprep.subr.bf16.mxu0 0
    %3491 = vmatpush1.bf16.msra.mxu0 %v3449
    %3492 = vmatprep.subr.bf16.mxu0 0
    %3493 = vmatpush1.bf16.msra.mxu0 %v3450
    %3494 = vmatprep.subr.bf16.mxu0 0
    %3495 = vmatpush1.bf16.msra.mxu0 %v3451
    %3496 = vmatprep.subr.bf16.mxu0 0
    %3497 = vmatpush1.bf16.msra.mxu0 %v3452
    %3498 = vmatprep.subr.bf16.mxu0 0
    %3499 = vmatpush1.bf16.msra.mxu0 %v3453
    %3500 = vmatprep.subr.bf16.mxu0 0
    %3501 = vmatpush1.bf16.msra.mxu0 %v3454
    %3502 = vmatprep.subr.bf16.mxu0 0
    %3503 = vmatpush1.bf16.msra.mxu0 %v3455
    %3504 = vmatprep.mubr.bf16.mxu0 %v3343
    %3505 = vmatmul.mubr.bf16.gmra.mrb[0].mxu0 %v3342
    %v3506 = vpop.f32.mrb[0].mxu0
    %v3507 = vadd.f32 0.0, %v3506
    %v3508 = vpop.f32.mrb[0].mxu0
    %v3509 = vpop.f32.mrb[0].mxu0
    %v3510 = vpop.f32.mrb[0].mxu0
    %3511 = vdwg.mxu0
    %v3513 = vlaneseq
    %v3514 = vshrl.u32 %v3513, 7
    %v3515 = vsub.s32 0, %v3514
    %v3516 = vrot.slane %v3341, %v3515
    %v3518 = vadd.f32 %v3516, %v3507
    %v3519 = vpack.c.bf16 %v3339, %v3339
    %v3520 = vpack.c.bf16 %v3340, %v3340
    %s3521 = scalar_lea.vmem [#allocation14], 128
    %v3522 = vld [vmem:[%s3521] sm:$0xf]
    %v3523 = vld [vmem:[%s3521 + $0x4] sm:$0xf]
    %v3524 = vld [vmem:[%s3521 + $0x8] sm:$0xf]
    %v3525 = vld [vmem:[%s3521 + $0xc] sm:$0xf]
    %v3526 = vld [vmem:[%s3521 + $0x10] sm:$0xf]
    %v3527 = vld [vmem:[%s3521 + $0x14] sm:$0xf]
    %v3528 = vld [vmem:[%s3521 + $0x18] sm:$0xf]
    %v3529 = vld [vmem:[%s3521 + $0x1c] sm:$0xf]
    %v3530 = vld [vmem:[%s3521 + $0x20] sm:$0xf]
    %v3531 = vld [vmem:[%s3521 + $0x24] sm:$0xf]
    %v3532 = vld [vmem:[%s3521 + $0x28] sm:$0xf]
    %v3533 = vld [vmem:[%s3521 + $0x2c] sm:$0xf]
    %v3534 = vld [vmem:[%s3521 + $0x30] sm:$0xf]
    %v3535 = vld [vmem:[%s3521 + $0x34] sm:$0xf]
    %v3536 = vld [vmem:[%s3521 + $0x38] sm:$0xf]
    %v3537 = vld [vmem:[%s3521 + $0x3c] sm:$0xf]
    %v3538 = vld [vmem:[%s3521 + $0x40] sm:$0xf]
    %v3539 = vld [vmem:[%s3521 + $0x44] sm:$0xf]
    %v3540 = vld [vmem:[%s3521 + $0x48] sm:$0xf]
    %v3541 = vld [vmem:[%s3521 + $0x4c] sm:$0xf]
    %v3542 = vld [vmem:[%s3521 + $0x50] sm:$0xf]
    %v3543 = vld [vmem:[%s3521 + $0x54] sm:$0xf]
    %v3544 = vld [vmem:[%s3521 + $0x58] sm:$0xf]
    %v3545 = vld [vmem:[%s3521 + $0x5c] sm:$0xf]
    %v3546 = vld [vmem:[%s3521 + $0x60] sm:$0xf]
    %v3547 = vld [vmem:[%s3521 + $0x64] sm:$0xf]
    %v3548 = vld [vmem:[%s3521 + $0x68] sm:$0xf]
    %v3549 = vld [vmem:[%s3521 + $0x6c] sm:$0xf]
    %v3550 = vld [vmem:[%s3521 + $0x70] sm:$0xf]
    %v3551 = vld [vmem:[%s3521 + $0x74] sm:$0xf]
    %v3552 = vld [vmem:[%s3521 + $0x78] sm:$0xf]
    %v3553 = vld [vmem:[%s3521 + $0x7c] sm:$0xf]
    %v3586 = vunpack.c.l.b16 %v3522
    %v3587 = vunpack.c.l.b16 %v3523
    %v3588 = vunpack.c.l.b16 %v3524
    %v3589 = vunpack.c.l.b16 %v3525
    %v3590 = vunpack.c.l.b16 %v3526
    %v3591 = vunpack.c.l.b16 %v3527
    %v3592 = vunpack.c.l.b16 %v3528
    %v3593 = vunpack.c.l.b16 %v3529
    %v3594 = vunpack.c.l.b16 %v3530
    %v3595 = vunpack.c.l.b16 %v3531
    %v3596 = vunpack.c.l.b16 %v3532
    %v3597 = vunpack.c.l.b16 %v3533
    %v3598 = vunpack.c.l.b16 %v3534
    %v3599 = vunpack.c.l.b16 %v3535
    %v3600 = vunpack.c.l.b16 %v3536
    %v3601 = vunpack.c.l.b16 %v3537
    %v3602 = vunpack.c.l.b16 %v3538
    %v3603 = vunpack.c.l.b16 %v3539
    %v3604 = vunpack.c.l.b16 %v3540
    %v3605 = vunpack.c.l.b16 %v3541
    %v3606 = vunpack.c.l.b16 %v3542
    %v3607 = vunpack.c.l.b16 %v3543
    %v3608 = vunpack.c.l.b16 %v3544
    %v3609 = vunpack.c.l.b16 %v3545
    %v3610 = vunpack.c.l.b16 %v3546
    %v3611 = vunpack.c.l.b16 %v3547
    %v3612 = vunpack.c.l.b16 %v3548
    %v3613 = vunpack.c.l.b16 %v3549
    %v3614 = vunpack.c.l.b16 %v3550
    %v3615 = vunpack.c.l.b16 %v3551
    %v3616 = vunpack.c.l.b16 %v3552
    %v3617 = vunpack.c.l.b16 %v3553
    %v3618 = vpack.c.b16 %v3587, %v3586
    %v3619 = vpack.c.b16 %v3589, %v3588
    %v3620 = vpack.c.b16 %v3591, %v3590
    %v3621 = vpack.c.b16 %v3593, %v3592
    %v3622 = vpack.c.b16 %v3595, %v3594
    %v3623 = vpack.c.b16 %v3597, %v3596
    %v3624 = vpack.c.b16 %v3599, %v3598
    %v3625 = vpack.c.b16 %v3601, %v3600
    %v3626 = vpack.c.b16 %v3603, %v3602
    %v3627 = vpack.c.b16 %v3605, %v3604
    %v3628 = vpack.c.b16 %v3607, %v3606
    %v3629 = vpack.c.b16 %v3609, %v3608
    %v3630 = vpack.c.b16 %v3611, %v3610
    %v3631 = vpack.c.b16 %v3613, %v3612
    %v3632 = vpack.c.b16 %v3615, %v3614
    %v3633 = vpack.c.b16 %v3617, %v3616
    %3650 = vmatprep.subr.bf16.mxu0 0
    %3651 = vmatpush1.bf16.msra.mxu0 %v3618
    %3652 = vmatprep.subr.bf16.mxu0 0
    %3653 = vmatpush1.bf16.msra.mxu0 %v3619
    %3654 = vmatprep.subr.bf16.mxu0 0
    %3655 = vmatpush1.bf16.msra.mxu0 %v3620
    %3656 = vmatprep.subr.bf16.mxu0 0
    %3657 = vmatpush1.bf16.msra.mxu0 %v3621
    %3658 = vmatprep.subr.bf16.mxu0 0
    %3659 = vmatpush1.bf16.msra.mxu0 %v3622
    %3660 = vmatprep.subr.bf16.mxu0 0
    %3661 = vmatpush1.bf16.msra.mxu0 %v3623
    %3662 = vmatprep.subr.bf16.mxu0 0
    %3663 = vmatpush1.bf16.msra.mxu0 %v3624
    %3664 = vmatprep.subr.bf16.mxu0 0
    %3665 = vmatpush1.bf16.msra.mxu0 %v3625
    %3666 = vmatprep.subr.bf16.mxu0 0
    %3667 = vmatpush1.bf16.msra.mxu0 %v3626
    %3668 = vmatprep.subr.bf16.mxu0 0
    %3669 = vmatpush1.bf16.msra.mxu0 %v3627
    %3670 = vmatprep.subr.bf16.mxu0 0
    %3671 = vmatpush1.bf16.msra.mxu0 %v3628
    %3672 = vmatprep.subr.bf16.mxu0 0
    %3673 = vmatpush1.bf16.msra.mxu0 %v3629
    %3674 = vmatprep.subr.bf16.mxu0 0
    %3675 = vmatpush1.bf16.msra.mxu0 %v3630
    %3676 = vmatprep.subr.bf16.mxu0 0
    %3677 = vmatpush1.bf16.msra.mxu0 %v3631
    %3678 = vmatprep.subr.bf16.mxu0 0
    %3679 = vmatpush1.bf16.msra.mxu0 %v3632
    %3680 = vmatprep.subr.bf16.mxu0 0
    %3681 = vmatpush1.bf16.msra.mxu0 %v3633
    %3682 = vmatprep.mubr.bf16.mxu0 %v3520
    %3683 = vmatmul.mubr.bf16.gmra.mrb[0].mxu0 %v3519
    %v3684 = vpop.f32.mrb[0].mxu0
    %v3685 = vadd.f32 0.0, %v3684
    %v3686 = vpop.f32.mrb[0].mxu0
    %v3687 = vpop.f32.mrb[0].mxu0
    %v3688 = vpop.f32.mrb[0].mxu0
    %3689 = vdwg.mxu0
    %v3690 = vadd.f32 %v3518, %v3685
    %3691 = vst [vmem:[#allocation16] sm:$0xff] %v3690
    // Predicated region
    $region90: #{fwd.1} parent=1 // pred_check
      _
    $region91: #{fwd.1} parent=1 // pred_check_branch
      %3693 = sbr.rel (0) target = $region93
    $region92: #{fwd.1} parent=1 // pred_region
      %s3695 = ssub.s32 128, 128
      %3696 = vsyncadd [#allocation4], %s3695
      %s3698 = sshll.u32 [#allocation16], 4
      %s3699 = int_to_ptr.vmem [resolvable:$true] %s3698
      %3701 = dma.vmem_to_hbm [thread:$0]  %s3699, 128, %s14, [#allocation4]
    $region93: #{fwd.1} parent=1 // pred_fallthru
      _
    // Predicated region
    $region94: #{fwd.1} parent=1 // pred_check
      _
    $region95: #{fwd.1} parent=1 // pred_check_branch
      %3703 = sbr.rel (0) target = $region97
    $region96: #{fwd.1} parent=1 // pred_region
      %3704 = dma.done [#allocation4], 128
    $region97: #{fwd.1} parent=1 // pred_fallthru
      _
    %3705 = vsyncpa [#allocation3], 1
    %3706 = vsyncpa [#allocation6], 1
    %3707 = vsyncpa [#allocation9], 1
    %3708 = vsyncpa [#allocation12], 1
    %3709 = vsyncpa [#allocation15], 1
    %3710 = vsyncpa [#allocation4], 1

</llo_original>
